<compile_context>
chip_gen: v7x
topology: tpu7x:2x2x1
jax: 0.10.0
libtpu: 0.0.40
codegen_flags: <defaults>
</compile_context>

<pallas_src>
import functools
import math

import jax
import jax.numpy as jnp
from jax.experimental import pallas as pl
from jax.experimental.pallas import tpu as pltpu

BN_EPS = 1e-5
_VMEM_LIMIT = 48 * 1024 * 1024   # <= ~48 MiB: safe on v7x (64 MiB physical VMEM)


def _attn_kernel(xq_ref, xkv_ref, wq_ref, bq_ref, wkv_ref, bkv_ref,
                 attnc_ref, wpa_ref, bpa_ref, wca_ref, bca_ref,
                 lin_pa_ref, lin_ca_ref,
                 qpa_scr, vpaq_scr, vcaq_scr, m_scr, l_scr, acc_scr,
                 *, n_valid, mask_kv):
    """Flash-style position attention + channel-attention apply, per query tile.

    Grid = (num_q_tiles, num_kv_tiles); the kv axis is the reduction axis.

    xq_ref    : (TQ, C)   query-tile rows of the (padded) feature matrix
    xkv_ref   : (TK, C)   kv-tile rows of the (padded) feature matrix
    wq_ref    : (C, 3C)   fused query-side weights  [pa_q | pa_v | ca_v]
    bq_ref    : (1, 3C)   fused query-side biases
    wkv_ref   : (C, 2C)   fused kv-side weights     [pa_k | pa_v]
    bkv_ref   : (1, 2C)   fused kv-side biases
    attnc_ref : (C, C)    precomputed channel map softmax(q_c^T k_c / sqrt(C))
    wpa/bpa   : (C,C)/(1,C)  position-branch LBR linear
    wca/bca   : (C,C)/(1,C)  channel-branch  LBR linear
    lin_pa_ref: (TQ, C)   out: position-branch LBR output (pre-BatchNorm)
    lin_ca_ref: (TQ, C)   out: channel-branch  LBR output (pre-BatchNorm)
    """
    ki = pl.program_id(1)
    nk = pl.num_programs(1)
    c = xq_ref.shape[1]
    tk = xkv_ref.shape[0]
    inv_sqrt_c = 1.0 / math.sqrt(c)

    @pl.when(ki == 0)
    def _init():
        # Fused query-side projection, once per query tile (only columns that
        # are actually consumed).  Stored into separate scratch refs so the
        # per-kv-step reads below are full-ref (no lane-offset slicing).
        proj_q = (jnp.dot(xq_ref[...], wq_ref[...],
                          preferred_element_type=jnp.float32) + bq_ref[...])
        qpa_scr[...] = proj_q[:, 0 * c:1 * c]      # pa_q  (query rows)
        vpaq_scr[...] = proj_q[:, 1 * c:2 * c]     # pa_v  (query rows)
        vcaq_scr[...] = proj_q[:, 2 * c:3 * c]     # ca_v  (query rows)
        m_scr[...] = jnp.full(m_scr.shape, -jnp.inf, dtype=jnp.float32)
        l_scr[...] = jnp.zeros(l_scr.shape, jnp.float32)
        acc_scr[...] = jnp.zeros(acc_scr.shape, jnp.float32)

    # Fused kv-side projection: one lane-dense (TK, 2C) matmul = [pa_k | pa_v].
    proj_kv = (jnp.dot(xkv_ref[...], wkv_ref[...],
                       preferred_element_type=jnp.float32) + bkv_ref[...])
    k_pa = proj_kv[:, 0 * c:1 * c]
    v_pa = proj_kv[:, 1 * c:2 * c]

    # ---- Position attention: online softmax over kv tiles ----
    s = jax.lax.dot_general(                       # q @ k.T without explicit .T
        qpa_scr[...], k_pa, (((1,), (1,)), ((), ())),
        preferred_element_type=jnp.float32) * inv_sqrt_c          # (TQ, TK)
    if mask_kv:                                    # padded kv rows -> -inf
        kv_idx = jax.lax.broadcasted_iota(jnp.int32, (1, tk), 1) + ki * tk
        s = jnp.where(kv_idx < n_valid, s, -jnp.inf)
    m_prev = m_scr[...]
    m_new = jnp.maximum(m_prev, jnp.max(s, axis=-1, keepdims=True))
    alpha = jnp.exp(m_prev - m_new)
    p = jnp.exp(s - m_new)
    l_scr[...] = alpha * l_scr[...] + jnp.sum(p, axis=-1, keepdims=True)
    acc_scr[...] = alpha * acc_scr[...] + jnp.dot(
        p, v_pa, preferred_element_type=jnp.float32)
    m_scr[...] = m_new

    @pl.when(ki == nk - 1)
    def _finalize():
        # Position branch: r = softmax(q k^T / sqrt(C)) v - v
        r_pa = acc_scr[...] / l_scr[...] - vpaq_scr[...]
        # Channel branch: r = v softmax(q^T k / sqrt(C)) - v; the (C,C) map is
        # hoisted out of the grid (identical for every query tile).
        v_ca = vcaq_scr[...]
        r_ca = jnp.dot(v_ca, attnc_ref[...],
                       preferred_element_type=jnp.float32) - v_ca
        # Two full-width LBR linears (no block-diagonal zero FLOPs, no concat).
        lin_pa_ref[...] = (jnp.dot(r_pa, wpa_ref[...],
                                   preferred_element_type=jnp.float32)
                           + bpa_ref[...])
        lin_ca_ref[...] = (jnp.dot(r_ca, wca_ref[...],
                                   preferred_element_type=jnp.float32)
                           + bca_ref[...])


def _bn_relu_residual_kernel(x_ref, lpa_ref, lca_ref, prm_ref, o_ref):
    """BatchNorm affine (precomputed scale/shift) + ReLU + residuals.

    prm_ref rows: [scale_pa, shift_pa, scale_ca, shift_ca], each (C,).
    """
    y_pa = jnp.maximum(lpa_ref[...] * prm_ref[0:1, :] + prm_ref[1:2, :], 0.0)
    y_ca = jnp.maximum(lca_ref[...] * prm_ref[2:3, :] + prm_ref[3:4, :], 0.0)
    o_ref[...] = y_pa + y_ca + 2.0 * x_ref[...]    # (relu_pa + x) + (relu_ca + x)


def _round_up(a, b):
    return (a + b - 1) // b * b


def _choose_tiles(n, cap=512):
    """Power-of-two (tq, tk), tq | tk; keep >= 2 query tiles when possible so
    the 'parallel' query axis can be sharded across both v7x TensorCores."""
    cap = max(8, cap)
    tk = min(cap, max(8, pl.next_power_of_2(n)))
    tq = tk
    while tq > 8 and tq * 2 > n:
        tq //= 2
    return tq, tk


def _epilogue_tile(n, cap=2048):
    """Largest multiple of 8 dividing n and <= cap (bigger tiles push the
    mem-bound elementwise epilogue toward the HBM roofline)."""
    t = min(cap, n)
    t -= t % 8
    while t > 8 and n % t != 0:
        t -= 8
    return max(t, 8)


@functools.partial(jax.jit, static_argnames=("tile_cap",))
def resunet_attention_module(x, W, B, BN, *, tile_cap=512):
    """out = PositionAttention(x) + ChannelAttention(x) on sparse features.

    x : (N, C)    sparse-tensor features
    W : (8, C, C) linear weights (in, out) for
                  [pa_q, pa_k, pa_v, pa_lbr, ca_q, ca_k, ca_v, ca_lbr]
    B : (8, C)    matching biases
    BN: (4, C)    [pa_gamma, pa_beta, ca_gamma, ca_beta]
    """
    n, c = x.shape
    inv_sqrt_c = 1.0 / math.sqrt(c)

    # --- Channel-attention map, hoisted out of the (q, kv) grid.  A single
    # O(N*C^2) pass that every query tile would otherwise recompute; the
    # (C,N)x(N,C) contraction is left to XLA (review-blessed).  Computed on
    # the UNPADDED x so padded rows' biases do not pollute the energy.
    q_ca = x @ W[4] + B[4]
    k_ca = x @ W[5] + B[5]
    energy = jax.lax.dot_general(q_ca, k_ca, (((0,), (0,)), ((), ())),
                                 preferred_element_type=jnp.float32) * inv_sqrt_c
    attn_c = jax.nn.softmax(energy, axis=-1)                       # (C, C)

    # --- Tiling + ragged-N padding (never a "tile = N" fallback).
    tq, tk = _choose_tiles(n, tile_cap)
    n_pad = _round_up(n, tk)
    nq, nk = n_pad // tq, n_pad // tk
    x_pad = x if n_pad == n else jnp.pad(x, ((0, n_pad - n), (0, 0)))

    # --- Fused parameter layouts: only the projection columns actually read.
    w_q = jnp.concatenate([W[0], W[2], W[6]], axis=1)              # (C, 3C)
    b_q = jnp.concatenate([B[0], B[2], B[6]])[None, :]             # (1, 3C)
    w_kv = jnp.concatenate([W[1], W[2]], axis=1)                   # (C, 2C)
    b_kv = jnp.concatenate([B[1], B[2]])[None, :]                  # (1, 2C)

    kernel = functools.partial(_attn_kernel, n_valid=n, mask_kv=(n_pad != n))

    lin_pa, lin_ca = pl.pallas_call(
        kernel,
        out_shape=(jax.ShapeDtypeStruct((n_pad, c), jnp.float32),
                   jax.ShapeDtypeStruct((n_pad, c), jnp.float32)),
        grid_spec=pltpu.PrefetchScalarGridSpec(
            num_scalar_prefetch=0,
            grid=(nq, nk),
            in_specs=[
                pl.BlockSpec((tq, c), lambda qi, ki: (qi, 0)),       # x (query)
                pl.BlockSpec((tk, c), lambda qi, ki: (ki, 0)),       # x (kv)
                pl.BlockSpec((c, 3 * c), lambda qi, ki: (0, 0)),     # w_q
                pl.BlockSpec((1, 3 * c), lambda qi, ki: (0, 0)),     # b_q
                pl.BlockSpec((c, 2 * c), lambda qi, ki: (0, 0)),     # w_kv
                pl.BlockSpec((1, 2 * c), lambda qi, ki: (0, 0)),     # b_kv
                pl.BlockSpec((c, c), lambda qi, ki: (0, 0)),         # attn_c
                pl.BlockSpec((c, c), lambda qi, ki: (0, 0)),         # w_lbr_pa
                pl.BlockSpec((1, c), lambda qi, ki: (0, 0)),         # b_lbr_pa
                pl.BlockSpec((c, c), lambda qi, ki: (0, 0)),         # w_lbr_ca
                pl.BlockSpec((1, c), lambda qi, ki: (0, 0)),         # b_lbr_ca
            ],
            out_specs=[
                pl.BlockSpec((tq, c), lambda qi, ki: (qi, 0)),       # lin_pa
                pl.BlockSpec((tq, c), lambda qi, ki: (qi, 0)),       # lin_ca
            ],
            scratch_shapes=[
                pltpu.VMEM((tq, c), jnp.float32),   # pa_q  (query rows)
                pltpu.VMEM((tq, c), jnp.float32),   # pa_v  (query rows)
                pltpu.VMEM((tq, c), jnp.float32),   # ca_v  (query rows)
                pltpu.VMEM((tq, 1), jnp.float32),   # running max
                pltpu.VMEM((tq, 1), jnp.float32),   # running denominator
                pltpu.VMEM((tq, c), jnp.float32),   # attn @ v accumulator
            ],
        ),
        compiler_params=pltpu.CompilerParams(
            dimension_semantics=("parallel", "arbitrary"),
            vmem_limit_bytes=_VMEM_LIMIT,
        ),
    )(x_pad, x_pad, w_q, b_q, w_kv, b_kv, attn_c,
      W[3], B[3][None, :], W[7], B[7][None, :])

    # --- BatchNorm1d training-mode batch statistics over the N valid rows
    # (centered variance: avoids the E[x^2]-E[x]^2 cancellation).
    def _bn_scale_shift(lin, gamma, beta):
        v = lin[:n]
        mean = jnp.mean(v, axis=0)
        var = jnp.var(v, axis=0)                     # biased, like PyTorch BN
        scale = gamma * jax.lax.rsqrt(var + BN_EPS)
        return scale, beta - mean * scale

    scale_pa, shift_pa = _bn_scale_shift(lin_pa, BN[0], BN[1])
    scale_ca, shift_ca = _bn_scale_shift(lin_ca, BN[2], BN[3])
    params = jnp.stack([scale_pa, shift_pa, scale_ca, shift_ca], axis=0)  # (4,C)

    # --- Mem-bound elementwise epilogue with its own, larger tile.
    te = _epilogue_tile(n_pad)
    out = pl.pallas_call(
        _bn_relu_residual_kernel,
        out_shape=jax.ShapeDtypeStruct((n_pad, c), jnp.float32),
        grid=(n_pad // te,),
        in_specs=[
            pl.BlockSpec((te, c), lambda i: (i, 0)),
            pl.BlockSpec((te, c), lambda i: (i, 0)),
            pl.BlockSpec((te, c), lambda i: (i, 0)),
            pl.BlockSpec((4, c), lambda i: (0, 0)),
        ],
        out_specs=pl.BlockSpec((te, c), lambda i: (i, 0)),
        compiler_params=pltpu.CompilerParams(
            dimension_semantics=("parallel",),
            vmem_limit_bytes=_VMEM_LIMIT,
        ),
    )(x_pad, lin_pa, lin_ca, params)
    return out[:n]


def _reference(x, W, B, BN):
    """Pure-JAX reference of the same math (sanity check)."""
    n, c = x.shape
    s = 1.0 / math.sqrt(c)

    def lin(inp, i):
        return inp @ W[i] + B[i]

    def lbr(r, wi, gamma, beta):
        r = lin(r, wi)
        mean = r.mean(0, keepdims=True)
        var = ((r - mean) ** 2).mean(0, keepdims=True)
        r = (r - mean) / jnp.sqrt(var + BN_EPS) * gamma + beta
        return jnp.maximum(r, 0.0)

    q, k, v = lin(x, 0), lin(x, 1), lin(x, 2)
    attn = jax.nn.softmax(q @ k.T * s, axis=-1)
    pa = lbr(attn @ v - v, 3, BN[0], BN[1]) + x

    q, k, v = lin(x, 4), lin(x, 5), lin(x, 6)
    attn = jax.nn.softmax(q.T @ k * s, axis=-1)
    ca = lbr(v @ attn - v, 7, BN[2], BN[3]) + x
    return pa + ca


if __name__ == "__main__":
    N, C = 256, 32  # N sparse points, C channels

    key = jax.random.PRNGKey(0)
    kx, kw, kb, kg, kbt = jax.random.split(key, 5)

    x = jax.random.normal(kx, (N, C), dtype=jnp.float32)
    # 8 linear layers: [pa_q, pa_k, pa_v, pa_lbr, ca_q, ca_k, ca_v, ca_lbr]
    W = 0.1 * jax.random.normal(kw, (8, C, C), dtype=jnp.float32)
    B = 0.1 * jax.random.normal(kb, (8, C), dtype=jnp.float32)
    # BatchNorm affine params: [pa_gamma, pa_beta, ca_gamma, ca_beta]
    gammas = 1.0 + 0.1 * jax.random.normal(kg, (2, C), dtype=jnp.float32)
    betas = 0.1 * jax.random.normal(kbt, (2, C), dtype=jnp.float32)
    BN = jnp.stack([gammas[0], betas[0], gammas[1], betas[1]], axis=0)

    out = jax.block_until_ready(resunet_attention_module(x, W, B, BN))
    ref = jax.block_until_ready(_reference(x, W, B, BN))

    assert out.shape == (N, C) and out.dtype == jnp.float32
    err = float(jnp.max(jnp.abs(out - ref)))
    assert err < 2e-2, f"max abs err {err}"
    print("KERNEL_OK")
</pallas_src>

<mosaic_0001>
module attributes {stable_mosaic.version = 11 : i64} {
  func.func @_attn_kernel(%arg0: i32, %arg1: i32, %arg2: memref<128x32xf32, #tpu.memory_space<vmem>>, %arg3: memref<256x32xf32, #tpu.memory_space<vmem>>, %arg4: memref<32x96xf32, #tpu.memory_space<vmem>>, %arg5: memref<1x96xf32, #tpu.memory_space<vmem>>, %arg6: memref<32x64xf32, #tpu.memory_space<vmem>>, %arg7: memref<1x64xf32, #tpu.memory_space<vmem>>, %arg8: memref<32x32xf32, #tpu.memory_space<vmem>>, %arg9: memref<32x32xf32, #tpu.memory_space<vmem>>, %arg10: memref<1x32xf32, #tpu.memory_space<vmem>>, %arg11: memref<32x32xf32, #tpu.memory_space<vmem>>, %arg12: memref<1x32xf32, #tpu.memory_space<vmem>>, %arg13: memref<128x32xf32, #tpu.memory_space<vmem>>, %arg14: memref<128x32xf32, #tpu.memory_space<vmem>>, %arg15: memref<128x32xf32, #tpu.memory_space<vmem>>, %arg16: memref<128x32xf32, #tpu.memory_space<vmem>>, %arg17: memref<128x32xf32, #tpu.memory_space<vmem>>, %arg18: memref<128x1xf32, #tpu.memory_space<vmem>>, %arg19: memref<128x1xf32, #tpu.memory_space<vmem>>, %arg20: memref<128x32xf32, #tpu.memory_space<vmem>>) attributes {dimension_semantics = [#tpu.dimension_semantics<parallel>, #tpu.dimension_semantics<arbitrary>], iteration_bounds = array<i64: 2, 1>, scalar_prefetch = 0 : i64, scratch_operands = 6 : i64, tpu.core_type = #tpu.core_type<tc>, window_params = [{transform_indices = @transform_0, window_bounds = array<i64: 128, 32>}, {transform_indices = @transform_1, window_bounds = array<i64: 256, 32>}, {pipeline_mode = #tpu.pipeline_mode<synchronous>, transform_indices = @transform_2, window_bounds = array<i64: 32, 96>}, {pipeline_mode = #tpu.pipeline_mode<synchronous>, transform_indices = @transform_3, window_bounds = array<i64: 1, 96>}, {pipeline_mode = #tpu.pipeline_mode<synchronous>, transform_indices = @transform_4, window_bounds = array<i64: 32, 64>}, {pipeline_mode = #tpu.pipeline_mode<synchronous>, transform_indices = @transform_5, window_bounds = array<i64: 1, 64>}, {pipeline_mode = #tpu.pipeline_mode<synchronous>, transform_indices = @transform_6, window_bounds = array<i64: 32, 32>}, {pipeline_mode = #tpu.pipeline_mode<synchronous>, transform_indices = @transform_7, window_bounds = array<i64: 32, 32>}, {pipeline_mode = #tpu.pipeline_mode<synchronous>, transform_indices = @transform_8, window_bounds = array<i64: 1, 32>}, {pipeline_mode = #tpu.pipeline_mode<synchronous>, transform_indices = @transform_9, window_bounds = array<i64: 32, 32>}, {pipeline_mode = #tpu.pipeline_mode<synchronous>, transform_indices = @transform_10, window_bounds = array<i64: 1, 32>}, {transform_indices = @transform_11, window_bounds = array<i64: 128, 32>}, {transform_indices = @transform_12, window_bounds = array<i64: 128, 32>}]} {
    %c0_i32 = arith.constant 0 : i32
    %0 = arith.cmpi eq, %arg1, %c0_i32 : i32
    %1 = arith.extui %0 : i1 to i32
    %c0_i32_0 = arith.constant 0 : i32
    %2 = arith.cmpi ne, %1, %c0_i32_0 : i32
    scf.if %2 {
      %c0_27 = arith.constant 0 : index
      %c0_28 = arith.constant 0 : index
      %40 = vector.load %arg2[%c0_27, %c0_28] : memref<128x32xf32, #tpu.memory_space<vmem>>, vector<128x32xf32>
      %c0_29 = arith.constant 0 : index
      %c0_30 = arith.constant 0 : index
      %41 = vector.load %arg4[%c0_29, %c0_30] : memref<32x96xf32, #tpu.memory_space<vmem>>, vector<32x96xf32>
      %cst_31 = arith.constant dense<0.000000e+00> : vector<128x96xf32>
      %42 = tpu.matmul %40, %41, %cst_31 {dimension_numbers = #tpu.dot_dimension_numbers<[1], [0], [0], [1], [0, 0, 1, 1], [], []>} : vector<128x32xf32>, vector<32x96xf32>, vector<128x96xf32> -> vector<128x96xf32>
      %c0_32 = arith.constant 0 : index
      %c0_33 = arith.constant 0 : index
      %43 = vector.load %arg5[%c0_32, %c0_33] : memref<1x96xf32, #tpu.memory_space<vmem>>, vector<1x96xf32>
      %44 = vector.broadcast %43 : vector<1x96xf32> to vector<128x96xf32>
      %45 = arith.addf %42, %44 : vector<128x96xf32>
      %46 = vector.extract_strided_slice %45 {offsets = [0, 0], sizes = [128, 32], strides = [1, 1]} : vector<128x96xf32> to vector<128x32xf32>
      %c0_34 = arith.constant 0 : index
      %c0_35 = arith.constant 0 : index
      %47 = vector.load %arg15[%c0_34, %c0_35] : memref<128x32xf32, #tpu.memory_space<vmem>>, vector<128x32xf32>
      tpu.vector_store %arg15[%c0_34, %c0_35], %46 {strides = array<i32>} : memref<128x32xf32, #tpu.memory_space<vmem>>, vector<128x32xf32>,
      %48 = vector.extract_strided_slice %45 {offsets = [0, 32], sizes = [128, 32], strides = [1, 1]} : vector<128x96xf32> to vector<128x32xf32>
      %c0_36 = arith.constant 0 : index
      %c0_37 = arith.constant 0 : index
      %49 = vector.load %arg16[%c0_36, %c0_37] : memref<128x32xf32, #tpu.memory_space<vmem>>, vector<128x32xf32>
      tpu.vector_store %arg16[%c0_36, %c0_37], %48 {strides = array<i32>} : memref<128x32xf32, #tpu.memory_space<vmem>>, vector<128x32xf32>,
      %50 = vector.extract_strided_slice %45 {offsets = [0, 64], sizes = [128, 32], strides = [1, 1]} : vector<128x96xf32> to vector<128x32xf32>
      %c0_38 = arith.constant 0 : index
      %c0_39 = arith.constant 0 : index
      %51 = vector.load %arg17[%c0_38, %c0_39] : memref<128x32xf32, #tpu.memory_space<vmem>>, vector<128x32xf32>
      tpu.vector_store %arg17[%c0_38, %c0_39], %50 {strides = array<i32>} : memref<128x32xf32, #tpu.memory_space<vmem>>, vector<128x32xf32>,
      %cst_40 = arith.constant 0xFF800000 : f32
      %52 = vector.broadcast %cst_40 : f32 to vector<128x1xf32>
      %c0_41 = arith.constant 0 : index
      %c0_42 = arith.constant 0 : index
      %53 = vector.load %arg18[%c0_41, %c0_42] : memref<128x1xf32, #tpu.memory_space<vmem>>, vector<128x1xf32>
      tpu.vector_store %arg18[%c0_41, %c0_42], %52 {strides = array<i32>} : memref<128x1xf32, #tpu.memory_space<vmem>>, vector<128x1xf32>,
      %cst_43 = arith.constant 0.000000e+00 : f32
      %54 = vector.broadcast %cst_43 : f32 to vector<128x1xf32>
      %c0_44 = arith.constant 0 : index
      %c0_45 = arith.constant 0 : index
      %55 = vector.load %arg19[%c0_44, %c0_45] : memref<128x1xf32, #tpu.memory_space<vmem>>, vector<128x1xf32>
      tpu.vector_store %arg19[%c0_44, %c0_45], %54 {strides = array<i32>} : memref<128x1xf32, #tpu.memory_space<vmem>>, vector<128x1xf32>,
      %cst_46 = arith.constant 0.000000e+00 : f32
      %56 = vector.broadcast %cst_46 : f32 to vector<128x32xf32>
      %c0_47 = arith.constant 0 : index
      %c0_48 = arith.constant 0 : index
      %57 = vector.load %arg20[%c0_47, %c0_48] : memref<128x32xf32, #tpu.memory_space<vmem>>, vector<128x32xf32>
      tpu.vector_store %arg20[%c0_47, %c0_48], %56 {strides = array<i32>} : memref<128x32xf32, #tpu.memory_space<vmem>>, vector<128x32xf32>,
    } else {
    }
    %c0 = arith.constant 0 : index
    %c0_1 = arith.constant 0 : index
    %3 = vector.load %arg3[%c0, %c0_1] : memref<256x32xf32, #tpu.memory_space<vmem>>, vector<256x32xf32>
    %c0_2 = arith.constant 0 : index
    %c0_3 = arith.constant 0 : index
    %4 = vector.load %arg6[%c0_2, %c0_3] : memref<32x64xf32, #tpu.memory_space<vmem>>, vector<32x64xf32>
    %cst = arith.constant dense<0.000000e+00> : vector<256x64xf32>
    %5 = tpu.matmul %3, %4, %cst {dimension_numbers = #tpu.dot_dimension_numbers<[1], [0], [0], [1], [0, 0, 1, 1], [], []>} : vector<256x32xf32>, vector<32x64xf32>, vector<256x64xf32> -> vector<256x64xf32>
    %c0_4 = arith.constant 0 : index
    %c0_5 = arith.constant 0 : index
    %6 = vector.load %arg7[%c0_4, %c0_5] : memref<1x64xf32, #tpu.memory_space<vmem>>, vector<1x64xf32>
    %7 = vector.broadcast %6 : vector<1x64xf32> to vector<256x64xf32>
    %8 = arith.addf %5, %7 : vector<256x64xf32>
    %9 = vector.extract_strided_slice %8 {offsets = [0, 0], sizes = [256, 32], strides = [1, 1]} : vector<256x64xf32> to vector<256x32xf32>
    %10 = vector.extract_strided_slice %8 {offsets = [0, 32], sizes = [256, 32], strides = [1, 1]} : vector<256x64xf32> to vector<256x32xf32>
    %c0_6 = arith.constant 0 : index
    %c0_7 = arith.constant 0 : index
    %11 = vector.load %arg15[%c0_6, %c0_7] : memref<128x32xf32, #tpu.memory_space<vmem>>, vector<128x32xf32>
    %cst_8 = arith.constant dense<0.000000e+00> : vector<128x256xf32>
    %12 = tpu.matmul %11, %9, %cst_8 {dimension_numbers = #tpu.dot_dimension_numbers<[1], [1], [0], [0], [0, 0, 1, 0], [], []>} : vector<128x32xf32>, vector<256x32xf32>, vector<128x256xf32> -> vector<128x256xf32>
    %cst_9 = arith.constant 0.176776692 : f32
    %13 = vector.broadcast %cst_9 : f32 to vector<128x256xf32>
    %14 = arith.mulf %12, %13 : vector<128x256xf32>
    %c0_10 = arith.constant 0 : index
    %c0_11 = arith.constant 0 : index
    %15 = vector.load %arg18[%c0_10, %c0_11] : memref<128x1xf32, #tpu.memory_space<vmem>>, vector<128x1xf32>
    %cst_12 = arith.constant dense<0xFF800000> : vector<128xf32>
    %16 = vector.multi_reduction <maximumf>, %14, %cst_12 [1] : vector<128x256xf32> to vector<128xf32>
    %17 = vector.shape_cast %16 : vector<128xf32> to vector<128x1xf32>
    %18 = arith.maximumf %15, %17 : vector<128x1xf32>
    %19 = arith.subf %15, %18 : vector<128x1xf32>
    %20 = math.exp %19 : vector<128x1xf32>
    %21 = vector.broadcast %18 : vector<128x1xf32> to vector<128x256xf32>
    %22 = arith.subf %14, %21 : vector<128x256xf32>
    %23 = math.exp %22 : vector<128x256xf32>
    %c0_13 = arith.constant 0 : index
    %c0_14 = arith.constant 0 : index
    %24 = vector.load %arg19[%c0_13, %c0_14] : memref<128x1xf32, #tpu.memory_space<vmem>>, vector<128x1xf32>
    %25 = arith.mulf %20, %24 : vector<128x1xf32>
    %cst_15 = arith.constant dense<0.000000e+00> : vector<128xf32>
    %26 = vector.multi_reduction <add>, %23, %cst_15 [1] : vector<128x256xf32> to vector<128xf32>
    %27 = vector.shape_cast %26 : vector<128xf32> to vector<128x1xf32>
    %28 = arith.addf %25, %27 : vector<128x1xf32>
    %c0_16 = arith.constant 0 : index
    %c0_17 = arith.constant 0 : index
    %29 = vector.load %arg19[%c0_16, %c0_17] : memref<128x1xf32, #tpu.memory_space<vmem>>, vector<128x1xf32>
    tpu.vector_store %arg19[%c0_16, %c0_17], %28 {strides = array<i32>} : memref<128x1xf32, #tpu.memory_space<vmem>>, vector<128x1xf32>,
    %c0_18 = arith.constant 0 : index
    %c0_19 = arith.constant 0 : index
    %30 = vector.load %arg20[%c0_18, %c0_19] : memref<128x32xf32, #tpu.memory_space<vmem>>, vector<128x32xf32>
    %31 = vector.broadcast %20 : vector<128x1xf32> to vector<128x32xf32>
    %32 = arith.mulf %31, %30 : vector<128x32xf32>
    %cst_20 = arith.constant dense<0.000000e+00> : vector<128x32xf32>
    %33 = tpu.matmul %23, %10, %cst_20 {dimension_numbers = #tpu.dot_dimension_numbers<[1], [0], [0], [1], [0, 0, 1, 1], [], []>} : vector<128x256xf32>, vector<256x32xf32>, vector<128x32xf32> -> vector<128x32xf32>
    %34 = arith.addf %32, %33 : vector<128x32xf32>
    %c0_21 = arith.constant 0 : index
    %c0_22 = arith.constant 0 : index
    %35 = vector.load %arg20[%c0_21, %c0_22] : memref<128x32xf32, #tpu.memory_space<vmem>>, vector<128x32xf32>
    tpu.vector_store %arg20[%c0_21, %c0_22], %34 {strides = array<i32>} : memref<128x32xf32, #tpu.memory_space<vmem>>, vector<128x32xf32>,
    %c0_23 = arith.constant 0 : index
    %c0_24 = arith.constant 0 : index
    %36 = vector.load %arg18[%c0_23, %c0_24] : memref<128x1xf32, #tpu.memory_space<vmem>>, vector<128x1xf32>
    tpu.vector_store %arg18[%c0_23, %c0_24], %18 {strides = array<i32>} : memref<128x1xf32, #tpu.memory_space<vmem>>, vector<128x1xf32>,
    %c0_i32_25 = arith.constant 0 : i32
    %37 = arith.cmpi eq, %arg1, %c0_i32_25 : i32
    %38 = arith.extui %37 : i1 to i32
    %c0_i32_26 = arith.constant 0 : i32
    %39 = arith.cmpi ne, %38, %c0_i32_26 : i32
    scf.if %39 {
      %c0_27 = arith.constant 0 : index
      %c0_28 = arith.constant 0 : index
      %40 = vector.load %arg20[%c0_27, %c0_28] : memref<128x32xf32, #tpu.memory_space<vmem>>, vector<128x32xf32>
      %c0_29 = arith.constant 0 : index
      %c0_30 = arith.constant 0 : index
      %41 = vector.load %arg19[%c0_29, %c0_30] : memref<128x1xf32, #tpu.memory_space<vmem>>, vector<128x1xf32>
      %42 = vector.broadcast %41 : vector<128x1xf32> to vector<128x32xf32>
      %43 = arith.divf %40, %42 : vector<128x32xf32>
      %c0_31 = arith.constant 0 : index
      %c0_32 = arith.constant 0 : index
      %44 = vector.load %arg16[%c0_31, %c0_32] : memref<128x32xf32, #tpu.memory_space<vmem>>, vector<128x32xf32>
      %45 = arith.subf %43, %44 : vector<128x32xf32>
      %c0_33 = arith.constant 0 : index
      %c0_34 = arith.constant 0 : index
      %46 = vector.load %arg17[%c0_33, %c0_34] : memref<128x32xf32, #tpu.memory_space<vmem>>, vector<128x32xf32>
      %c0_35 = arith.constant 0 : index
      %c0_36 = arith.constant 0 : index
      %47 = vector.load %arg8[%c0_35, %c0_36] : memref<32x32xf32, #tpu.memory_space<vmem>>, vector<32x32xf32>
      %cst_37 = arith.constant dense<0.000000e+00> : vector<128x32xf32>
      %48 = tpu.matmul %46, %47, %cst_37 {dimension_numbers = #tpu.dot_dimension_numbers<[1], [0], [0], [1], [0, 0, 1, 1], [], []>} : vector<128x32xf32>, vector<32x32xf32>, vector<128x32xf32> -> vector<128x32xf32>
      %49 = arith.subf %48, %46 : vector<128x32xf32>
      %c0_38 = arith.constant 0 : index
      %c0_39 = arith.constant 0 : index
      %50 = vector.load %arg9[%c0_38, %c0_39] : memref<32x32xf32, #tpu.memory_space<vmem>>, vector<32x32xf32>
      %cst_40 = arith.constant dense<0.000000e+00> : vector<128x32xf32>
      %51 = tpu.matmul %45, %50, %cst_40 {dimension_numbers = #tpu.dot_dimension_numbers<[1], [0], [0], [1], [0, 0, 1, 1], [], []>} : vector<128x32xf32>, vector<32x32xf32>, vector<128x32xf32> -> vector<128x32xf32>
      %c0_41 = arith.constant 0 : index
      %c0_42 = arith.constant 0 : index
      %52 = vector.load %arg10[%c0_41, %c0_42] : memref<1x32xf32, #tpu.memory_space<vmem>>, vector<1x32xf32>
      %53 = vector.broadcast %52 : vector<1x32xf32> to vector<128x32xf32>
      %54 = arith.addf %51, %53 : vector<128x32xf32>
      %c0_43 = arith.constant 0 : index
      %c0_44 = arith.constant 0 : index
      %55 = vector.load %arg13[%c0_43, %c0_44] : memref<128x32xf32, #tpu.memory_space<vmem>>, vector<128x32xf32>
      tpu.vector_store %arg13[%c0_43, %c0_44], %54 {strides = array<i32>} : memref<128x32xf32, #tpu.memory_space<vmem>>, vector<128x32xf32>,
      %c0_45 = arith.constant 0 : index
      %c0_46 = arith.constant 0 : index
      %56 = vector.load %arg11[%c0_45, %c0_46] : memref<32x32xf32, #tpu.memory_space<vmem>>, vector<32x32xf32>
      %cst_47 = arith.constant dense<0.000000e+00> : vector<128x32xf32>
      %57 = tpu.matmul %49, %56, %cst_47 {dimension_numbers = #tpu.dot_dimension_numbers<[1], [0], [0], [1], [0, 0, 1, 1], [], []>} : vector<128x32xf32>, vector<32x32xf32>, vector<128x32xf32> -> vector<128x32xf32>
      %c0_48 = arith.constant 0 : index
      %c0_49 = arith.constant 0 : index
      %58 = vector.load %arg12[%c0_48, %c0_49] : memref<1x32xf32, #tpu.memory_space<vmem>>, vector<1x32xf32>
      %59 = vector.broadcast %58 : vector<1x32xf32> to vector<128x32xf32>
      %60 = arith.addf %57, %59 : vector<128x32xf32>
      %c0_50 = arith.constant 0 : index
      %c0_51 = arith.constant 0 : index
      %61 = vector.load %arg14[%c0_50, %c0_51] : memref<128x32xf32, #tpu.memory_space<vmem>>, vector<128x32xf32>
      tpu.vector_store %arg14[%c0_50, %c0_51], %60 {strides = array<i32>} : memref<128x32xf32, #tpu.memory_space<vmem>>, vector<128x32xf32>,
    } else {
    }
    return
  }
  func.func @transform_0(%arg0: i32, %arg1: i32) -> (i32, i32) {
    %c0_i32 = arith.constant 0 : i32
    %c0_i32_0 = arith.constant 0 : i32
    return %arg0, %c0_i32 : i32, i32
  }
  func.func @transform_1(%arg0: i32, %arg1: i32) -> (i32, i32) {
    %c0_i32 = arith.constant 0 : i32
    %c0_i32_0 = arith.constant 0 : i32
    return %arg1, %c0_i32 : i32, i32
  }
  func.func @transform_2(%arg0: i32, %arg1: i32) -> (i32, i32) {
    %c0_i32 = arith.constant 0 : i32
    %c0_i32_0 = arith.constant 0 : i32
    %c0_i32_1 = arith.constant 0 : i32
    return %c0_i32, %c0_i32_0 : i32, i32
  }
  func.func @transform_3(%arg0: i32, %arg1: i32) -> (i32, i32) {
    %c0_i32 = arith.constant 0 : i32
    %c0_i32_0 = arith.constant 0 : i32
    %c0_i32_1 = arith.constant 0 : i32
    return %c0_i32, %c0_i32_0 : i32, i32
  }
  func.func @transform_4(%arg0: i32, %arg1: i32) -> (i32, i32) {
    %c0_i32 = arith.constant 0 : i32
    %c0_i32_0 = arith.constant 0 : i32
    %c0_i32_1 = arith.constant 0 : i32
    return %c0_i32, %c0_i32_0 : i32, i32
  }
  func.func @transform_5(%arg0: i32, %arg1: i32) -> (i32, i32) {
    %c0_i32 = arith.constant 0 : i32
    %c0_i32_0 = arith.constant 0 : i32
    %c0_i32_1 = arith.constant 0 : i32
    return %c0_i32, %c0_i32_0 : i32, i32
  }
  func.func @transform_6(%arg0: i32, %arg1: i32) -> (i32, i32) {
    %c0_i32 = arith.constant 0 : i32
    %c0_i32_0 = arith.constant 0 : i32
    %c0_i32_1 = arith.constant 0 : i32
    return %c0_i32, %c0_i32_0 : i32, i32
  }
  func.func @transform_7(%arg0: i32, %arg1: i32) -> (i32, i32) {
    %c0_i32 = arith.constant 0 : i32
    %c0_i32_0 = arith.constant 0 : i32
    %c0_i32_1 = arith.constant 0 : i32
    return %c0_i32, %c0_i32_0 : i32, i32
  }
  func.func @transform_8(%arg0: i32, %arg1: i32) -> (i32, i32) {
    %c0_i32 = arith.constant 0 : i32
    %c0_i32_0 = arith.constant 0 : i32
    %c0_i32_1 = arith.constant 0 : i32
    return %c0_i32, %c0_i32_0 : i32, i32
  }
  func.func @transform_9(%arg0: i32, %arg1: i32) -> (i32, i32) {
    %c0_i32 = arith.constant 0 : i32
    %c0_i32_0 = arith.constant 0 : i32
    %c0_i32_1 = arith.constant 0 : i32
    return %c0_i32, %c0_i32_0 : i32, i32
  }
  func.func @transform_10(%arg0: i32, %arg1: i32) -> (i32, i32) {
    %c0_i32 = arith.constant 0 : i32
    %c0_i32_0 = arith.constant 0 : i32
    %c0_i32_1 = arith.constant 0 : i32
    return %c0_i32, %c0_i32_0 : i32, i32
  }
  func.func @transform_11(%arg0: i32, %arg1: i32) -> (i32, i32) {
    %c0_i32 = arith.constant 0 : i32
    %c0_i32_0 = arith.constant 0 : i32
    return %arg0, %c0_i32 : i32, i32
  }
  func.func @transform_12(%arg0: i32, %arg1: i32) -> (i32, i32) {
    %c0_i32 = arith.constant 0 : i32
    %c0_i32_0 = arith.constant 0 : i32
    return %arg0, %c0_i32 : i32, i32
  }
}

module attributes {stable_mosaic.version = 11 : i64} {
  func.func @_bn_relu_residual_kernel(%arg0: i32, %arg1: memref<256x32xf32, #tpu.memory_space<vmem>>, %arg2: memref<256x32xf32, #tpu.memory_space<vmem>>, %arg3: memref<256x32xf32, #tpu.memory_space<vmem>>, %arg4: memref<4x32xf32, #tpu.memory_space<vmem>>, %arg5: memref<256x32xf32, #tpu.memory_space<vmem>>) attributes {dimension_semantics = [#tpu.dimension_semantics<parallel>], iteration_bounds = array<i64: 1>, scalar_prefetch = 0 : i64, scratch_operands = 0 : i64, tpu.core_type = #tpu.core_type<tc>, window_params = [{transform_indices = @transform_0, window_bounds = array<i64: 256, 32>}, {transform_indices = @transform_1, window_bounds = array<i64: 256, 32>}, {transform_indices = @transform_2, window_bounds = array<i64: 256, 32>}, {pipeline_mode = #tpu.pipeline_mode<synchronous>, transform_indices = @transform_3, window_bounds = array<i64: 4, 32>}, {transform_indices = @transform_4, window_bounds = array<i64: 256, 32>}]} {
    %c0 = arith.constant 0 : index
    %c0_0 = arith.constant 0 : index
    %0 = vector.load %arg2[%c0, %c0_0] : memref<256x32xf32, #tpu.memory_space<vmem>>, vector<256x32xf32>
    %c0_1 = arith.constant 0 : index
    %c0_2 = arith.constant 0 : index
    %1 = vector.load %arg4[%c0_1, %c0_2] : memref<4x32xf32, #tpu.memory_space<vmem>>, vector<1x32xf32>
    %2 = vector.broadcast %1 : vector<1x32xf32> to vector<256x32xf32>
    %3 = arith.mulf %0, %2 : vector<256x32xf32>
    %c1 = arith.constant 1 : index
    %c0_3 = arith.constant 0 : index
    %4 = vector.load %arg4[%c1, %c0_3] : memref<4x32xf32, #tpu.memory_space<vmem>>, vector<1x32xf32>
    %5 = vector.broadcast %4 : vector<1x32xf32> to vector<256x32xf32>
    %6 = arith.addf %3, %5 : vector<256x32xf32>
    %cst = arith.constant 0.000000e+00 : f32
    %7 = vector.broadcast %cst : f32 to vector<256x32xf32>
    %8 = arith.maximumf %6, %7 : vector<256x32xf32>
    %c0_4 = arith.constant 0 : index
    %c0_5 = arith.constant 0 : index
    %9 = vector.load %arg3[%c0_4, %c0_5] : memref<256x32xf32, #tpu.memory_space<vmem>>, vector<256x32xf32>
    %c2 = arith.constant 2 : index
    %c0_6 = arith.constant 0 : index
    %10 = vector.load %arg4[%c2, %c0_6] : memref<4x32xf32, #tpu.memory_space<vmem>>, vector<1x32xf32>
    %11 = vector.broadcast %10 : vector<1x32xf32> to vector<256x32xf32>
    %12 = arith.mulf %9, %11 : vector<256x32xf32>
    %c3 = arith.constant 3 : index
    %c0_7 = arith.constant 0 : index
    %13 = vector.load %arg4[%c3, %c0_7] : memref<4x32xf32, #tpu.memory_space<vmem>>, vector<1x32xf32>
    %14 = vector.broadcast %13 : vector<1x32xf32> to vector<256x32xf32>
    %15 = arith.addf %12, %14 : vector<256x32xf32>
    %cst_8 = arith.constant 0.000000e+00 : f32
    %16 = vector.broadcast %cst_8 : f32 to vector<256x32xf32>
    %17 = arith.maximumf %15, %16 : vector<256x32xf32>
    %18 = arith.addf %8, %17 : vector<256x32xf32>
    %c0_9 = arith.constant 0 : index
    %c0_10 = arith.constant 0 : index
    %19 = vector.load %arg1[%c0_9, %c0_10] : memref<256x32xf32, #tpu.memory_space<vmem>>, vector<256x32xf32>
    %cst_11 = arith.constant 2.000000e+00 : f32
    %20 = vector.broadcast %cst_11 : f32 to vector<256x32xf32>
    %21 = arith.mulf %20, %19 : vector<256x32xf32>
    %22 = arith.addf %18, %21 : vector<256x32xf32>
    %c0_12 = arith.constant 0 : index
    %c0_13 = arith.constant 0 : index
    %23 = vector.load %arg5[%c0_12, %c0_13] : memref<256x32xf32, #tpu.memory_space<vmem>>, vector<256x32xf32>
    tpu.vector_store %arg5[%c0_12, %c0_13], %22 {strides = array<i32>} : memref<256x32xf32, #tpu.memory_space<vmem>>, vector<256x32xf32>,
    return
  }
  func.func @transform_0(%arg0: i32) -> (i32, i32) {
    %c0_i32 = arith.constant 0 : i32
    %c0_i32_0 = arith.constant 0 : i32
    return %arg0, %c0_i32 : i32, i32
  }
  func.func @transform_1(%arg0: i32) -> (i32, i32) {
    %c0_i32 = arith.constant 0 : i32
    %c0_i32_0 = arith.constant 0 : i32
    return %arg0, %c0_i32 : i32, i32
  }
  func.func @transform_2(%arg0: i32) -> (i32, i32) {
    %c0_i32 = arith.constant 0 : i32
    %c0_i32_0 = arith.constant 0 : i32
    return %arg0, %c0_i32 : i32, i32
  }
  func.func @transform_3(%arg0: i32) -> (i32, i32) {
    %c0_i32 = arith.constant 0 : i32
    %c0_i32_0 = arith.constant 0 : i32
    %c0_i32_1 = arith.constant 0 : i32
    return %c0_i32, %c0_i32_0 : i32, i32
  }
  func.func @transform_4(%arg0: i32) -> (i32, i32) {
    %c0_i32 = arith.constant 0 : i32
    %c0_i32_0 = arith.constant 0 : i32
    return %arg0, %c0_i32 : i32, i32
  }
}

</mosaic_0001>

<llo_original>
// kernel: resunet_attention_module.3
$region0: #{resunet_attention_module.3}
  #allocation0 [shape = 'u32[]', space=smem, size = 0x4, offset = 0x4, fixed_abs, tag = 'smem constant byte address 0x4 - core index']
  #allocation1 [shape = 'u32[144,128]{1,0:T(1,128)}', space=vmem, size = 0x12000, scoped, tag = 'internal scratch']
  %s0 = inlined_call_operand.vmem [shape: f32[256,32], index: 0, kind: input, shape index: {}]
  %s1 = inlined_call_operand.vmem [shape: f32[256,32], index: 1, kind: input, shape index: {}]
  %s2 = inlined_call_operand.vmem [shape: f32[256,32], index: 2, kind: input, shape index: {}]
  %s3 = inlined_call_operand.vmem [shape: f32[4,32], index: 3, kind: input, shape index: {}]
  %s4 = inlined_call_operand.vmem [shape: f32[256,32], index: 4, kind: output, shape index: {}]
  %s5 = sld [smem:[#allocation0]]
  $region26: #{resunet_attention_module.3} parent=0
    _
  %s7 = ssub.s32 1, %s5
  %s8 = scalar_select 0, %s7, %s5
  // Predicated region
  $region2: #{resunet_attention_module.3} parent=0 // pred_check
    _
  $region3: #{resunet_attention_module.3} parent=0 // pred_check_branch
    %10 = sbr.rel (0) target = $region5
  $region4: #{resunet_attention_module.3} parent=0 // pred_region
    _
  $region5: #{resunet_attention_module.3} parent=0 // pred_fallthru
    _
  // Predicated region
  $region6: #{resunet_attention_module.3} parent=0 // pred_check
    _
  $region7: #{resunet_attention_module.3} parent=0 // pred_check_branch
    %12 = sbr.rel (0) target = $region9
  $region8: #{resunet_attention_module.3} parent=0 // pred_region
    _
  $region9: #{resunet_attention_module.3} parent=0 // pred_fallthru
    _
  // Predicated region
  $region10: #{resunet_attention_module.3} parent=0 // pred_check
    _
  $region11: #{resunet_attention_module.3} parent=0 // pred_check_branch
    %14 = sbr.rel (0) target = $region13
  $region12: #{resunet_attention_module.3} parent=0 // pred_region
    _
  $region13: #{resunet_attention_module.3} parent=0 // pred_fallthru
    _
  // Predicated region
  $region14: #{resunet_attention_module.3} parent=0 // pred_check
    _
  $region15: #{resunet_attention_module.3} parent=0 // pred_check_branch
    %16 = sbr.rel (0) target = $region17
  $region16: #{resunet_attention_module.3} parent=0 // pred_region
    _
  $region17: #{resunet_attention_module.3} parent=0 // pred_fallthru
    _
  %v17 = vld [vmem:[%s1] sm:$0xff]
  %v18 = vld [vmem:[%s1 + $0x8] sm:$0xff]
  %v19 = vld [vmem:[%s1 + $0x10] sm:$0xff]
  %v20 = vld [vmem:[%s1 + $0x18] sm:$0xff]
  %v21 = vld [vmem:[%s1 + $0x20] sm:$0xff]
  %v22 = vld [vmem:[%s1 + $0x28] sm:$0xff]
  %v23 = vld [vmem:[%s1 + $0x30] sm:$0xff]
  %v24 = vld [vmem:[%s1 + $0x38] sm:$0xff]
  %v25 = vld [vmem:[%s1 + $0x40] sm:$0xff]
  %v26 = vld [vmem:[%s1 + $0x48] sm:$0xff]
  %v27 = vld [vmem:[%s1 + $0x50] sm:$0xff]
  %v28 = vld [vmem:[%s1 + $0x58] sm:$0xff]
  %v29 = vld [vmem:[%s1 + $0x60] sm:$0xff]
  %v30 = vld [vmem:[%s1 + $0x68] sm:$0xff]
  %v31 = vld [vmem:[%s1 + $0x70] sm:$0xff]
  %v32 = vld [vmem:[%s1 + $0x78] sm:$0xff]
  %v33 = vld [vmem:[%s1 + $0x80] sm:$0xff]
  %v34 = vld [vmem:[%s1 + $0x88] sm:$0xff]
  %v35 = vld [vmem:[%s1 + $0x90] sm:$0xff]
  %v36 = vld [vmem:[%s1 + $0x98] sm:$0xff]
  %v37 = vld [vmem:[%s1 + $0xa0] sm:$0xff]
  %v38 = vld [vmem:[%s1 + $0xa8] sm:$0xff]
  %v39 = vld [vmem:[%s1 + $0xb0] sm:$0xff]
  %v40 = vld [vmem:[%s1 + $0xb8] sm:$0xff]
  %v41 = vld [vmem:[%s1 + $0xc0] sm:$0xff]
  %v42 = vld [vmem:[%s1 + $0xc8] sm:$0xff]
  %v43 = vld [vmem:[%s1 + $0xd0] sm:$0xff]
  %v44 = vld [vmem:[%s1 + $0xd8] sm:$0xff]
  %v45 = vld [vmem:[%s1 + $0xe0] sm:$0xff]
  %v46 = vld [vmem:[%s1 + $0xe8] sm:$0xff]
  %v47 = vld [vmem:[%s1 + $0xf0] sm:$0xff]
  %v48 = vld [vmem:[%s1 + $0xf8] sm:$0xff]
  %v49 = vld [vmem:[%s3] sm:$0x1]
  %v50 = vlaneseq
  %v51 = vshrl.u32 %v50, 7
  %v52 = vsub.s32 0, %v51
  %v53 = vrot.slane %v49, %v52
  %v54 = vmul.f32 %v17, %v53
  %v55 = vmul.f32 %v18, %v53
  %v56 = vmul.f32 %v19, %v53
  %v57 = vmul.f32 %v20, %v53
  %v58 = vmul.f32 %v21, %v53
  %v59 = vmul.f32 %v22, %v53
  %v60 = vmul.f32 %v23, %v53
  %v61 = vmul.f32 %v24, %v53
  %v62 = vmul.f32 %v25, %v53
  %v63 = vmul.f32 %v26, %v53
  %v64 = vmul.f32 %v27, %v53
  %v65 = vmul.f32 %v28, %v53
  %v66 = vmul.f32 %v29, %v53
  %v67 = vmul.f32 %v30, %v53
  %v68 = vmul.f32 %v31, %v53
  %v69 = vmul.f32 %v32, %v53
  %v70 = vmul.f32 %v33, %v53
  %v71 = vmul.f32 %v34, %v53
  %v72 = vmul.f32 %v35, %v53
  %v73 = vmul.f32 %v36, %v53
  %v74 = vmul.f32 %v37, %v53
  %v75 = vmul.f32 %v38, %v53
  %v76 = vmul.f32 %v39, %v53
  %v77 = vmul.f32 %v40, %v53
  %v78 = vmul.f32 %v41, %v53
  %v79 = vmul.f32 %v42, %v53
  %v80 = vmul.f32 %v43, %v53
  %v81 = vmul.f32 %v44, %v53
  %v82 = vmul.f32 %v45, %v53
  %v83 = vmul.f32 %v46, %v53
  %v84 = vmul.f32 %v47, %v53
  %v85 = vmul.f32 %v48, %v53
  %v86 = vld [vmem:[%s3 + $0x1] sm:$0x1]
  %v87 = vlaneseq
  %v88 = vshrl.u32 %v87, 7
  %v89 = vsub.s32 0, %v88
  %v90 = vrot.slane %v86, %v89
  %v91 = vadd.f32 %v54, %v90
  %v92 = vadd.f32 %v55, %v90
  %v93 = vadd.f32 %v56, %v90
  %v94 = vadd.f32 %v57, %v90
  %v95 = vadd.f32 %v58, %v90
  %v96 = vadd.f32 %v59, %v90
  %v97 = vadd.f32 %v60, %v90
  %v98 = vadd.f32 %v61, %v90
  %v99 = vadd.f32 %v62, %v90
  %v100 = vadd.f32 %v63, %v90
  %v101 = vadd.f32 %v64, %v90
  %v102 = vadd.f32 %v65, %v90
  %v103 = vadd.f32 %v66, %v90
  %v104 = vadd.f32 %v67, %v90
  %v105 = vadd.f32 %v68, %v90
  %v106 = vadd.f32 %v69, %v90
  %v107 = vadd.f32 %v70, %v90
  %v108 = vadd.f32 %v71, %v90
  %v109 = vadd.f32 %v72, %v90
  %v110 = vadd.f32 %v73, %v90
  %v111 = vadd.f32 %v74, %v90
  %v112 = vadd.f32 %v75, %v90
  %v113 = vadd.f32 %v76, %v90
  %v114 = vadd.f32 %v77, %v90
  %v115 = vadd.f32 %v78, %v90
  %v116 = vadd.f32 %v79, %v90
  %v117 = vadd.f32 %v80, %v90
  %v118 = vadd.f32 %v81, %v90
  %v119 = vadd.f32 %v82, %v90
  %v120 = vadd.f32 %v83, %v90
  %v121 = vadd.f32 %v84, %v90
  %v122 = vadd.f32 %v85, %v90
  %v123 = vmax.f32 %v91, 0.0
  %v124 = vmax.f32 %v92, 0.0
  %v125 = vmax.f32 %v93, 0.0
  %v126 = vmax.f32 %v94, 0.0
  %v127 = vmax.f32 %v95, 0.0
  %v128 = vmax.f32 %v96, 0.0
  %v129 = vmax.f32 %v97, 0.0
  %v130 = vmax.f32 %v98, 0.0
  %v131 = vmax.f32 %v99, 0.0
  %v132 = vmax.f32 %v100, 0.0
  %v133 = vmax.f32 %v101, 0.0
  %v134 = vmax.f32 %v102, 0.0
  %v135 = vmax.f32 %v103, 0.0
  %v136 = vmax.f32 %v104, 0.0
  %v137 = vmax.f32 %v105, 0.0
  %v138 = vmax.f32 %v106, 0.0
  %v139 = vmax.f32 %v107, 0.0
  %v140 = vmax.f32 %v108, 0.0
  %v141 = vmax.f32 %v109, 0.0
  %v142 = vmax.f32 %v110, 0.0
  %v143 = vmax.f32 %v111, 0.0
  %v144 = vmax.f32 %v112, 0.0
  %v145 = vmax.f32 %v113, 0.0
  %v146 = vmax.f32 %v114, 0.0
  %v147 = vmax.f32 %v115, 0.0
  %v148 = vmax.f32 %v116, 0.0
  %v149 = vmax.f32 %v117, 0.0
  %v150 = vmax.f32 %v118, 0.0
  %v151 = vmax.f32 %v119, 0.0
  %v152 = vmax.f32 %v120, 0.0
  %v153 = vmax.f32 %v121, 0.0
  %v154 = vmax.f32 %v122, 0.0
  %v155 = vld [vmem:[%s2] sm:$0xff]
  %v156 = vld [vmem:[%s2 + $0x8] sm:$0xff]
  %v157 = vld [vmem:[%s2 + $0x10] sm:$0xff]
  %v158 = vld [vmem:[%s2 + $0x18] sm:$0xff]
  %v159 = vld [vmem:[%s2 + $0x20] sm:$0xff]
  %v160 = vld [vmem:[%s2 + $0x28] sm:$0xff]
  %v161 = vld [vmem:[%s2 + $0x30] sm:$0xff]
  %v162 = vld [vmem:[%s2 + $0x38] sm:$0xff]
  %v163 = vld [vmem:[%s2 + $0x40] sm:$0xff]
  %v164 = vld [vmem:[%s2 + $0x48] sm:$0xff]
  %v165 = vld [vmem:[%s2 + $0x50] sm:$0xff]
  %v166 = vld [vmem:[%s2 + $0x58] sm:$0xff]
  %v167 = vld [vmem:[%s2 + $0x60] sm:$0xff]
  %v168 = vld [vmem:[%s2 + $0x68] sm:$0xff]
  %v169 = vld [vmem:[%s2 + $0x70] sm:$0xff]
  %v170 = vld [vmem:[%s2 + $0x78] sm:$0xff]
  %v171 = vld [vmem:[%s2 + $0x80] sm:$0xff]
  %v172 = vld [vmem:[%s2 + $0x88] sm:$0xff]
  %v173 = vld [vmem:[%s2 + $0x90] sm:$0xff]
  %v174 = vld [vmem:[%s2 + $0x98] sm:$0xff]
  %v175 = vld [vmem:[%s2 + $0xa0] sm:$0xff]
  %v176 = vld [vmem:[%s2 + $0xa8] sm:$0xff]
  %v177 = vld [vmem:[%s2 + $0xb0] sm:$0xff]
  %v178 = vld [vmem:[%s2 + $0xb8] sm:$0xff]
  %v179 = vld [vmem:[%s2 + $0xc0] sm:$0xff]
  %v180 = vld [vmem:[%s2 + $0xc8] sm:$0xff]
  %v181 = vld [vmem:[%s2 + $0xd0] sm:$0xff]
  %v182 = vld [vmem:[%s2 + $0xd8] sm:$0xff]
  %v183 = vld [vmem:[%s2 + $0xe0] sm:$0xff]
  %v184 = vld [vmem:[%s2 + $0xe8] sm:$0xff]
  %v185 = vld [vmem:[%s2 + $0xf0] sm:$0xff]
  %v186 = vld [vmem:[%s2 + $0xf8] sm:$0xff]
  %v187 = vld [vmem:[%s3 + $0x2] sm:$0x1]
  %v188 = vlaneseq
  %v189 = vshrl.u32 %v188, 7
  %v190 = vsub.s32 0, %v189
  %v191 = vrot.slane %v187, %v190
  %v192 = vmul.f32 %v155, %v191
  %v193 = vmul.f32 %v156, %v191
  %v194 = vmul.f32 %v157, %v191
  %v195 = vmul.f32 %v158, %v191
  %v196 = vmul.f32 %v159, %v191
  %v197 = vmul.f32 %v160, %v191
  %v198 = vmul.f32 %v161, %v191
  %v199 = vmul.f32 %v162, %v191
  %v200 = vmul.f32 %v163, %v191
  %v201 = vmul.f32 %v164, %v191
  %v202 = vmul.f32 %v165, %v191
  %v203 = vmul.f32 %v166, %v191
  %v204 = vmul.f32 %v167, %v191
  %v205 = vmul.f32 %v168, %v191
  %v206 = vmul.f32 %v169, %v191
  %v207 = vmul.f32 %v170, %v191
  %v208 = vmul.f32 %v171, %v191
  %v209 = vmul.f32 %v172, %v191
  %v210 = vmul.f32 %v173, %v191
  %v211 = vmul.f32 %v174, %v191
  %v212 = vmul.f32 %v175, %v191
  %v213 = vmul.f32 %v176, %v191
  %v214 = vmul.f32 %v177, %v191
  %v215 = vmul.f32 %v178, %v191
  %v216 = vmul.f32 %v179, %v191
  %v217 = vmul.f32 %v180, %v191
  %v218 = vmul.f32 %v181, %v191
  %v219 = vmul.f32 %v182, %v191
  %v220 = vmul.f32 %v183, %v191
  %v221 = vmul.f32 %v184, %v191
  %v222 = vmul.f32 %v185, %v191
  %v223 = vmul.f32 %v186, %v191
  %v224 = vld [vmem:[%s3 + $0x3] sm:$0x1]
  %v225 = vlaneseq
  %v226 = vshrl.u32 %v225, 7
  %v227 = vsub.s32 0, %v226
  %v228 = vrot.slane %v224, %v227
  %v229 = vadd.f32 %v192, %v228
  %v230 = vadd.f32 %v193, %v228
  %v231 = vadd.f32 %v194, %v228
  %v232 = vadd.f32 %v195, %v228
  %v233 = vadd.f32 %v196, %v228
  %v234 = vadd.f32 %v197, %v228
  %v235 = vadd.f32 %v198, %v228
  %v236 = vadd.f32 %v199, %v228
  %v237 = vadd.f32 %v200, %v228
  %v238 = vadd.f32 %v201, %v228
  %v239 = vadd.f32 %v202, %v228
  %v240 = vadd.f32 %v203, %v228
  %v241 = vadd.f32 %v204, %v228
  %v242 = vadd.f32 %v205, %v228
  %v243 = vadd.f32 %v206, %v228
  %v244 = vadd.f32 %v207, %v228
  %v245 = vadd.f32 %v208, %v228
  %v246 = vadd.f32 %v209, %v228
  %v247 = vadd.f32 %v210, %v228
  %v248 = vadd.f32 %v211, %v228
  %v249 = vadd.f32 %v212, %v228
  %v250 = vadd.f32 %v213, %v228
  %v251 = vadd.f32 %v214, %v228
  %v252 = vadd.f32 %v215, %v228
  %v253 = vadd.f32 %v216, %v228
  %v254 = vadd.f32 %v217, %v228
  %v255 = vadd.f32 %v218, %v228
  %v256 = vadd.f32 %v219, %v228
  %v257 = vadd.f32 %v220, %v228
  %v258 = vadd.f32 %v221, %v228
  %v259 = vadd.f32 %v222, %v228
  %v260 = vadd.f32 %v223, %v228
  %v261 = vmax.f32 %v229, 0.0
  %v262 = vmax.f32 %v230, 0.0
  %v263 = vmax.f32 %v231, 0.0
  %v264 = vmax.f32 %v232, 0.0
  %v265 = vmax.f32 %v233, 0.0
  %v266 = vmax.f32 %v234, 0.0
  %v267 = vmax.f32 %v235, 0.0
  %v268 = vmax.f32 %v236, 0.0
  %v269 = vmax.f32 %v237, 0.0
  %v270 = vmax.f32 %v238, 0.0
  %v271 = vmax.f32 %v239, 0.0
  %v272 = vmax.f32 %v240, 0.0
  %v273 = vmax.f32 %v241, 0.0
  %v274 = vmax.f32 %v242, 0.0
  %v275 = vmax.f32 %v243, 0.0
  %v276 = vmax.f32 %v244, 0.0
  %v277 = vmax.f32 %v245, 0.0
  %v278 = vmax.f32 %v246, 0.0
  %v279 = vmax.f32 %v247, 0.0
  %v280 = vmax.f32 %v248, 0.0
  %v281 = vmax.f32 %v249, 0.0
  %v282 = vmax.f32 %v250, 0.0
  %v283 = vmax.f32 %v251, 0.0
  %v284 = vmax.f32 %v252, 0.0
  %v285 = vmax.f32 %v253, 0.0
  %v286 = vmax.f32 %v254, 0.0
  %v287 = vmax.f32 %v255, 0.0
  %v288 = vmax.f32 %v256, 0.0
  %v289 = vmax.f32 %v257, 0.0
  %v290 = vmax.f32 %v258, 0.0
  %v291 = vmax.f32 %v259, 0.0
  %v292 = vmax.f32 %v260, 0.0
  %v293 = vadd.f32 %v123, %v261
  %v294 = vadd.f32 %v124, %v262
  %v295 = vadd.f32 %v125, %v263
  %v296 = vadd.f32 %v126, %v264
  %v297 = vadd.f32 %v127, %v265
  %v298 = vadd.f32 %v128, %v266
  %v299 = vadd.f32 %v129, %v267
  %v300 = vadd.f32 %v130, %v268
  %v301 = vadd.f32 %v131, %v269
  %v302 = vadd.f32 %v132, %v270
  %v303 = vadd.f32 %v133, %v271
  %v304 = vadd.f32 %v134, %v272
  %v305 = vadd.f32 %v135, %v273
  %v306 = vadd.f32 %v136, %v274
  %v307 = vadd.f32 %v137, %v275
  %v308 = vadd.f32 %v138, %v276
  %v309 = vadd.f32 %v139, %v277
  %v310 = vadd.f32 %v140, %v278
  %v311 = vadd.f32 %v141, %v279
  %v312 = vadd.f32 %v142, %v280
  %v313 = vadd.f32 %v143, %v281
  %v314 = vadd.f32 %v144, %v282
  %v315 = vadd.f32 %v145, %v283
  %v316 = vadd.f32 %v146, %v284
  %v317 = vadd.f32 %v147, %v285
  %v318 = vadd.f32 %v148, %v286
  %v319 = vadd.f32 %v149, %v287
  %v320 = vadd.f32 %v150, %v288
  %v321 = vadd.f32 %v151, %v289
  %v322 = vadd.f32 %v152, %v290
  %v323 = vadd.f32 %v153, %v291
  %v324 = vadd.f32 %v154, %v292
  %v325 = vld [vmem:[%s0] sm:$0xff]
  %v326 = vld [vmem:[%s0 + $0x8] sm:$0xff]
  %v327 = vld [vmem:[%s0 + $0x10] sm:$0xff]
  %v328 = vld [vmem:[%s0 + $0x18] sm:$0xff]
  %v329 = vld [vmem:[%s0 + $0x20] sm:$0xff]
  %v330 = vld [vmem:[%s0 + $0x28] sm:$0xff]
  %v331 = vld [vmem:[%s0 + $0x30] sm:$0xff]
  %v332 = vld [vmem:[%s0 + $0x38] sm:$0xff]
  %v333 = vld [vmem:[%s0 + $0x40] sm:$0xff]
  %v334 = vld [vmem:[%s0 + $0x48] sm:$0xff]
  %v335 = vld [vmem:[%s0 + $0x50] sm:$0xff]
  %v336 = vld [vmem:[%s0 + $0x58] sm:$0xff]
  %v337 = vld [vmem:[%s0 + $0x60] sm:$0xff]
  %v338 = vld [vmem:[%s0 + $0x68] sm:$0xff]
  %v339 = vld [vmem:[%s0 + $0x70] sm:$0xff]
  %v340 = vld [vmem:[%s0 + $0x78] sm:$0xff]
  %v341 = vld [vmem:[%s0 + $0x80] sm:$0xff]
  %v342 = vld [vmem:[%s0 + $0x88] sm:$0xff]
  %v343 = vld [vmem:[%s0 + $0x90] sm:$0xff]
  %v344 = vld [vmem:[%s0 + $0x98] sm:$0xff]
  %v345 = vld [vmem:[%s0 + $0xa0] sm:$0xff]
  %v346 = vld [vmem:[%s0 + $0xa8] sm:$0xff]
  %v347 = vld [vmem:[%s0 + $0xb0] sm:$0xff]
  %v348 = vld [vmem:[%s0 + $0xb8] sm:$0xff]
  %v349 = vld [vmem:[%s0 + $0xc0] sm:$0xff]
  %v350 = vld [vmem:[%s0 + $0xc8] sm:$0xff]
  %v351 = vld [vmem:[%s0 + $0xd0] sm:$0xff]
  %v352 = vld [vmem:[%s0 + $0xd8] sm:$0xff]
  %v353 = vld [vmem:[%s0 + $0xe0] sm:$0xff]
  %v354 = vld [vmem:[%s0 + $0xe8] sm:$0xff]
  %v355 = vld [vmem:[%s0 + $0xf0] sm:$0xff]
  %v356 = vld [vmem:[%s0 + $0xf8] sm:$0xff]
  %v357 = vmul.f32 %v325, 2.0
  %v358 = vmul.f32 %v326, 2.0
  %v359 = vmul.f32 %v327, 2.0
  %v360 = vmul.f32 %v328, 2.0
  %v361 = vmul.f32 %v329, 2.0
  %v362 = vmul.f32 %v330, 2.0
  %v363 = vmul.f32 %v331, 2.0
  %v364 = vmul.f32 %v332, 2.0
  %v365 = vmul.f32 %v333, 2.0
  %v366 = vmul.f32 %v334, 2.0
  %v367 = vmul.f32 %v335, 2.0
  %v368 = vmul.f32 %v336, 2.0
  %v369 = vmul.f32 %v337, 2.0
  %v370 = vmul.f32 %v338, 2.0
  %v371 = vmul.f32 %v339, 2.0
  %v372 = vmul.f32 %v340, 2.0
  %v373 = vmul.f32 %v341, 2.0
  %v374 = vmul.f32 %v342, 2.0
  %v375 = vmul.f32 %v343, 2.0
  %v376 = vmul.f32 %v344, 2.0
  %v377 = vmul.f32 %v345, 2.0
  %v378 = vmul.f32 %v346, 2.0
  %v379 = vmul.f32 %v347, 2.0
  %v380 = vmul.f32 %v348, 2.0
  %v381 = vmul.f32 %v349, 2.0
  %v382 = vmul.f32 %v350, 2.0
  %v383 = vmul.f32 %v351, 2.0
  %v384 = vmul.f32 %v352, 2.0
  %v385 = vmul.f32 %v353, 2.0
  %v386 = vmul.f32 %v354, 2.0
  %v387 = vmul.f32 %v355, 2.0
  %v388 = vmul.f32 %v356, 2.0
  %v389 = vadd.f32 %v293, %v357
  %v390 = vadd.f32 %v294, %v358
  %v391 = vadd.f32 %v295, %v359
  %v392 = vadd.f32 %v296, %v360
  %v393 = vadd.f32 %v297, %v361
  %v394 = vadd.f32 %v298, %v362
  %v395 = vadd.f32 %v299, %v363
  %v396 = vadd.f32 %v300, %v364
  %v397 = vadd.f32 %v301, %v365
  %v398 = vadd.f32 %v302, %v366
  %v399 = vadd.f32 %v303, %v367
  %v400 = vadd.f32 %v304, %v368
  %v401 = vadd.f32 %v305, %v369
  %v402 = vadd.f32 %v306, %v370
  %v403 = vadd.f32 %v307, %v371
  %v404 = vadd.f32 %v308, %v372
  %v405 = vadd.f32 %v309, %v373
  %v406 = vadd.f32 %v310, %v374
  %v407 = vadd.f32 %v311, %v375
  %v408 = vadd.f32 %v312, %v376
  %v409 = vadd.f32 %v313, %v377
  %v410 = vadd.f32 %v314, %v378
  %v411 = vadd.f32 %v315, %v379
  %v412 = vadd.f32 %v316, %v380
  %v413 = vadd.f32 %v317, %v381
  %v414 = vadd.f32 %v318, %v382
  %v415 = vadd.f32 %v319, %v383
  %v416 = vadd.f32 %v320, %v384
  %v417 = vadd.f32 %v321, %v385
  %v418 = vadd.f32 %v322, %v386
  %v419 = vadd.f32 %v323, %v387
  %v420 = vadd.f32 %v324, %v388
  %vm421 = vcmask 261120
  %422 = vst.msk [vmem:[%s4] sm:$0xff] %vm421, %v389
  %423 = vst.msk [vmem:[%s4 + $0x8] sm:$0xff] %vm421, %v390
  %424 = vst.msk [vmem:[%s4 + $0x10] sm:$0xff] %vm421, %v391
  %425 = vst.msk [vmem:[%s4 + $0x18] sm:$0xff] %vm421, %v392
  %426 = vst.msk [vmem:[%s4 + $0x20] sm:$0xff] %vm421, %v393
  %427 = vst.msk [vmem:[%s4 + $0x28] sm:$0xff] %vm421, %v394
  %428 = vst.msk [vmem:[%s4 + $0x30] sm:$0xff] %vm421, %v395
  %429 = vst.msk [vmem:[%s4 + $0x38] sm:$0xff] %vm421, %v396
  %430 = vst.msk [vmem:[%s4 + $0x40] sm:$0xff] %vm421, %v397
  %431 = vst.msk [vmem:[%s4 + $0x48] sm:$0xff] %vm421, %v398
  %432 = vst.msk [vmem:[%s4 + $0x50] sm:$0xff] %vm421, %v399
  %433 = vst.msk [vmem:[%s4 + $0x58] sm:$0xff] %vm421, %v400
  %434 = vst.msk [vmem:[%s4 + $0x60] sm:$0xff] %vm421, %v401
  %435 = vst.msk [vmem:[%s4 + $0x68] sm:$0xff] %vm421, %v402
  %436 = vst.msk [vmem:[%s4 + $0x70] sm:$0xff] %vm421, %v403
  %437 = vst.msk [vmem:[%s4 + $0x78] sm:$0xff] %vm421, %v404
  %438 = vst.msk [vmem:[%s4 + $0x80] sm:$0xff] %vm421, %v405
  %439 = vst.msk [vmem:[%s4 + $0x88] sm:$0xff] %vm421, %v406
  %440 = vst.msk [vmem:[%s4 + $0x90] sm:$0xff] %vm421, %v407
  %441 = vst.msk [vmem:[%s4 + $0x98] sm:$0xff] %vm421, %v408
  %442 = vst.msk [vmem:[%s4 + $0xa0] sm:$0xff] %vm421, %v409
  %443 = vst.msk [vmem:[%s4 + $0xa8] sm:$0xff] %vm421, %v410
  %444 = vst.msk [vmem:[%s4 + $0xb0] sm:$0xff] %vm421, %v411
  %445 = vst.msk [vmem:[%s4 + $0xb8] sm:$0xff] %vm421, %v412
  %446 = vst.msk [vmem:[%s4 + $0xc0] sm:$0xff] %vm421, %v413
  %447 = vst.msk [vmem:[%s4 + $0xc8] sm:$0xff] %vm421, %v414
  %448 = vst.msk [vmem:[%s4 + $0xd0] sm:$0xff] %vm421, %v415
  %449 = vst.msk [vmem:[%s4 + $0xd8] sm:$0xff] %vm421, %v416
  %450 = vst.msk [vmem:[%s4 + $0xe0] sm:$0xff] %vm421, %v417
  %451 = vst.msk [vmem:[%s4 + $0xe8] sm:$0xff] %vm421, %v418
  %452 = vst.msk [vmem:[%s4 + $0xf0] sm:$0xff] %vm421, %v419
  %453 = vst.msk [vmem:[%s4 + $0xf8] sm:$0xff] %vm421, %v420
  // Predicated region
  $region18: #{resunet_attention_module.3} parent=0 // pred_check
    _
  $region19: #{resunet_attention_module.3} parent=0 // pred_check_branch
    %455 = sbr.rel (0) target = $region21
  $region20: #{resunet_attention_module.3} parent=0 // pred_region
    _
  $region21: #{resunet_attention_module.3} parent=0 // pred_fallthru
    _
  // Predicated region
  $region22: #{resunet_attention_module.3} parent=0 // pred_check
    _
  $region23: #{resunet_attention_module.3} parent=0 // pred_check_branch
    %457 = sbr.rel (0) target = $region25
  $region24: #{resunet_attention_module.3} parent=0 // pred_region
    _
  $region25: #{resunet_attention_module.3} parent=0 // pred_fallthru
    _

// kernel: resunet_attention_module.2
$region0: #{resunet_attention_module.2}
  #allocation0 [shape = 'u32[]', space=smem, size = 0x4, offset = 0x4, fixed_abs, tag = 'smem constant byte address 0x4 - core index']
  #allocation1 [shape = 'u32[144,128]{1,0:T(1,128)}', space=vmem, size = 0x12000, scoped, tag = 'internal scratch']
  #allocation2 [shape = 'f32[128,32]{1,0:T(8,128)}', space=vmem, size = 0x10000, scoped, tag = 'scratch operand']
  #allocation3 [shape = 'f32[128,32]{1,0:T(8,128)}', space=vmem, size = 0x10000, scoped, tag = 'scratch operand']
  #allocation4 [shape = 'f32[128,32]{1,0:T(8,128)}', space=vmem, size = 0x10000, scoped, tag = 'scratch operand']
  #allocation5 [shape = 'f32[128,1]{1,0:T(8,128)}', space=vmem, size = 0x10000, scoped, tag = 'scratch operand']
  #allocation6 [shape = 'f32[128,1]{1,0:T(8,128)}', space=vmem, size = 0x10000, scoped, tag = 'scratch operand']
  #allocation7 [shape = 'f32[128,32]{1,0:T(8,128)}', space=vmem, size = 0x10000, scoped, tag = 'scratch operand']
  %s0 = inlined_call_operand.vmem [shape: f32[256,32], index: 0, kind: input, shape index: {}, may-alias: {0,1}]
  %s1 = inlined_call_operand.vmem [shape: f32[256,32], index: 1, kind: input, shape index: {}, may-alias: {0,1}]
  %s2 = inlined_call_operand.vmem [shape: f32[32,96], index: 2, kind: input, shape index: {}]
  %s3 = inlined_call_operand.vmem [shape: f32[1,96], index: 3, kind: input, shape index: {}]
  %s4 = inlined_call_operand.vmem [shape: f32[32,64], index: 4, kind: input, shape index: {}]
  %s5 = inlined_call_operand.vmem [shape: f32[1,64], index: 5, kind: input, shape index: {}]
  %s6 = inlined_call_operand.vmem [shape: f32[32,32], index: 6, kind: input, shape index: {}]
  %s7 = inlined_call_operand.vmem [shape: f32[32,32], index: 7, kind: input, shape index: {}]
  %s8 = inlined_call_operand.vmem [shape: f32[1,32], index: 8, kind: input, shape index: {}]
  %s9 = inlined_call_operand.vmem [shape: f32[32,32], index: 9, kind: input, shape index: {}]
  %s10 = inlined_call_operand.vmem [shape: f32[1,32], index: 10, kind: input, shape index: {}]
  %s11 = inlined_call_operand.vmem [shape: f32[256,32], index: 11, kind: output, shape index: {0}]
  %s12 = inlined_call_operand.vmem [shape: f32[256,32], index: 12, kind: output, shape index: {1}]
  %13 = xla_tuple %s11, %s12
  %s14 = sld [smem:[#allocation0]]
  $region93: #{resunet_attention_module.2} parent=0
    _
  %s16 = ssub.s32 1, %s14
  %s17 = scalar_select 0, %s16, %s14
  loop: start=0, step=1, limit=4
  $region2: #{resunet_attention_module.2} parent=0 // loop_pre_header
    _
  $region3: #{resunet_attention_module.2} parent=0 // loop_header
    %s19 = sphi 0, %s23
    %p20 = scmp.ge.s32.totalorder %s19, 4
    %s26 = sphi 0, %s38
    %s27 = sphi 0, %s34
    %s28 = sphi 0, %s26
    %s29 = sphi 0, %s27
    %s30 = sphi 0, %s28
    %s31 = sphi 0, %s29
    %s41 = sphi 0, %s43
    %s44 = sphi 0, %s41
    %s45 = sphi 0, %s44
    %s61 = sphi 0, %s45
    %s67 = sphi 0, %s69
    %s70 = sphi 0, %s67
    %s71 = sphi 0, %s70
    %s87 = sphi 0, %s71
    %s91 = sphi 0, %s91
    %s93 = sphi 0, %s91
    %s94 = sphi 0, %s93
    %s108 = sphi 0, %s94
    %s112 = sphi 0, %s112
    %s114 = sphi 0, %s112
    %s115 = sphi 0, %s114
    %s129 = sphi 0, %s115
    %s133 = sphi 0, %s133
    %s135 = sphi 0, %s133
    %s136 = sphi 0, %s135
    %s150 = sphi 0, %s136
    %s154 = sphi 0, %s154
    %s156 = sphi 0, %s154
    %s157 = sphi 0, %s156
    %s171 = sphi 0, %s157
    %s175 = sphi 0, %s175
    %s177 = sphi 0, %s175
    %s178 = sphi 0, %s177
    %s192 = sphi 0, %s178
    %s196 = sphi 0, %s196
    %s198 = sphi 0, %s196
    %s199 = sphi 0, %s198
    %s213 = sphi 0, %s199
    %s217 = sphi 0, %s217
    %s219 = sphi 0, %s217
    %s220 = sphi 0, %s219
    %s234 = sphi 0, %s220
    %s238 = sphi 0, %s238
    %s240 = sphi 0, %s238
    %s241 = sphi 0, %s240
    %s255 = sphi 0, %s241
    %s259 = sphi 0, %s259
    %s261 = sphi 0, %s259
    %s262 = sphi 0, %s261
    %s276 = sphi 0, %s262
    %s282 = sphi 0, %s284
    %s285 = sphi 0, %s282
    %s286 = sphi 0, %s285
    %s302 = sphi 0, %s286
    %s308 = sphi 0, %s310
    %s311 = sphi 0, %s308
    %s312 = sphi 0, %s311
    %s328 = sphi 0, %s312
  $region4: #{resunet_attention_module.2} parent=0 // loop_header_branch
    %22 = sbr.rel (%p20) target = $region8
  $region5: #{resunet_attention_module.2} parent=0 // loop_body
    %s24 = ssub.s32 %s19, 1
    %s25 = ssub.s32 %s19, 2
    %s32 = sadd.s32 1, %s27
    %p33 = scmp.ge.s32.totalorder %s32, 1
    %s34 = scalar_select %p33, 0, %s32
    %s35 = sadd.s32 1, %s26
    %s36 = scalar_select %p33, %s35, %s26
    %p37 = scmp.ge.s32.totalorder %s36, 2
    %s38 = scalar_select %p37, 0, %s36
    %s39 = ssub.s32 %s26, %s38
    %p40 = scmp.eq.s32.totalorder %s39, 0
    %s42 = sadd.s32 %s41, 1
    %s43 = scalar_select %p40, %s41, %s42
    %p46 = pneg %p40
    %p47 = scmp.eq.s32.totalorder %s19, 1
    %p48 = por %p46, %p47
    %p49 = scmp.ne.s32.totalorder %s41, %s44
    %p50 = scmp.eq.s32.totalorder %s19, 0
    %p51 = por %p49, %p50
    %p52 = scmp.ne.s32.totalorder %s41, %s44
    %p53 = scmp.eq.s32.totalorder %s24, 1
    %p54 = por %p52, %p53
    %p55 = scmp.ne.s32.totalorder %s44, %s45
    %p56 = scmp.eq.s32.totalorder %s24, 0
    %p57 = por %p55, %p56
    %p58 = scmp.ne.s32.totalorder %s44, %s45
    %p59 = scmp.eq.s32.totalorder %s25, 1
    %p60 = por %p58, %p59
    %p62 = scmp.ne.s32.totalorder %s45, %s61
    %p63 = scmp.eq.s32.totalorder %s25, 0
    %p64 = por %p62, %p63
    %s65 = ssub.s32 %s27, %s34
    %p66 = scmp.eq.s32.totalorder %s65, 0
    %s68 = sadd.s32 %s67, 1
    %s69 = scalar_select %p66, %s67, %s68
    %p72 = pneg %p66
    %p73 = scmp.eq.s32.totalorder %s19, 1
    %p74 = por %p72, %p73
    %p75 = scmp.ne.s32.totalorder %s67, %s70
    %p76 = scmp.eq.s32.totalorder %s19, 0
    %p77 = por %p75, %p76
    %p78 = scmp.ne.s32.totalorder %s67, %s70
    %p79 = scmp.eq.s32.totalorder %s24, 1
    %p80 = por %p78, %p79
    %p81 = scmp.ne.s32.totalorder %s70, %s71
    %p82 = scmp.eq.s32.totalorder %s24, 0
    %p83 = por %p81, %p82
    %p84 = scmp.ne.s32.totalorder %s70, %s71
    %p85 = scmp.eq.s32.totalorder %s25, 1
    %p86 = por %p84, %p85
    %p88 = scmp.ne.s32.totalorder %s71, %s87
    %p89 = scmp.eq.s32.totalorder %s25, 0
    %p90 = por %p88, %p89
    %s92 = sadd.s32 %s91, 1
    %p95 = scmp.eq.s32.totalorder %s19, 1
    %p96 = scmp.ne.s32.totalorder %s91, %s93
    %p97 = scmp.eq.s32.totalorder %s19, 0
    %p98 = por %p96, %p97
    %p99 = scmp.ne.s32.totalorder %s91, %s93
    %p100 = scmp.eq.s32.totalorder %s24, 1
    %p101 = por %p99, %p100
    %p102 = scmp.ne.s32.totalorder %s93, %s94
    %p103 = scmp.eq.s32.totalorder %s24, 0
    %p104 = por %p102, %p103
    %p105 = scmp.ne.s32.totalorder %s93, %s94
    %p106 = scmp.eq.s32.totalorder %s25, 1
    %p107 = por %p105, %p106
    %p109 = scmp.ne.s32.totalorder %s94, %s108
    %p110 = scmp.eq.s32.totalorder %s25, 0
    %p111 = por %p109, %p110
    %s113 = sadd.s32 %s112, 1
    %p116 = scmp.eq.s32.totalorder %s19, 1
    %p117 = scmp.ne.s32.totalorder %s112, %s114
    %p118 = scmp.eq.s32.totalorder %s19, 0
    %p119 = por %p117, %p118
    %p120 = scmp.ne.s32.totalorder %s112, %s114
    %p121 = scmp.eq.s32.totalorder %s24, 1
    %p122 = por %p120, %p121
    %p123 = scmp.ne.s32.totalorder %s114, %s115
    %p124 = scmp.eq.s32.totalorder %s24, 0
    %p125 = por %p123, %p124
    %p126 = scmp.ne.s32.totalorder %s114, %s115
    %p127 = scmp.eq.s32.totalorder %s25, 1
    %p128 = por %p126, %p127
    %p130 = scmp.ne.s32.totalorder %s115, %s129
    %p131 = scmp.eq.s32.totalorder %s25, 0
    %p132 = por %p130, %p131
    %s134 = sadd.s32 %s133, 1
    %p137 = scmp.eq.s32.totalorder %s19, 1
    %p138 = scmp.ne.s32.totalorder %s133, %s135
    %p139 = scmp.eq.s32.totalorder %s19, 0
    %p140 = por %p138, %p139
    %p141 = scmp.ne.s32.totalorder %s133, %s135
    %p142 = scmp.eq.s32.totalorder %s24, 1
    %p143 = por %p141, %p142
    %p144 = scmp.ne.s32.totalorder %s135, %s136
    %p145 = scmp.eq.s32.totalorder %s24, 0
    %p146 = por %p144, %p145
    %p147 = scmp.ne.s32.totalorder %s135, %s136
    %p148 = scmp.eq.s32.totalorder %s25, 1
    %p149 = por %p147, %p148
    %p151 = scmp.ne.s32.totalorder %s136, %s150
    %p152 = scmp.eq.s32.totalorder %s25, 0
    %p153 = por %p151, %p152
    %s155 = sadd.s32 %s154, 1
    %p158 = scmp.eq.s32.totalorder %s19, 1
    %p159 = scmp.ne.s32.totalorder %s154, %s156
    %p160 = scmp.eq.s32.totalorder %s19, 0
    %p161 = por %p159, %p160
    %p162 = scmp.ne.s32.totalorder %s154, %s156
    %p163 = scmp.eq.s32.totalorder %s24, 1
    %p164 = por %p162, %p163
    %p165 = scmp.ne.s32.totalorder %s156, %s157
    %p166 = scmp.eq.s32.totalorder %s24, 0
    %p167 = por %p165, %p166
    %p168 = scmp.ne.s32.totalorder %s156, %s157
    %p169 = scmp.eq.s32.totalorder %s25, 1
    %p170 = por %p168, %p169
    %p172 = scmp.ne.s32.totalorder %s157, %s171
    %p173 = scmp.eq.s32.totalorder %s25, 0
    %p174 = por %p172, %p173
    %s176 = sadd.s32 %s175, 1
    %p179 = scmp.eq.s32.totalorder %s19, 1
    %p180 = scmp.ne.s32.totalorder %s175, %s177
    %p181 = scmp.eq.s32.totalorder %s19, 0
    %p182 = por %p180, %p181
    %p183 = scmp.ne.s32.totalorder %s175, %s177
    %p184 = scmp.eq.s32.totalorder %s24, 1
    %p185 = por %p183, %p184
    %p186 = scmp.ne.s32.totalorder %s177, %s178
    %p187 = scmp.eq.s32.totalorder %s24, 0
    %p188 = por %p186, %p187
    %p189 = scmp.ne.s32.totalorder %s177, %s178
    %p190 = scmp.eq.s32.totalorder %s25, 1
    %p191 = por %p189, %p190
    %p193 = scmp.ne.s32.totalorder %s178, %s192
    %p194 = scmp.eq.s32.totalorder %s25, 0
    %p195 = por %p193, %p194
    %s197 = sadd.s32 %s196, 1
    %p200 = scmp.eq.s32.totalorder %s19, 1
    %p201 = scmp.ne.s32.totalorder %s196, %s198
    %p202 = scmp.eq.s32.totalorder %s19, 0
    %p203 = por %p201, %p202
    %p204 = scmp.ne.s32.totalorder %s196, %s198
    %p205 = scmp.eq.s32.totalorder %s24, 1
    %p206 = por %p204, %p205
    %p207 = scmp.ne.s32.totalorder %s198, %s199
    %p208 = scmp.eq.s32.totalorder %s24, 0
    %p209 = por %p207, %p208
    %p210 = scmp.ne.s32.totalorder %s198, %s199
    %p211 = scmp.eq.s32.totalorder %s25, 1
    %p212 = por %p210, %p211
    %p214 = scmp.ne.s32.totalorder %s199, %s213
    %p215 = scmp.eq.s32.totalorder %s25, 0
    %p216 = por %p214, %p215
    %s218 = sadd.s32 %s217, 1
    %p221 = scmp.eq.s32.totalorder %s19, 1
    %p222 = scmp.ne.s32.totalorder %s217, %s219
    %p223 = scmp.eq.s32.totalorder %s19, 0
    %p224 = por %p222, %p223
    %p225 = scmp.ne.s32.totalorder %s217, %s219
    %p226 = scmp.eq.s32.totalorder %s24, 1
    %p227 = por %p225, %p226
    %p228 = scmp.ne.s32.totalorder %s219, %s220
    %p229 = scmp.eq.s32.totalorder %s24, 0
    %p230 = por %p228, %p229
    %p231 = scmp.ne.s32.totalorder %s219, %s220
    %p232 = scmp.eq.s32.totalorder %s25, 1
    %p233 = por %p231, %p232
    %p235 = scmp.ne.s32.totalorder %s220, %s234
    %p236 = scmp.eq.s32.totalorder %s25, 0
    %p237 = por %p235, %p236
    %s239 = sadd.s32 %s238, 1
    %p242 = scmp.eq.s32.totalorder %s19, 1
    %p243 = scmp.ne.s32.totalorder %s238, %s240
    %p244 = scmp.eq.s32.totalorder %s19, 0
    %p245 = por %p243, %p244
    %p246 = scmp.ne.s32.totalorder %s238, %s240
    %p247 = scmp.eq.s32.totalorder %s24, 1
    %p248 = por %p246, %p247
    %p249 = scmp.ne.s32.totalorder %s240, %s241
    %p250 = scmp.eq.s32.totalorder %s24, 0
    %p251 = por %p249, %p250
    %p252 = scmp.ne.s32.totalorder %s240, %s241
    %p253 = scmp.eq.s32.totalorder %s25, 1
    %p254 = por %p252, %p253
    %p256 = scmp.ne.s32.totalorder %s241, %s255
    %p257 = scmp.eq.s32.totalorder %s25, 0
    %p258 = por %p256, %p257
    %s260 = sadd.s32 %s259, 1
    %p263 = scmp.eq.s32.totalorder %s19, 1
    %p264 = scmp.ne.s32.totalorder %s259, %s261
    %p265 = scmp.eq.s32.totalorder %s19, 0
    %p266 = por %p264, %p265
    %p267 = scmp.ne.s32.totalorder %s259, %s261
    %p268 = scmp.eq.s32.totalorder %s24, 1
    %p269 = por %p267, %p268
    %p270 = scmp.ne.s32.totalorder %s261, %s262
    %p271 = scmp.eq.s32.totalorder %s24, 0
    %p272 = por %p270, %p271
    %p273 = scmp.ne.s32.totalorder %s261, %s262
    %p274 = scmp.eq.s32.totalorder %s25, 1
    %p275 = por %p273, %p274
    %p277 = scmp.ne.s32.totalorder %s262, %s276
    %p278 = scmp.eq.s32.totalorder %s25, 0
    %p279 = por %p277, %p278
    %s280 = ssub.s32 %s26, %s38
    %p281 = scmp.eq.s32.totalorder %s280, 0
    %s283 = sadd.s32 %s282, 1
    %s284 = scalar_select %p281, %s282, %s283
    %p287 = pneg %p281
    %p288 = scmp.eq.s32.totalorder %s19, 1
    %p289 = por %p287, %p288
    %p290 = scmp.ne.s32.totalorder %s282, %s285
    %p291 = scmp.eq.s32.totalorder %s19, 0
    %p292 = por %p290, %p291
    %p293 = scmp.ne.s32.totalorder %s282, %s285
    %p294 = scmp.eq.s32.totalorder %s24, 1
    %p295 = por %p293, %p294
    %p296 = scmp.ne.s32.totalorder %s285, %s286
    %p297 = scmp.eq.s32.totalorder %s24, 0
    %p298 = por %p296, %p297
    %p299 = scmp.ne.s32.totalorder %s285, %s286
    %p300 = scmp.eq.s32.totalorder %s25, 1
    %p301 = por %p299, %p300
    %p303 = scmp.ne.s32.totalorder %s286, %s302
    %p304 = scmp.eq.s32.totalorder %s25, 0
    %p305 = por %p303, %p304
    %s306 = ssub.s32 %s26, %s38
    %p307 = scmp.eq.s32.totalorder %s306, 0
    %s309 = sadd.s32 %s308, 1
    %s310 = scalar_select %p307, %s308, %s309
    %p313 = pneg %p307
    %p314 = scmp.eq.s32.totalorder %s19, 1
    %p315 = por %p313, %p314
    %p316 = scmp.ne.s32.totalorder %s308, %s311
    %p317 = scmp.eq.s32.totalorder %s19, 0
    %p318 = por %p316, %p317
    %p319 = scmp.ne.s32.totalorder %s308, %s311
    %p320 = scmp.eq.s32.totalorder %s24, 1
    %p321 = por %p319, %p320
    %p322 = scmp.ne.s32.totalorder %s311, %s312
    %p323 = scmp.eq.s32.totalorder %s24, 0
    %p324 = por %p322, %p323
    %p325 = scmp.ne.s32.totalorder %s311, %s312
    %p326 = scmp.eq.s32.totalorder %s25, 1
    %p327 = por %p325, %p326
    %p329 = scmp.ne.s32.totalorder %s312, %s328
    %p330 = scmp.eq.s32.totalorder %s25, 0
    %p331 = por %p329, %p330
    %p332 = scmp.le.s32.totalorder 1, %s19
    %p333 = scmp.lt.s32.totalorder %s19, 3
    %p334 = pnand %p332, %p333
    %p335 = pneg %p334
    // Predicated region
    $region9: #{resunet_attention_module.2} parent=5 // pred_check
      _
    $region10: #{resunet_attention_module.2} parent=5 // pred_check_branch
      %337 = sbr.rel (%p334) target = $region12
    $region11: #{resunet_attention_module.2} parent=5 // pred_region
      %s338 = ssub.s32 %s19, 1
      // Predicated region
      $region13: #{resunet_attention_module.2} parent=11 // pred_check
        %p339 = pneg %p83
      $region14: #{resunet_attention_module.2} parent=11 // pred_check_branch
        %341 = sbr.rel (%p339) target = $region16
      $region15: #{resunet_attention_module.2} parent=11 // pred_region
        %s342 = smul.u32 32, %s29
        %p343 = scmp.lt.s32.totalorder %s342, 31
        %s344 = scalar_select %p343, %s342, 31
        %s345 = smul.addr %s344, 8
        %s346 = scalar_lea.vmem %s1, %s345
        %s347 = smul.u32 32, %s29
      $region16: #{resunet_attention_module.2} parent=11 // pred_fallthru
        _
      // Predicated region
      $region17: #{resunet_attention_module.2} parent=11 // pred_check
        %p348 = pneg %p104
      $region18: #{resunet_attention_module.2} parent=11 // pred_check_branch
        %350 = sbr.rel (%p348) target = $region20
      $region19: #{resunet_attention_module.2} parent=11 // pred_region
        _
      $region20: #{resunet_attention_module.2} parent=11 // pred_fallthru
        _
      // Predicated region
      $region21: #{resunet_attention_module.2} parent=11 // pred_check
        %p351 = pneg %p125
      $region22: #{resunet_attention_module.2} parent=11 // pred_check_branch
        %353 = sbr.rel (%p351) target = $region24
      $region23: #{resunet_attention_module.2} parent=11 // pred_region
        _
      $region24: #{resunet_attention_module.2} parent=11 // pred_fallthru
        _
      // Predicated region
      $region25: #{resunet_attention_module.2} parent=11 // pred_check
        %p354 = pneg %p146
      $region26: #{resunet_attention_module.2} parent=11 // pred_check_branch
        %356 = sbr.rel (%p354) target = $region28
      $region27: #{resunet_attention_module.2} parent=11 // pred_region
        _
      $region28: #{resunet_attention_module.2} parent=11 // pred_fallthru
        _
      // Predicated region
      $region29: #{resunet_attention_module.2} parent=11 // pred_check
        %p357 = pneg %p167
      $region30: #{resunet_attention_module.2} parent=11 // pred_check_branch
        %359 = sbr.rel (%p357) target = $region32
      $region31: #{resunet_attention_module.2} parent=11 // pred_region
        _
      $region32: #{resunet_attention_module.2} parent=11 // pred_fallthru
        _
      // Predicated region
      $region33: #{resunet_attention_module.2} parent=11 // pred_check
        %p360 = pneg %p188
      $region34: #{resunet_attention_module.2} parent=11 // pred_check_branch
        %362 = sbr.rel (%p360) target = $region36
      $region35: #{resunet_attention_module.2} parent=11 // pred_region
        _
      $region36: #{resunet_attention_module.2} parent=11 // pred_fallthru
        _
      // Predicated region
      $region37: #{resunet_attention_module.2} parent=11 // pred_check
        %p363 = pneg %p209
      $region38: #{resunet_attention_module.2} parent=11 // pred_check_branch
        %365 = sbr.rel (%p363) target = $region40
      $region39: #{resunet_attention_module.2} parent=11 // pred_region
        _
      $region40: #{resunet_attention_module.2} parent=11 // pred_fallthru
        _
      // Predicated region
      $region41: #{resunet_attention_module.2} parent=11 // pred_check
        %p366 = pneg %p230
      $region42: #{resunet_attention_module.2} parent=11 // pred_check_branch
        %368 = sbr.rel (%p366) target = $region44
      $region43: #{resunet_attention_module.2} parent=11 // pred_region
        _
      $region44: #{resunet_attention_module.2} parent=11 // pred_fallthru
        _
      // Predicated region
      $region45: #{resunet_attention_module.2} parent=11 // pred_check
        %p369 = pneg %p251
      $region46: #{resunet_attention_module.2} parent=11 // pred_check_branch
        %371 = sbr.rel (%p369) target = $region48
      $region47: #{resunet_attention_module.2} parent=11 // pred_region
        _
      $region48: #{resunet_attention_module.2} parent=11 // pred_fallthru
        _
      // Predicated region
      $region49: #{resunet_attention_module.2} parent=11 // pred_check
        %p372 = pneg %p272
      $region50: #{resunet_attention_module.2} parent=11 // pred_check_branch
        %374 = sbr.rel (%p372) target = $region52
      $region51: #{resunet_attention_module.2} parent=11 // pred_region
        _
      $region52: #{resunet_attention_module.2} parent=11 // pred_fallthru
        _
    $region12: #{resunet_attention_module.2} parent=5 // pred_fallthru
      _
    %p375 = scmp.lt.s32.totalorder %s19, 2
    // Predicated region
    $region53: #{resunet_attention_module.2} parent=5 // pred_check
      %p376 = pneg %p375
    $region54: #{resunet_attention_module.2} parent=5 // pred_check_branch
      %378 = sbr.rel (%p376) target = $region56
    $region55: #{resunet_attention_module.2} parent=5 // pred_region
      // Predicated region
      $region57: #{resunet_attention_module.2} parent=55 // pred_check
        %p379 = pneg %p51
      $region58: #{resunet_attention_module.2} parent=55 // pred_check_branch
        %381 = sbr.rel (%p379) target = $region60
      $region59: #{resunet_attention_module.2} parent=55 // pred_region
        %s382 = smul.u32 16, %s26
        %p383 = scmp.lt.s32.totalorder %s382, 31
        %s384 = scalar_select %p383, %s382, 31
        %s385 = smul.addr %s384, 8
        %s386 = scalar_lea.vmem %s0, %s385
        %s387 = smul.u32 16, %s26
      $region60: #{resunet_attention_module.2} parent=55 // pred_fallthru
        _
    $region56: #{resunet_attention_module.2} parent=5 // pred_fallthru
      _
    %p388 = scmp.le.s32.totalorder 1, %s19
    %p389 = scmp.lt.s32.totalorder %s19, 3
    %p390 = pnand %p388, %p389
    %p391 = pneg %p390
    // Predicated region
    $region61: #{resunet_attention_module.2} parent=5 // pred_check
      _
    $region62: #{resunet_attention_module.2} parent=5 // pred_check_branch
      %393 = sbr.rel (%p390) target = $region64
    $region63: #{resunet_attention_module.2} parent=5 // pred_region
      %s394 = ssub.s32 %s19, 1
      %s395 = smul.u32 16, %s28
      %p396 = scmp.lt.s32.totalorder %s395, 31
      %s397 = scalar_select %p396, %s395, 31
      %s398 = smul.addr %s397, 8
      %s399 = scalar_lea.vmem %s0, %s398
      %p400 = pneg %p57
      %p401 = pneg %p54
      %s402 = smul.u32 32, %s29
      %p403 = scmp.lt.s32.totalorder %s402, 31
      %s404 = scalar_select %p403, %s402, 31
      %s405 = smul.addr %s404, 8
      %s406 = scalar_lea.vmem %s1, %s405
      %p407 = pneg %p83
      %p408 = pneg %p80
      %p409 = pneg %p104
      %p410 = pneg %p101
      %p411 = pneg %p125
      %p412 = pneg %p122
      %p413 = pneg %p146
      %p414 = pneg %p143
      %p415 = pneg %p167
      %p416 = pneg %p164
      %p417 = pneg %p188
      %p418 = pneg %p185
      %p419 = pneg %p209
      %p420 = pneg %p206
      %p421 = pneg %p230
      %p422 = pneg %p227
      %p423 = pneg %p251
      %p424 = pneg %p248
      %p425 = pneg %p272
      %p426 = pneg %p269
      %p427 = pneg %p298
      %p428 = pneg %p295
      %s429 = smul.u32 16, %s28
      %p430 = scmp.lt.s32.totalorder %s429, 31
      %s431 = scalar_select %p430, %s429, 31
      %s432 = smul.addr %s431, 8
      %s433 = scalar_lea.vmem %s11, %s432
      %p434 = pneg %p324
      %p435 = pneg %p321
      %s436 = smul.u32 16, %s28
      %p437 = scmp.lt.s32.totalorder %s436, 31
      %s438 = scalar_select %p437, %s436, 31
      %s439 = smul.addr %s438, 8
      %s440 = scalar_lea.vmem %s12, %s439
      %s441 = smul.u32 16, %s28
      %p442 = scmp.lt.s32.totalorder %s441, 31
      %s443 = scalar_select %p442, %s441, 31
      %s444 = smul.addr %s443, 8
      %s445 = scalar_lea.vmem %s0, %s444
      %s446 = smul.u32 16, %s28
      %s447 = smul.u32 32, %s29
      %p448 = scmp.lt.s32.totalorder %s447, 31
      %s449 = scalar_select %p448, %s447, 31
      %s450 = smul.addr %s449, 8
      %s451 = scalar_lea.vmem %s1, %s450
      %s452 = smul.u32 32, %s29
      %s453 = smul.u32 16, %s28
      %p454 = scmp.lt.s32.totalorder %s453, 31
      %s455 = scalar_select %p454, %s453, 31
      %s456 = smul.addr %s455, 8
      %s457 = scalar_lea.vmem %s11, %s456
      %s458 = smul.u32 16, %s28
      %s459 = smul.u32 16, %s28
      %p460 = scmp.lt.s32.totalorder %s459, 31
      %s461 = scalar_select %p460, %s459, 31
      %s462 = smul.addr %s461, 8
      %s463 = scalar_lea.vmem %s12, %s462
      %s464 = smul.u32 16, %s28
      %p465 = scmp.eq.s32.totalorder %s29, 0
      // Predicated region
      $region65: #{resunet_attention_module.2} parent=63 // pred_check
        %p466 = pneg %p465
      $region66: #{resunet_attention_module.2} parent=63 // pred_check_branch
        %468 = sbr.rel (%p466) target = $region68
      $region67: #{resunet_attention_module.2} parent=63 // pred_region
        %v469 = vld [vmem:[%s445] sm:$0xff]
        %v470 = vld [vmem:[%s445 + $0x8] sm:$0xff]
        %v471 = vld [vmem:[%s445 + $0x10] sm:$0xff]
        %v472 = vld [vmem:[%s445 + $0x18] sm:$0xff]
        %v473 = vld [vmem:[%s445 + $0x20] sm:$0xff]
        %v474 = vld [vmem:[%s445 + $0x28] sm:$0xff]
        %v475 = vld [vmem:[%s445 + $0x30] sm:$0xff]
        %v476 = vld [vmem:[%s445 + $0x38] sm:$0xff]
        %v477 = vld [vmem:[%s445 + $0x40] sm:$0xff]
        %v478 = vld [vmem:[%s445 + $0x48] sm:$0xff]
        %v479 = vld [vmem:[%s445 + $0x50] sm:$0xff]
        %v480 = vld [vmem:[%s445 + $0x58] sm:$0xff]
        %v481 = vld [vmem:[%s445 + $0x60] sm:$0xff]
        %v482 = vld [vmem:[%s445 + $0x68] sm:$0xff]
        %v483 = vld [vmem:[%s445 + $0x70] sm:$0xff]
        %v484 = vld [vmem:[%s445 + $0x78] sm:$0xff]
        %v485 = vld [vmem:[%s2] sm:$0xff]
        %v486 = vld [vmem:[%s2 + $0x8] sm:$0xff]
        %v487 = vld [vmem:[%s2 + $0x10] sm:$0xff]
        %v488 = vld [vmem:[%s2 + $0x18] sm:$0xff]
        %v489 = vld [vmem:[%s3] sm:$0x1]
        %v491 = vlaneseq
        %v492 = vshrl.u32 %v491, 7
        %v493 = vsub.s32 0, %v492
        %v494 = vrot.slane %v489, %v493
        %vm496 = vcmask 261120
        %v498 = vsel %vm496, %v469, 0
        %v501 = vsel %vm496, %v470, 0
        %v504 = vsel %vm496, %v471, 0
        %v507 = vsel %vm496, %v472, 0
        %v510 = vsel %vm496, %v473, 0
        %v513 = vsel %vm496, %v474, 0
        %v516 = vsel %vm496, %v475, 0
        %v519 = vsel %vm496, %v476, 0
        %v522 = vsel %vm496, %v477, 0
        %v525 = vsel %vm496, %v478, 0
        %v528 = vsel %vm496, %v479, 0
        %v531 = vsel %vm496, %v480, 0
        %v534 = vsel %vm496, %v481, 0
        %v537 = vsel %vm496, %v482, 0
        %v540 = vsel %vm496, %v483, 0
        %v543 = vsel %vm496, %v484, 0
        %545 = vmatprep.subr.mxu0 0.0
        %546 = vmatpush1.msra.mxu0 %v485
        %547 = vmatprep.subr.mxu0 0.0
        %548 = vmatpush1.msra.mxu0 %v486
        %549 = vmatprep.subr.mxu0 0.0
        %550 = vmatpush1.msra.mxu0 %v487
        %551 = vmatprep.subr.mxu0 0.0
        %552 = vmatpush1.msra.mxu0 %v488
        %553 = vmatprep.subr.mxu0 0.0
        %554 = vmatpush1.msra.mxu0 0.0
        %555 = vmatprep.subr.mxu0 0.0
        %556 = vmatpush1.msra.mxu0 0.0
        %557 = vmatprep.subr.mxu0 0.0
        %558 = vmatpush1.msra.mxu0 0.0
        %559 = vmatprep.subr.mxu0 0.0
        %560 = vmatpush1.msra.mxu0 0.0
        %561 = vmatprep.subr.mxu0 0.0
        %562 = vmatpush1.msra.mxu0 0.0
        %563 = vmatprep.subr.mxu0 0.0
        %564 = vmatpush1.msra.mxu0 0.0
        %565 = vmatprep.subr.mxu0 0.0
        %566 = vmatpush1.msra.mxu0 0.0
        %567 = vmatprep.subr.mxu0 0.0
        %568 = vmatpush1.msra.mxu0 0.0
        %569 = vmatprep.subr.mxu0 0.0
        %570 = vmatpush1.msra.mxu0 0.0
        %571 = vmatprep.subr.mxu0 0.0
        %572 = vmatpush1.msra.mxu0 0.0
        %573 = vmatprep.subr.mxu0 0.0
        %574 = vmatpush1.msra.mxu0 0.0
        %575 = vmatprep.subr.mxu0 0.0
        %576 = vmatpush1.msra.mxu0 0.0
        %577 = vmatprep.subr.mxu0 0.0
        %578 = vmatpush1.msra.mxu0 0.0
        %579 = vmatprep.subr.mxu0 0.0
        %580 = vmatpush1.msra.mxu0 0.0
        %581 = vmatprep.subr.mxu0 0.0
        %582 = vmatpush1.msra.mxu0 0.0
        %583 = vmatprep.subr.mxu0 0.0
        %584 = vmatpush1.msra.mxu0 0.0
        %585 = vmatprep.subr.mxu0 0.0
        %586 = vmatpush1.msra.mxu0 0.0
        %587 = vmatprep.subr.mxu0 0.0
        %588 = vmatpush1.msra.mxu0 0.0
        %589 = vmatprep.subr.mxu0 0.0
        %590 = vmatpush1.msra.mxu0 0.0
        %591 = vmatprep.subr.mxu0 0.0
        %592 = vmatpush1.msra.mxu0 0.0
        %593 = vmatprep.subr.mxu0 0.0
        %594 = vmatpush1.msra.mxu0 0.0
        %595 = vmatprep.subr.mxu0 0.0
        %596 = vmatpush1.msra.mxu0 0.0
        %597 = vmatprep.subr.mxu0 0.0
        %598 = vmatpush1.msra.mxu0 0.0
        %599 = vmatprep.subr.mxu0 0.0
        %600 = vmatpush1.msra.mxu0 0.0
        %601 = vmatprep.subr.mxu0 0.0
        %602 = vmatpush1.msra.mxu0 0.0
        %603 = vmatprep.subr.mxu0 0.0
        %604 = vmatpush1.msra.mxu0 0.0
        %605 = vmatprep.subr.mxu0 0.0
        %606 = vmatpush1.msra.mxu0 0.0
        %607 = vmatprep.subr.mxu0 0.0
        %608 = vmatpush1.msra.mxu0 0.0
        %609 = vmatprep.mubr.f32.mxu0 0.0
        %610 = vmatmul.mubr.f32.gmra.mrb[0].mxu0 %v498
        %v611 = vpop.f32.mrb[0].mxu0
        %v612 = vadd.f32 %v494, %v611
        %v613 = vpop.f32.mrb[0].mxu0
        %614 = vmatprep.mubr.f32.mxu0 0.0
        %615 = vmatmul.mubr.f32.gmra.mrb[0].mxu0 %v501
        %v616 = vpop.f32.mrb[0].mxu0
        %v617 = vadd.f32 %v494, %v616
        %v618 = vpop.f32.mrb[0].mxu0
        %619 = vmatprep.mubr.f32.mxu0 0.0
        %620 = vmatmul.mubr.f32.gmra.mrb[0].mxu0 %v504
        %v621 = vpop.f32.mrb[0].mxu0
        %v622 = vadd.f32 %v494, %v621
        %v623 = vpop.f32.mrb[0].mxu0
        %624 = vmatprep.mubr.f32.mxu0 0.0
        %625 = vmatmul.mubr.f32.gmra.mrb[0].mxu0 %v507
        %v626 = vpop.f32.mrb[0].mxu0
        %v627 = vadd.f32 %v494, %v626
        %v628 = vpop.f32.mrb[0].mxu0
        %629 = vmatprep.mubr.f32.mxu0 0.0
        %630 = vmatmul.mubr.f32.gmra.mrb[0].mxu0 %v510
        %v631 = vpop.f32.mrb[0].mxu0
        %v632 = vadd.f32 %v494, %v631
        %v633 = vpop.f32.mrb[0].mxu0
        %634 = vmatprep.mubr.f32.mxu0 0.0
        %635 = vmatmul.mubr.f32.gmra.mrb[0].mxu0 %v513
        %v636 = vpop.f32.mrb[0].mxu0
        %v637 = vadd.f32 %v494, %v636
        %v638 = vpop.f32.mrb[0].mxu0
        %639 = vmatprep.mubr.f32.mxu0 0.0
        %640 = vmatmul.mubr.f32.gmra.mrb[0].mxu0 %v516
        %v641 = vpop.f32.mrb[0].mxu0
        %v642 = vadd.f32 %v494, %v641
        %v643 = vpop.f32.mrb[0].mxu0
        %644 = vmatprep.mubr.f32.mxu0 0.0
        %645 = vmatmul.mubr.f32.gmra.mrb[0].mxu0 %v519
        %v646 = vpop.f32.mrb[0].mxu0
        %v647 = vadd.f32 %v494, %v646
        %v648 = vpop.f32.mrb[0].mxu0
        %649 = vmatprep.mubr.f32.mxu0 0.0
        %650 = vmatmul.mubr.f32.gmra.mrb[0].mxu0 %v522
        %v651 = vpop.f32.mrb[0].mxu0
        %v652 = vadd.f32 %v494, %v651
        %v653 = vpop.f32.mrb[0].mxu0
        %654 = vmatprep.mubr.f32.mxu0 0.0
        %655 = vmatmul.mubr.f32.gmra.mrb[0].mxu0 %v525
        %v656 = vpop.f32.mrb[0].mxu0
        %v657 = vadd.f32 %v494, %v656
        %v658 = vpop.f32.mrb[0].mxu0
        %659 = vmatprep.mubr.f32.mxu0 0.0
        %660 = vmatmul.mubr.f32.gmra.mrb[0].mxu0 %v528
        %v661 = vpop.f32.mrb[0].mxu0
        %v662 = vadd.f32 %v494, %v661
        %v663 = vpop.f32.mrb[0].mxu0
        %664 = vmatprep.mubr.f32.mxu0 0.0
        %665 = vmatmul.mubr.f32.gmra.mrb[0].mxu0 %v531
        %v666 = vpop.f32.mrb[0].mxu0
        %v667 = vadd.f32 %v494, %v666
        %v668 = vpop.f32.mrb[0].mxu0
        %669 = vmatprep.mubr.f32.mxu0 0.0
        %670 = vmatmul.mubr.f32.gmra.mrb[0].mxu0 %v534
        %v671 = vpop.f32.mrb[0].mxu0
        %v672 = vadd.f32 %v494, %v671
        %v673 = vpop.f32.mrb[0].mxu0
        %674 = vmatprep.mubr.f32.mxu0 0.0
        %675 = vmatmul.mubr.f32.gmra.mrb[0].mxu0 %v537
        %v676 = vpop.f32.mrb[0].mxu0
        %v677 = vadd.f32 %v494, %v676
        %v678 = vpop.f32.mrb[0].mxu0
        %679 = vmatprep.mubr.f32.mxu0 0.0
        %680 = vmatmul.mubr.f32.gmra.mrb[0].mxu0 %v540
        %v681 = vpop.f32.mrb[0].mxu0
        %v682 = vadd.f32 %v494, %v681
        %v683 = vpop.f32.mrb[0].mxu0
        %684 = vmatprep.mubr.f32.mxu0 0.0
        %685 = vmatmul.mubr.f32.gmra.mrb[0].mxu0 %v543
        %v686 = vpop.f32.mrb[0].mxu0
        %v687 = vadd.f32 %v494, %v686
        %v688 = vpop.f32.mrb[0].mxu0
        %689 = vdwg.mxu0
        %690 = vst.msk [vmem:[#allocation2] sm:$0xff] %vm496, %v612
        %691 = vst.msk [vmem:[#allocation2 + $0x8] sm:$0xff] %vm496, %v617
        %692 = vst.msk [vmem:[#allocation2 + $0x10] sm:$0xff] %vm496, %v622
        %693 = vst.msk [vmem:[#allocation2 + $0x18] sm:$0xff] %vm496, %v627
        %694 = vst.msk [vmem:[#allocation2 + $0x20] sm:$0xff] %vm496, %v632
        %695 = vst.msk [vmem:[#allocation2 + $0x28] sm:$0xff] %vm496, %v637
        %696 = vst.msk [vmem:[#allocation2 + $0x30] sm:$0xff] %vm496, %v642
        %697 = vst.msk [vmem:[#allocation2 + $0x38] sm:$0xff] %vm496, %v647
        %698 = vst.msk [vmem:[#allocation2 + $0x40] sm:$0xff] %vm496, %v652
        %699 = vst.msk [vmem:[#allocation2 + $0x48] sm:$0xff] %vm496, %v657
        %700 = vst.msk [vmem:[#allocation2 + $0x50] sm:$0xff] %vm496, %v662
        %701 = vst.msk [vmem:[#allocation2 + $0x58] sm:$0xff] %vm496, %v667
        %702 = vst.msk [vmem:[#allocation2 + $0x60] sm:$0xff] %vm496, %v672
        %703 = vst.msk [vmem:[#allocation2 + $0x68] sm:$0xff] %vm496, %v677
        %704 = vst.msk [vmem:[#allocation2 + $0x70] sm:$0xff] %vm496, %v682
        %705 = vst.msk [vmem:[#allocation2 + $0x78] sm:$0xff] %vm496, %v687
        %722 = vrot.lane.b32.xlu0 %v612, 96
        %v723 = vpop.permute.xlu0 %722
        %724 = vrot.lane.b32.xlu0 %v617, 96
        %v725 = vpop.permute.xlu0 %724
        %726 = vrot.lane.b32.xlu0 %v622, 96
        %v727 = vpop.permute.xlu0 %726
        %728 = vrot.lane.b32.xlu0 %v627, 96
        %v729 = vpop.permute.xlu0 %728
        %730 = vrot.lane.b32.xlu0 %v632, 96
        %v731 = vpop.permute.xlu0 %730
        %732 = vrot.lane.b32.xlu0 %v637, 96
        %v733 = vpop.permute.xlu0 %732
        %734 = vrot.lane.b32.xlu0 %v642, 96
        %v735 = vpop.permute.xlu0 %734
        %736 = vrot.lane.b32.xlu0 %v647, 96
        %v737 = vpop.permute.xlu0 %736
        %738 = vrot.lane.b32.xlu0 %v652, 96
        %v739 = vpop.permute.xlu0 %738
        %740 = vrot.lane.b32.xlu0 %v657, 96
        %v741 = vpop.permute.xlu0 %740
        %742 = vrot.lane.b32.xlu0 %v662, 96
        %v743 = vpop.permute.xlu0 %742
        %744 = vrot.lane.b32.xlu0 %v667, 96
        %v745 = vpop.permute.xlu0 %744
        %746 = vrot.lane.b32.xlu0 %v672, 96
        %v747 = vpop.permute.xlu0 %746
        %748 = vrot.lane.b32.xlu0 %v677, 96
        %v749 = vpop.permute.xlu0 %748
        %750 = vrot.lane.b32.xlu0 %v682, 96
        %v751 = vpop.permute.xlu0 %750
        %752 = vrot.lane.b32.xlu0 %v687, 96
        %v753 = vpop.permute.xlu0 %752
        %770 = vst.msk [vmem:[#allocation3] sm:$0xff] %vm496, %v723
        %771 = vst.msk [vmem:[#allocation3 + $0x8] sm:$0xff] %vm496, %v725
        %772 = vst.msk [vmem:[#allocation3 + $0x10] sm:$0xff] %vm496, %v727
        %773 = vst.msk [vmem:[#allocation3 + $0x18] sm:$0xff] %vm496, %v729
        %774 = vst.msk [vmem:[#allocation3 + $0x20] sm:$0xff] %vm496, %v731
        %775 = vst.msk [vmem:[#allocation3 + $0x28] sm:$0xff] %vm496, %v733
        %776 = vst.msk [vmem:[#allocation3 + $0x30] sm:$0xff] %vm496, %v735
        %777 = vst.msk [vmem:[#allocation3 + $0x38] sm:$0xff] %vm496, %v737
        %778 = vst.msk [vmem:[#allocation3 + $0x40] sm:$0xff] %vm496, %v739
        %779 = vst.msk [vmem:[#allocation3 + $0x48] sm:$0xff] %vm496, %v741
        %780 = vst.msk [vmem:[#allocation3 + $0x50] sm:$0xff] %vm496, %v743
        %781 = vst.msk [vmem:[#allocation3 + $0x58] sm:$0xff] %vm496, %v745
        %782 = vst.msk [vmem:[#allocation3 + $0x60] sm:$0xff] %vm496, %v747
        %783 = vst.msk [vmem:[#allocation3 + $0x68] sm:$0xff] %vm496, %v749
        %784 = vst.msk [vmem:[#allocation3 + $0x70] sm:$0xff] %vm496, %v751
        %785 = vst.msk [vmem:[#allocation3 + $0x78] sm:$0xff] %vm496, %v753
        %786 = vrot.lane.b32.xlu0 %v612, 64
        %v787 = vpop.permute.xlu0 %786
        %788 = vrot.lane.b32.xlu0 %v617, 64
        %v789 = vpop.permute.xlu0 %788
        %790 = vrot.lane.b32.xlu0 %v622, 64
        %v791 = vpop.permute.xlu0 %790
        %792 = vrot.lane.b32.xlu0 %v627, 64
        %v793 = vpop.permute.xlu0 %792
        %794 = vrot.lane.b32.xlu0 %v632, 64
        %v795 = vpop.permute.xlu0 %794
        %796 = vrot.lane.b32.xlu0 %v637, 64
        %v797 = vpop.permute.xlu0 %796
        %798 = vrot.lane.b32.xlu0 %v642, 64
        %v799 = vpop.permute.xlu0 %798
        %800 = vrot.lane.b32.xlu0 %v647, 64
        %v801 = vpop.permute.xlu0 %800
        %802 = vrot.lane.b32.xlu0 %v652, 64
        %v803 = vpop.permute.xlu0 %802
        %804 = vrot.lane.b32.xlu0 %v657, 64
        %v805 = vpop.permute.xlu0 %804
        %806 = vrot.lane.b32.xlu0 %v662, 64
        %v807 = vpop.permute.xlu0 %806
        %808 = vrot.lane.b32.xlu0 %v667, 64
        %v809 = vpop.permute.xlu0 %808
        %810 = vrot.lane.b32.xlu0 %v672, 64
        %v811 = vpop.permute.xlu0 %810
        %812 = vrot.lane.b32.xlu0 %v677, 64
        %v813 = vpop.permute.xlu0 %812
        %814 = vrot.lane.b32.xlu0 %v682, 64
        %v815 = vpop.permute.xlu0 %814
        %816 = vrot.lane.b32.xlu0 %v687, 64
        %v817 = vpop.permute.xlu0 %816
        %834 = vst.msk [vmem:[#allocation4] sm:$0xff] %vm496, %v787
        %835 = vst.msk [vmem:[#allocation4 + $0x8] sm:$0xff] %vm496, %v789
        %836 = vst.msk [vmem:[#allocation4 + $0x10] sm:$0xff] %vm496, %v791
        %837 = vst.msk [vmem:[#allocation4 + $0x18] sm:$0xff] %vm496, %v793
        %838 = vst.msk [vmem:[#allocation4 + $0x20] sm:$0xff] %vm496, %v795
        %839 = vst.msk [vmem:[#allocation4 + $0x28] sm:$0xff] %vm496, %v797
        %840 = vst.msk [vmem:[#allocation4 + $0x30] sm:$0xff] %vm496, %v799
        %841 = vst.msk [vmem:[#allocation4 + $0x38] sm:$0xff] %vm496, %v801
        %842 = vst.msk [vmem:[#allocation4 + $0x40] sm:$0xff] %vm496, %v803
        %843 = vst.msk [vmem:[#allocation4 + $0x48] sm:$0xff] %vm496, %v805
        %844 = vst.msk [vmem:[#allocation4 + $0x50] sm:$0xff] %vm496, %v807
        %845 = vst.msk [vmem:[#allocation4 + $0x58] sm:$0xff] %vm496, %v809
        %846 = vst.msk [vmem:[#allocation4 + $0x60] sm:$0xff] %vm496, %v811
        %847 = vst.msk [vmem:[#allocation4 + $0x68] sm:$0xff] %vm496, %v813
        %848 = vst.msk [vmem:[#allocation4 + $0x70] sm:$0xff] %vm496, %v815
        %849 = vst.msk [vmem:[#allocation4 + $0x78] sm:$0xff] %vm496, %v817
        %vm850 = vcmask 7168
        %851 = vst.msk [vmem:[#allocation5] sm:$0xff] %vm850, -inf
        %852 = vst.msk [vmem:[#allocation5 + $0x8] sm:$0xff] %vm850, -inf
        %853 = vst.msk [vmem:[#allocation5 + $0x10] sm:$0xff] %vm850, -inf
        %854 = vst.msk [vmem:[#allocation5 + $0x18] sm:$0xff] %vm850, -inf
        %855 = vst.msk [vmem:[#allocation5 + $0x20] sm:$0xff] %vm850, -inf
        %856 = vst.msk [vmem:[#allocation5 + $0x28] sm:$0xff] %vm850, -inf
        %857 = vst.msk [vmem:[#allocation5 + $0x30] sm:$0xff] %vm850, -inf
        %858 = vst.msk [vmem:[#allocation5 + $0x38] sm:$0xff] %vm850, -inf
        %859 = vst.msk [vmem:[#allocation5 + $0x40] sm:$0xff] %vm850, -inf
        %860 = vst.msk [vmem:[#allocation5 + $0x48] sm:$0xff] %vm850, -inf
        %861 = vst.msk [vmem:[#allocation5 + $0x50] sm:$0xff] %vm850, -inf
        %862 = vst.msk [vmem:[#allocation5 + $0x58] sm:$0xff] %vm850, -inf
        %863 = vst.msk [vmem:[#allocation5 + $0x60] sm:$0xff] %vm850, -inf
        %864 = vst.msk [vmem:[#allocation5 + $0x68] sm:$0xff] %vm850, -inf
        %865 = vst.msk [vmem:[#allocation5 + $0x70] sm:$0xff] %vm850, -inf
        %866 = vst.msk [vmem:[#allocation5 + $0x78] sm:$0xff] %vm850, -inf
        %867 = vst.msk [vmem:[#allocation6] sm:$0xff] %vm850, 0.0
        %868 = vst.msk [vmem:[#allocation6 + $0x8] sm:$0xff] %vm850, 0.0
        %869 = vst.msk [vmem:[#allocation6 + $0x10] sm:$0xff] %vm850, 0.0
        %870 = vst.msk [vmem:[#allocation6 + $0x18] sm:$0xff] %vm850, 0.0
        %871 = vst.msk [vmem:[#allocation6 + $0x20] sm:$0xff] %vm850, 0.0
        %872 = vst.msk [vmem:[#allocation6 + $0x28] sm:$0xff] %vm850, 0.0
        %873 = vst.msk [vmem:[#allocation6 + $0x30] sm:$0xff] %vm850, 0.0
        %874 = vst.msk [vmem:[#allocation6 + $0x38] sm:$0xff] %vm850, 0.0
        %875 = vst.msk [vmem:[#allocation6 + $0x40] sm:$0xff] %vm850, 0.0
        %876 = vst.msk [vmem:[#allocation6 + $0x48] sm:$0xff] %vm850, 0.0
        %877 = vst.msk [vmem:[#allocation6 + $0x50] sm:$0xff] %vm850, 0.0
        %878 = vst.msk [vmem:[#allocation6 + $0x58] sm:$0xff] %vm850, 0.0
        %879 = vst.msk [vmem:[#allocation6 + $0x60] sm:$0xff] %vm850, 0.0
        %880 = vst.msk [vmem:[#allocation6 + $0x68] sm:$0xff] %vm850, 0.0
        %881 = vst.msk [vmem:[#allocation6 + $0x70] sm:$0xff] %vm850, 0.0
        %882 = vst.msk [vmem:[#allocation6 + $0x78] sm:$0xff] %vm850, 0.0
        %883 = vst.msk [vmem:[#allocation7] sm:$0xff] %vm496, 0.0
        %884 = vst.msk [vmem:[#allocation7 + $0x8] sm:$0xff] %vm496, 0.0
        %885 = vst.msk [vmem:[#allocation7 + $0x10] sm:$0xff] %vm496, 0.0
        %886 = vst.msk [vmem:[#allocation7 + $0x18] sm:$0xff] %vm496, 0.0
        %887 = vst.msk [vmem:[#allocation7 + $0x20] sm:$0xff] %vm496, 0.0
        %888 = vst.msk [vmem:[#allocation7 + $0x28] sm:$0xff] %vm496, 0.0
        %889 = vst.msk [vmem:[#allocation7 + $0x30] sm:$0xff] %vm496, 0.0
        %890 = vst.msk [vmem:[#allocation7 + $0x38] sm:$0xff] %vm496, 0.0
        %891 = vst.msk [vmem:[#allocation7 + $0x40] sm:$0xff] %vm496, 0.0
        %892 = vst.msk [vmem:[#allocation7 + $0x48] sm:$0xff] %vm496, 0.0
        %893 = vst.msk [vmem:[#allocation7 + $0x50] sm:$0xff] %vm496, 0.0
        %894 = vst.msk [vmem:[#allocation7 + $0x58] sm:$0xff] %vm496, 0.0
        %895 = vst.msk [vmem:[#allocation7 + $0x60] sm:$0xff] %vm496, 0.0
        %896 = vst.msk [vmem:[#allocation7 + $0x68] sm:$0xff] %vm496, 0.0
        %897 = vst.msk [vmem:[#allocation7 + $0x70] sm:$0xff] %vm496, 0.0
        %898 = vst.msk [vmem:[#allocation7 + $0x78] sm:$0xff] %vm496, 0.0
      $region68: #{resunet_attention_module.2} parent=63 // pred_fallthru
        _
      %v899 = vld [vmem:[%s451] sm:$0xff]
      %v900 = vld [vmem:[%s451 + $0x8] sm:$0xff]
      %v901 = vld [vmem:[%s451 + $0x10] sm:$0xff]
      %v902 = vld [vmem:[%s451 + $0x18] sm:$0xff]
      %v903 = vld [vmem:[%s451 + $0x20] sm:$0xff]
      %v904 = vld [vmem:[%s451 + $0x28] sm:$0xff]
      %v905 = vld [vmem:[%s451 + $0x30] sm:$0xff]
      %v906 = vld [vmem:[%s451 + $0x38] sm:$0xff]
      %v907 = vld [vmem:[%s451 + $0x40] sm:$0xff]
      %v908 = vld [vmem:[%s451 + $0x48] sm:$0xff]
      %v909 = vld [vmem:[%s451 + $0x50] sm:$0xff]
      %v910 = vld [vmem:[%s451 + $0x58] sm:$0xff]
      %v911 = vld [vmem:[%s451 + $0x60] sm:$0xff]
      %v912 = vld [vmem:[%s451 + $0x68] sm:$0xff]
      %v913 = vld [vmem:[%s451 + $0x70] sm:$0xff]
      %v914 = vld [vmem:[%s451 + $0x78] sm:$0xff]
      %v915 = vld [vmem:[%s451 + $0x80] sm:$0xff]
      %v916 = vld [vmem:[%s451 + $0x88] sm:$0xff]
      %v917 = vld [vmem:[%s451 + $0x90] sm:$0xff]
      %v918 = vld [vmem:[%s451 + $0x98] sm:$0xff]
      %v919 = vld [vmem:[%s451 + $0xa0] sm:$0xff]
      %v920 = vld [vmem:[%s451 + $0xa8] sm:$0xff]
      %v921 = vld [vmem:[%s451 + $0xb0] sm:$0xff]
      %v922 = vld [vmem:[%s451 + $0xb8] sm:$0xff]
      %v923 = vld [vmem:[%s451 + $0xc0] sm:$0xff]
      %v924 = vld [vmem:[%s451 + $0xc8] sm:$0xff]
      %v925 = vld [vmem:[%s451 + $0xd0] sm:$0xff]
      %v926 = vld [vmem:[%s451 + $0xd8] sm:$0xff]
      %v927 = vld [vmem:[%s451 + $0xe0] sm:$0xff]
      %v928 = vld [vmem:[%s451 + $0xe8] sm:$0xff]
      %v929 = vld [vmem:[%s451 + $0xf0] sm:$0xff]
      %v930 = vld [vmem:[%s451 + $0xf8] sm:$0xff]
      %v931 = vld [vmem:[%s4] sm:$0xff]
      %v932 = vld [vmem:[%s4 + $0x8] sm:$0xff]
      %v933 = vld [vmem:[%s4 + $0x10] sm:$0xff]
      %v934 = vld [vmem:[%s4 + $0x18] sm:$0xff]
      %v935 = vld [vmem:[%s5] sm:$0x1]
      %v937 = vlaneseq
      %v938 = vshrl.u32 %v937, 7
      %v939 = vsub.s32 0, %v938
      %v940 = vrot.slane %v935, %v939
      %vm942 = vcmask 261120
      %v944 = vsel %vm942, %v899, 0
      %v947 = vsel %vm942, %v900, 0
      %v950 = vsel %vm942, %v901, 0
      %v953 = vsel %vm942, %v902, 0
      %v956 = vsel %vm942, %v903, 0
      %v959 = vsel %vm942, %v904, 0
      %v962 = vsel %vm942, %v905, 0
      %v965 = vsel %vm942, %v906, 0
      %v968 = vsel %vm942, %v907, 0
      %v971 = vsel %vm942, %v908, 0
      %v974 = vsel %vm942, %v909, 0
      %v977 = vsel %vm942, %v910, 0
      %v980 = vsel %vm942, %v911, 0
      %v983 = vsel %vm942, %v912, 0
      %v986 = vsel %vm942, %v913, 0
      %v989 = vsel %vm942, %v914, 0
      %v992 = vsel %vm942, %v915, 0
      %v995 = vsel %vm942, %v916, 0
      %v998 = vsel %vm942, %v917, 0
      %v1001 = vsel %vm942, %v918, 0
      %v1004 = vsel %vm942, %v919, 0
      %v1007 = vsel %vm942, %v920, 0
      %v1010 = vsel %vm942, %v921, 0
      %v1013 = vsel %vm942, %v922, 0
      %v1016 = vsel %vm942, %v923, 0
      %v1019 = vsel %vm942, %v924, 0
      %v1022 = vsel %vm942, %v925, 0
      %v1025 = vsel %vm942, %v926, 0
      %v1028 = vsel %vm942, %v927, 0
      %v1031 = vsel %vm942, %v928, 0
      %v1034 = vsel %vm942, %v929, 0
      %v1037 = vsel %vm942, %v930, 0
      %1039 = vmatprep.subr.mxu0 0.0
      %1040 = vmatpush1.msra.mxu0 %v931
      %1041 = vmatprep.subr.mxu0 0.0
      %1042 = vmatpush1.msra.mxu0 %v932
      %1043 = vmatprep.subr.mxu0 0.0
      %1044 = vmatpush1.msra.mxu0 %v933
      %1045 = vmatprep.subr.mxu0 0.0
      %1046 = vmatpush1.msra.mxu0 %v934
      %1047 = vmatprep.subr.mxu0 0.0
      %1048 = vmatpush1.msra.mxu0 0.0
      %1049 = vmatprep.subr.mxu0 0.0
      %1050 = vmatpush1.msra.mxu0 0.0
      %1051 = vmatprep.subr.mxu0 0.0
      %1052 = vmatpush1.msra.mxu0 0.0
      %1053 = vmatprep.subr.mxu0 0.0
      %1054 = vmatpush1.msra.mxu0 0.0
      %1055 = vmatprep.subr.mxu0 0.0
      %1056 = vmatpush1.msra.mxu0 0.0
      %1057 = vmatprep.subr.mxu0 0.0
      %1058 = vmatpush1.msra.mxu0 0.0
      %1059 = vmatprep.subr.mxu0 0.0
      %1060 = vmatpush1.msra.mxu0 0.0
      %1061 = vmatprep.subr.mxu0 0.0
      %1062 = vmatpush1.msra.mxu0 0.0
      %1063 = vmatprep.subr.mxu0 0.0
      %1064 = vmatpush1.msra.mxu0 0.0
      %1065 = vmatprep.subr.mxu0 0.0
      %1066 = vmatpush1.msra.mxu0 0.0
      %1067 = vmatprep.subr.mxu0 0.0
      %1068 = vmatpush1.msra.mxu0 0.0
      %1069 = vmatprep.subr.mxu0 0.0
      %1070 = vmatpush1.msra.mxu0 0.0
      %1071 = vmatprep.subr.mxu0 0.0
      %1072 = vmatpush1.msra.mxu0 0.0
      %1073 = vmatprep.subr.mxu0 0.0
      %1074 = vmatpush1.msra.mxu0 0.0
      %1075 = vmatprep.subr.mxu0 0.0
      %1076 = vmatpush1.msra.mxu0 0.0
      %1077 = vmatprep.subr.mxu0 0.0
      %1078 = vmatpush1.msra.mxu0 0.0
      %1079 = vmatprep.subr.mxu0 0.0
      %1080 = vmatpush1.msra.mxu0 0.0
      %1081 = vmatprep.subr.mxu0 0.0
      %1082 = vmatpush1.msra.mxu0 0.0
      %1083 = vmatprep.subr.mxu0 0.0
      %1084 = vmatpush1.msra.mxu0 0.0
      %1085 = vmatprep.subr.mxu0 0.0
      %1086 = vmatpush1.msra.mxu0 0.0
      %1087 = vmatprep.subr.mxu0 0.0
      %1088 = vmatpush1.msra.mxu0 0.0
      %1089 = vmatprep.subr.mxu0 0.0
      %1090 = vmatpush1.msra.mxu0 0.0
      %1091 = vmatprep.subr.mxu0 0.0
      %1092 = vmatpush1.msra.mxu0 0.0
      %1093 = vmatprep.subr.mxu0 0.0
      %1094 = vmatpush1.msra.mxu0 0.0
      %1095 = vmatprep.subr.mxu0 0.0
      %1096 = vmatpush1.msra.mxu0 0.0
      %1097 = vmatprep.subr.mxu0 0.0
      %1098 = vmatpush1.msra.mxu0 0.0
      %1099 = vmatprep.subr.mxu0 0.0
      %1100 = vmatpush1.msra.mxu0 0.0
      %1101 = vmatprep.subr.mxu0 0.0
      %1102 = vmatpush1.msra.mxu0 0.0
      %1103 = vmatprep.mubr.f32.mxu0 0.0
      %1104 = vmatmul.mubr.f32.gmra.mrb[0].mxu0 %v944
      %v1105 = vpop.f32.mrb[0].mxu0
      %v1106 = vadd.f32 %v940, %v1105
      %v1107 = vpop.f32.mrb[0].mxu0
      %1108 = vmatprep.mubr.f32.mxu0 0.0
      %1109 = vmatmul.mubr.f32.gmra.mrb[0].mxu0 %v947
      %v1110 = vpop.f32.mrb[0].mxu0
      %v1111 = vadd.f32 %v940, %v1110
      %v1112 = vpop.f32.mrb[0].mxu0
      %1113 = vmatprep.mubr.f32.mxu0 0.0
      %1114 = vmatmul.mubr.f32.gmra.mrb[0].mxu0 %v950
      %v1115 = vpop.f32.mrb[0].mxu0
      %v1116 = vadd.f32 %v940, %v1115
      %v1117 = vpop.f32.mrb[0].mxu0
      %1118 = vmatprep.mubr.f32.mxu0 0.0
      %1119 = vmatmul.mubr.f32.gmra.mrb[0].mxu0 %v953
      %v1120 = vpop.f32.mrb[0].mxu0
      %v1121 = vadd.f32 %v940, %v1120
      %v1122 = vpop.f32.mrb[0].mxu0
      %1123 = vmatprep.mubr.f32.mxu0 0.0
      %1124 = vmatmul.mubr.f32.gmra.mrb[0].mxu0 %v956
      %v1125 = vpop.f32.mrb[0].mxu0
      %v1126 = vadd.f32 %v940, %v1125
      %v1127 = vpop.f32.mrb[0].mxu0
      %1128 = vmatprep.mubr.f32.mxu0 0.0
      %1129 = vmatmul.mubr.f32.gmra.mrb[0].mxu0 %v959
      %v1130 = vpop.f32.mrb[0].mxu0
      %v1131 = vadd.f32 %v940, %v1130
      %v1132 = vpop.f32.mrb[0].mxu0
      %1133 = vmatprep.mubr.f32.mxu0 0.0
      %1134 = vmatmul.mubr.f32.gmra.mrb[0].mxu0 %v962
      %v1135 = vpop.f32.mrb[0].mxu0
      %v1136 = vadd.f32 %v940, %v1135
      %v1137 = vpop.f32.mrb[0].mxu0
      %1138 = vmatprep.mubr.f32.mxu0 0.0
      %1139 = vmatmul.mubr.f32.gmra.mrb[0].mxu0 %v965
      %v1140 = vpop.f32.mrb[0].mxu0
      %v1141 = vadd.f32 %v940, %v1140
      %v1142 = vpop.f32.mrb[0].mxu0
      %1143 = vmatprep.mubr.f32.mxu0 0.0
      %1144 = vmatmul.mubr.f32.gmra.mrb[0].mxu0 %v968
      %v1145 = vpop.f32.mrb[0].mxu0
      %v1146 = vadd.f32 %v940, %v1145
      %v1147 = vpop.f32.mrb[0].mxu0
      %1148 = vmatprep.mubr.f32.mxu0 0.0
      %1149 = vmatmul.mubr.f32.gmra.mrb[0].mxu0 %v971
      %v1150 = vpop.f32.mrb[0].mxu0
      %v1151 = vadd.f32 %v940, %v1150
      %v1152 = vpop.f32.mrb[0].mxu0
      %1153 = vmatprep.mubr.f32.mxu0 0.0
      %1154 = vmatmul.mubr.f32.gmra.mrb[0].mxu0 %v974
      %v1155 = vpop.f32.mrb[0].mxu0
      %v1156 = vadd.f32 %v940, %v1155
      %v1157 = vpop.f32.mrb[0].mxu0
      %1158 = vmatprep.mubr.f32.mxu0 0.0
      %1159 = vmatmul.mubr.f32.gmra.mrb[0].mxu0 %v977
      %v1160 = vpop.f32.mrb[0].mxu0
      %v1161 = vadd.f32 %v940, %v1160
      %v1162 = vpop.f32.mrb[0].mxu0
      %1163 = vmatprep.mubr.f32.mxu0 0.0
      %1164 = vmatmul.mubr.f32.gmra.mrb[0].mxu0 %v980
      %v1165 = vpop.f32.mrb[0].mxu0
      %v1166 = vadd.f32 %v940, %v1165
      %v1167 = vpop.f32.mrb[0].mxu0
      %1168 = vmatprep.mubr.f32.mxu0 0.0
      %1169 = vmatmul.mubr.f32.gmra.mrb[0].mxu0 %v983
      %v1170 = vpop.f32.mrb[0].mxu0
      %v1171 = vadd.f32 %v940, %v1170
      %v1172 = vpop.f32.mrb[0].mxu0
      %1173 = vmatprep.mubr.f32.mxu0 0.0
      %1174 = vmatmul.mubr.f32.gmra.mrb[0].mxu0 %v986
      %v1175 = vpop.f32.mrb[0].mxu0
      %v1176 = vadd.f32 %v940, %v1175
      %v1177 = vpop.f32.mrb[0].mxu0
      %1178 = vmatprep.mubr.f32.mxu0 0.0
      %1179 = vmatmul.mubr.f32.gmra.mrb[0].mxu0 %v989
      %v1180 = vpop.f32.mrb[0].mxu0
      %v1181 = vadd.f32 %v940, %v1180
      %v1182 = vpop.f32.mrb[0].mxu0
      %1183 = vmatprep.mubr.f32.mxu0 0.0
      %1184 = vmatmul.mubr.f32.gmra.mrb[0].mxu0 %v992
      %v1185 = vpop.f32.mrb[0].mxu0
      %v1186 = vadd.f32 %v940, %v1185
      %v1187 = vpop.f32.mrb[0].mxu0
      %1188 = vmatprep.mubr.f32.mxu0 0.0
      %1189 = vmatmul.mubr.f32.gmra.mrb[0].mxu0 %v995
      %v1190 = vpop.f32.mrb[0].mxu0
      %v1191 = vadd.f32 %v940, %v1190
      %v1192 = vpop.f32.mrb[0].mxu0
      %1193 = vmatprep.mubr.f32.mxu0 0.0
      %1194 = vmatmul.mubr.f32.gmra.mrb[0].mxu0 %v998
      %v1195 = vpop.f32.mrb[0].mxu0
      %v1196 = vadd.f32 %v940, %v1195
      %v1197 = vpop.f32.mrb[0].mxu0
      %1198 = vmatprep.mubr.f32.mxu0 0.0
      %1199 = vmatmul.mubr.f32.gmra.mrb[0].mxu0 %v1001
      %v1200 = vpop.f32.mrb[0].mxu0
      %v1201 = vadd.f32 %v940, %v1200
      %v1202 = vpop.f32.mrb[0].mxu0
      %1203 = vmatprep.mubr.f32.mxu0 0.0
      %1204 = vmatmul.mubr.f32.gmra.mrb[0].mxu0 %v1004
      %v1205 = vpop.f32.mrb[0].mxu0
      %v1206 = vadd.f32 %v940, %v1205
      %v1207 = vpop.f32.mrb[0].mxu0
      %1208 = vmatprep.mubr.f32.mxu0 0.0
      %1209 = vmatmul.mubr.f32.gmra.mrb[0].mxu0 %v1007
      %v1210 = vpop.f32.mrb[0].mxu0
      %v1211 = vadd.f32 %v940, %v1210
      %v1212 = vpop.f32.mrb[0].mxu0
      %1213 = vmatprep.mubr.f32.mxu0 0.0
      %1214 = vmatmul.mubr.f32.gmra.mrb[0].mxu0 %v1010
      %v1215 = vpop.f32.mrb[0].mxu0
      %v1216 = vadd.f32 %v940, %v1215
      %v1217 = vpop.f32.mrb[0].mxu0
      %1218 = vmatprep.mubr.f32.mxu0 0.0
      %1219 = vmatmul.mubr.f32.gmra.mrb[0].mxu0 %v1013
      %v1220 = vpop.f32.mrb[0].mxu0
      %v1221 = vadd.f32 %v940, %v1220
      %v1222 = vpop.f32.mrb[0].mxu0
      %1223 = vmatprep.mubr.f32.mxu0 0.0
      %1224 = vmatmul.mubr.f32.gmra.mrb[0].mxu0 %v1016
      %v1225 = vpop.f32.mrb[0].mxu0
      %v1226 = vadd.f32 %v940, %v1225
      %v1227 = vpop.f32.mrb[0].mxu0
      %1228 = vmatprep.mubr.f32.mxu0 0.0
      %1229 = vmatmul.mubr.f32.gmra.mrb[0].mxu0 %v1019
      %v1230 = vpop.f32.mrb[0].mxu0
      %v1231 = vadd.f32 %v940, %v1230
      %v1232 = vpop.f32.mrb[0].mxu0
      %1233 = vmatprep.mubr.f32.mxu0 0.0
      %1234 = vmatmul.mubr.f32.gmra.mrb[0].mxu0 %v1022
      %v1235 = vpop.f32.mrb[0].mxu0
      %v1236 = vadd.f32 %v940, %v1235
      %v1237 = vpop.f32.mrb[0].mxu0
      %1238 = vmatprep.mubr.f32.mxu0 0.0
      %1239 = vmatmul.mubr.f32.gmra.mrb[0].mxu0 %v1025
      %v1240 = vpop.f32.mrb[0].mxu0
      %v1241 = vadd.f32 %v940, %v1240
      %v1242 = vpop.f32.mrb[0].mxu0
      %1243 = vmatprep.mubr.f32.mxu0 0.0
      %1244 = vmatmul.mubr.f32.gmra.mrb[0].mxu0 %v1028
      %v1245 = vpop.f32.mrb[0].mxu0
      %v1246 = vadd.f32 %v940, %v1245
      %v1247 = vpop.f32.mrb[0].mxu0
      %1248 = vmatprep.mubr.f32.mxu0 0.0
      %1249 = vmatmul.mubr.f32.gmra.mrb[0].mxu0 %v1031
      %v1250 = vpop.f32.mrb[0].mxu0
      %v1251 = vadd.f32 %v940, %v1250
      %v1252 = vpop.f32.mrb[0].mxu0
      %1253 = vmatprep.mubr.f32.mxu0 0.0
      %1254 = vmatmul.mubr.f32.gmra.mrb[0].mxu0 %v1034
      %v1255 = vpop.f32.mrb[0].mxu0
      %v1256 = vadd.f32 %v940, %v1255
      %v1257 = vpop.f32.mrb[0].mxu0
      %1258 = vmatprep.mubr.f32.mxu0 0.0
      %1259 = vmatmul.mubr.f32.gmra.mrb[0].mxu0 %v1037
      %v1260 = vpop.f32.mrb[0].mxu0
      %v1261 = vadd.f32 %v940, %v1260
      %v1262 = vpop.f32.mrb[0].mxu0
      %1263 = vdwg.mxu0
      %v1264 = vld [vmem:[#allocation2] sm:$0xff]
      %v1265 = vld [vmem:[#allocation2 + $0x8] sm:$0xff]
      %v1266 = vld [vmem:[#allocation2 + $0x10] sm:$0xff]
      %v1267 = vld [vmem:[#allocation2 + $0x18] sm:$0xff]
      %v1268 = vld [vmem:[#allocation2 + $0x20] sm:$0xff]
      %v1269 = vld [vmem:[#allocation2 + $0x28] sm:$0xff]
      %v1270 = vld [vmem:[#allocation2 + $0x30] sm:$0xff]
      %v1271 = vld [vmem:[#allocation2 + $0x38] sm:$0xff]
      %v1272 = vld [vmem:[#allocation2 + $0x40] sm:$0xff]
      %v1273 = vld [vmem:[#allocation2 + $0x48] sm:$0xff]
      %v1274 = vld [vmem:[#allocation2 + $0x50] sm:$0xff]
      %v1275 = vld [vmem:[#allocation2 + $0x58] sm:$0xff]
      %v1276 = vld [vmem:[#allocation2 + $0x60] sm:$0xff]
      %v1277 = vld [vmem:[#allocation2 + $0x68] sm:$0xff]
      %v1278 = vld [vmem:[#allocation2 + $0x70] sm:$0xff]
      %v1279 = vld [vmem:[#allocation2 + $0x78] sm:$0xff]
      %v1281 = vsel %vm942, %v1264, 0
      %v1284 = vsel %vm942, %v1265, 0
      %v1287 = vsel %vm942, %v1266, 0
      %v1290 = vsel %vm942, %v1267, 0
      %v1293 = vsel %vm942, %v1268, 0
      %v1296 = vsel %vm942, %v1269, 0
      %v1299 = vsel %vm942, %v1270, 0
      %v1302 = vsel %vm942, %v1271, 0
      %v1305 = vsel %vm942, %v1272, 0
      %v1308 = vsel %vm942, %v1273, 0
      %v1311 = vsel %vm942, %v1274, 0
      %v1314 = vsel %vm942, %v1275, 0
      %v1317 = vsel %vm942, %v1276, 0
      %v1320 = vsel %vm942, %v1277, 0
      %v1323 = vsel %vm942, %v1278, 0
      %v1326 = vsel %vm942, %v1279, 0
      %v1329 = vsel %vm942, %v1106, 0
      %v1332 = vsel %vm942, %v1111, 0
      %v1335 = vsel %vm942, %v1116, 0
      %v1338 = vsel %vm942, %v1121, 0
      %v1341 = vsel %vm942, %v1126, 0
      %v1344 = vsel %vm942, %v1131, 0
      %v1347 = vsel %vm942, %v1136, 0
      %v1350 = vsel %vm942, %v1141, 0
      %v1353 = vsel %vm942, %v1146, 0
      %v1356 = vsel %vm942, %v1151, 0
      %v1359 = vsel %vm942, %v1156, 0
      %v1362 = vsel %vm942, %v1161, 0
      %v1365 = vsel %vm942, %v1166, 0
      %v1368 = vsel %vm942, %v1171, 0
      %v1371 = vsel %vm942, %v1176, 0
      %v1374 = vsel %vm942, %v1181, 0
      %v1377 = vsel %vm942, %v1186, 0
      %v1380 = vsel %vm942, %v1191, 0
      %v1383 = vsel %vm942, %v1196, 0
      %v1386 = vsel %vm942, %v1201, 0
      %v1389 = vsel %vm942, %v1206, 0
      %v1392 = vsel %vm942, %v1211, 0
      %v1395 = vsel %vm942, %v1216, 0
      %v1398 = vsel %vm942, %v1221, 0
      %v1401 = vsel %vm942, %v1226, 0
      %v1404 = vsel %vm942, %v1231, 0
      %v1407 = vsel %vm942, %v1236, 0
      %v1410 = vsel %vm942, %v1241, 0
      %v1413 = vsel %vm942, %v1246, 0
      %v1416 = vsel %vm942, %v1251, 0
      %v1419 = vsel %vm942, %v1256, 0
      %v1422 = vsel %vm942, %v1261, 0
      %1424 = vmatprep.subr.mxu0 0.0
      %1425 = vmatpush1.xpose.msra.mxu0 %v1329
      %1426 = vmatprep.subr.mxu0 0.0
      %1427 = vmatpush1.xpose.msra.mxu0 %v1332
      %1428 = vmatprep.subr.mxu0 0.0
      %1429 = vmatpush1.xpose.msra.mxu0 %v1335
      %1430 = vmatprep.subr.mxu0 0.0
      %1431 = vmatpush1.xpose.msra.mxu0 %v1338
      %1432 = vmatprep.subr.mxu0 0.0
      %1433 = vmatpush1.xpose.msra.mxu0 %v1341
      %1434 = vmatprep.subr.mxu0 0.0
      %1435 = vmatpush1.xpose.msra.mxu0 %v1344
      %1436 = vmatprep.subr.mxu0 0.0
      %1437 = vmatpush1.xpose.msra.mxu0 %v1347
      %1438 = vmatprep.subr.mxu0 0.0
      %1439 = vmatpush1.xpose.msra.mxu0 %v1350
      %1440 = vmatprep.subr.mxu0 0.0
      %1441 = vmatpush1.xpose.msra.mxu0 %v1353
      %1442 = vmatprep.subr.mxu0 0.0
      %1443 = vmatpush1.xpose.msra.mxu0 %v1356
      %1444 = vmatprep.subr.mxu0 0.0
      %1445 = vmatpush1.xpose.msra.mxu0 %v1359
      %1446 = vmatprep.subr.mxu0 0.0
      %1447 = vmatpush1.xpose.msra.mxu0 %v1362
      %1448 = vmatprep.subr.mxu0 0.0
      %1449 = vmatpush1.xpose.msra.mxu0 %v1365
      %1450 = vmatprep.subr.mxu0 0.0
      %1451 = vmatpush1.xpose.msra.mxu0 %v1368
      %1452 = vmatprep.subr.mxu0 0.0
      %1453 = vmatpush1.xpose.msra.mxu0 %v1371
      %1454 = vmatprep.subr.mxu0 0.0
      %1455 = vmatpush1.xpose.msra.mxu0 %v1374
      %1456 = vmatprep.subr.mxu0 0.0
      %1457 = vmatpush1.xpose.msra.mxu0 %v1377
      %1458 = vmatprep.subr.mxu0 0.0
      %1459 = vmatpush1.xpose.msra.mxu0 %v1380
      %1460 = vmatprep.subr.mxu0 0.0
      %1461 = vmatpush1.xpose.msra.mxu0 %v1383
      %1462 = vmatprep.subr.mxu0 0.0
      %1463 = vmatpush1.xpose.msra.mxu0 %v1386
      %1464 = vmatprep.subr.mxu0 0.0
      %1465 = vmatpush1.xpose.msra.mxu0 %v1389
      %1466 = vmatprep.subr.mxu0 0.0
      %1467 = vmatpush1.xpose.msra.mxu0 %v1392
      %1468 = vmatprep.subr.mxu0 0.0
      %1469 = vmatpush1.xpose.msra.mxu0 %v1395
      %1470 = vmatprep.subr.mxu0 0.0
      %1471 = vmatpush1.xpose.msra.mxu0 %v1398
      %1472 = vmatprep.subr.mxu0 0.0
      %1473 = vmatpush1.xpose.msra.mxu0 %v1401
      %1474 = vmatprep.subr.mxu0 0.0
      %1475 = vmatpush1.xpose.msra.mxu0 %v1404
      %1476 = vmatprep.subr.mxu0 0.0
      %1477 = vmatpush1.xpose.msra.mxu0 %v1407
      %1478 = vmatprep.subr.mxu0 0.0
      %1479 = vmatpush1.xpose.msra.mxu0 %v1410
      %1480 = vmatprep.subr.mxu0 0.0
      %1481 = vmatpush1.xpose.msra.mxu0 %v1413
      %1482 = vmatprep.subr.mxu0 0.0
      %1483 = vmatpush1.xpose.msra.mxu0 %v1416
      %1484 = vmatprep.subr.mxu0 0.0
      %1485 = vmatpush1.xpose.msra.mxu0 %v1419
      %1486 = vmatprep.subr.mxu0 0.0
      %1487 = vmatpush1.xpose.msra.mxu0 %v1422
      %1488 = vmatprep.mubr.f32.mxu0 0.0
      %1489 = vmatmul.mubr.f32.gmra.mrb[0].mxu0 %v1281
      %v1490 = vpop.f32.mrb[0].mxu0
      %v1491 = vadd.f32 0.0, %v1490
      %v1492 = vpop.f32.mrb[0].mxu0
      %v1493 = vadd.f32 0.0, %v1492
      %1494 = vmatprep.mubr.f32.mxu0 0.0
      %1495 = vmatmul.mubr.f32.gmra.mrb[0].mxu0 %v1284
      %v1496 = vpop.f32.mrb[0].mxu0
      %v1497 = vadd.f32 0.0, %v1496
      %v1498 = vpop.f32.mrb[0].mxu0
      %v1499 = vadd.f32 0.0, %v1498
      %1500 = vmatprep.mubr.f32.mxu0 0.0
      %1501 = vmatmul.mubr.f32.gmra.mrb[0].mxu0 %v1287
      %v1502 = vpop.f32.mrb[0].mxu0
      %v1503 = vadd.f32 0.0, %v1502
      %v1504 = vpop.f32.mrb[0].mxu0
      %v1505 = vadd.f32 0.0, %v1504
      %1506 = vmatprep.mubr.f32.mxu0 0.0
      %1507 = vmatmul.mubr.f32.gmra.mrb[0].mxu0 %v1290
      %v1508 = vpop.f32.mrb[0].mxu0
      %v1509 = vadd.f32 0.0, %v1508
      %v1510 = vpop.f32.mrb[0].mxu0
      %v1511 = vadd.f32 0.0, %v1510
      %1512 = vmatprep.mubr.f32.mxu0 0.0
      %1513 = vmatmul.mubr.f32.gmra.mrb[0].mxu0 %v1293
      %v1514 = vpop.f32.mrb[0].mxu0
      %v1515 = vadd.f32 0.0, %v1514
      %v1516 = vpop.f32.mrb[0].mxu0
      %v1517 = vadd.f32 0.0, %v1516
      %1518 = vmatprep.mubr.f32.mxu0 0.0
      %1519 = vmatmul.mubr.f32.gmra.mrb[0].mxu0 %v1296
      %v1520 = vpop.f32.mrb[0].mxu0
      %v1521 = vadd.f32 0.0, %v1520
      %v1522 = vpop.f32.mrb[0].mxu0
      %v1523 = vadd.f32 0.0, %v1522
      %1524 = vmatprep.mubr.f32.mxu0 0.0
      %1525 = vmatmul.mubr.f32.gmra.mrb[0].mxu0 %v1299
      %v1526 = vpop.f32.mrb[0].mxu0
      %v1527 = vadd.f32 0.0, %v1526
      %v1528 = vpop.f32.mrb[0].mxu0
      %v1529 = vadd.f32 0.0, %v1528
      %1530 = vmatprep.mubr.f32.mxu0 0.0
      %1531 = vmatmul.mubr.f32.gmra.mrb[0].mxu0 %v1302
      %v1532 = vpop.f32.mrb[0].mxu0
      %v1533 = vadd.f32 0.0, %v1532
      %v1534 = vpop.f32.mrb[0].mxu0
      %v1535 = vadd.f32 0.0, %v1534
      %1536 = vmatprep.mubr.f32.mxu0 0.0
      %1537 = vmatmul.mubr.f32.gmra.mrb[0].mxu0 %v1305
      %v1538 = vpop.f32.mrb[0].mxu0
      %v1539 = vadd.f32 0.0, %v1538
      %v1540 = vpop.f32.mrb[0].mxu0
      %v1541 = vadd.f32 0.0, %v1540
      %1542 = vmatprep.mubr.f32.mxu0 0.0
      %1543 = vmatmul.mubr.f32.gmra.mrb[0].mxu0 %v1308
      %v1544 = vpop.f32.mrb[0].mxu0
      %v1545 = vadd.f32 0.0, %v1544
      %v1546 = vpop.f32.mrb[0].mxu0
      %v1547 = vadd.f32 0.0, %v1546
      %1548 = vmatprep.mubr.f32.mxu0 0.0
      %1549 = vmatmul.mubr.f32.gmra.mrb[0].mxu0 %v1311
      %v1550 = vpop.f32.mrb[0].mxu0
      %v1551 = vadd.f32 0.0, %v1550
      %v1552 = vpop.f32.mrb[0].mxu0
      %v1553 = vadd.f32 0.0, %v1552
      %1554 = vmatprep.mubr.f32.mxu0 0.0
      %1555 = vmatmul.mubr.f32.gmra.mrb[0].mxu0 %v1314
      %v1556 = vpop.f32.mrb[0].mxu0
      %v1557 = vadd.f32 0.0, %v1556
      %v1558 = vpop.f32.mrb[0].mxu0
      %v1559 = vadd.f32 0.0, %v1558
      %1560 = vmatprep.mubr.f32.mxu0 0.0
      %1561 = vmatmul.mubr.f32.gmra.mrb[0].mxu0 %v1317
      %v1562 = vpop.f32.mrb[0].mxu0
      %v1563 = vadd.f32 0.0, %v1562
      %v1564 = vpop.f32.mrb[0].mxu0
      %v1565 = vadd.f32 0.0, %v1564
      %1566 = vmatprep.mubr.f32.mxu0 0.0
      %1567 = vmatmul.mubr.f32.gmra.mrb[0].mxu0 %v1320
      %v1568 = vpop.f32.mrb[0].mxu0
      %v1569 = vadd.f32 0.0, %v1568
      %v1570 = vpop.f32.mrb[0].mxu0
      %v1571 = vadd.f32 0.0, %v1570
      %1572 = vmatprep.mubr.f32.mxu0 0.0
      %1573 = vmatmul.mubr.f32.gmra.mrb[0].mxu0 %v1323
      %v1574 = vpop.f32.mrb[0].mxu0
      %v1575 = vadd.f32 0.0, %v1574
      %v1576 = vpop.f32.mrb[0].mxu0
      %v1577 = vadd.f32 0.0, %v1576
      %1578 = vmatprep.mubr.f32.mxu0 0.0
      %1579 = vmatmul.mubr.f32.gmra.mrb[0].mxu0 %v1326
      %v1580 = vpop.f32.mrb[0].mxu0
      %v1581 = vadd.f32 0.0, %v1580
      %v1582 = vpop.f32.mrb[0].mxu0
      %v1583 = vadd.f32 0.0, %v1582
      %1584 = vdwg.mxu0
      %v1585 = vmul.f32 %v1491, 0.17677669
      %v1586 = vmul.f32 %v1493, 0.17677669
      %v1587 = vmul.f32 %v1497, 0.17677669
      %v1588 = vmul.f32 %v1499, 0.17677669
      %v1589 = vmul.f32 %v1503, 0.17677669
      %v1590 = vmul.f32 %v1505, 0.17677669
      %v1591 = vmul.f32 %v1509, 0.17677669
      %v1592 = vmul.f32 %v1511, 0.17677669
      %v1593 = vmul.f32 %v1515, 0.17677669
      %v1594 = vmul.f32 %v1517, 0.17677669
      %v1595 = vmul.f32 %v1521, 0.17677669
      %v1596 = vmul.f32 %v1523, 0.17677669
      %v1597 = vmul.f32 %v1527, 0.17677669
      %v1598 = vmul.f32 %v1529, 0.17677669
      %v1599 = vmul.f32 %v1533, 0.17677669
      %v1600 = vmul.f32 %v1535, 0.17677669
      %v1601 = vmul.f32 %v1539, 0.17677669
      %v1602 = vmul.f32 %v1541, 0.17677669
      %v1603 = vmul.f32 %v1545, 0.17677669
      %v1604 = vmul.f32 %v1547, 0.17677669
      %v1605 = vmul.f32 %v1551, 0.17677669
      %v1606 = vmul.f32 %v1553, 0.17677669
      %v1607 = vmul.f32 %v1557, 0.17677669
      %v1608 = vmul.f32 %v1559, 0.17677669
      %v1609 = vmul.f32 %v1563, 0.17677669
      %v1610 = vmul.f32 %v1565, 0.17677669
      %v1611 = vmul.f32 %v1569, 0.17677669
      %v1612 = vmul.f32 %v1571, 0.17677669
      %v1613 = vmul.f32 %v1575, 0.17677669
      %v1614 = vmul.f32 %v1577, 0.17677669
      %v1615 = vmul.f32 %v1581, 0.17677669
      %v1616 = vmul.f32 %v1583, 0.17677669
      %v1617 = vld [vmem:[#allocation5] sm:$0xff]
      %v1618 = vld [vmem:[#allocation5 + $0x8] sm:$0xff]
      %v1619 = vld [vmem:[#allocation5 + $0x10] sm:$0xff]
      %v1620 = vld [vmem:[#allocation5 + $0x18] sm:$0xff]
      %v1621 = vld [vmem:[#allocation5 + $0x20] sm:$0xff]
      %v1622 = vld [vmem:[#allocation5 + $0x28] sm:$0xff]
      %v1623 = vld [vmem:[#allocation5 + $0x30] sm:$0xff]
      %v1624 = vld [vmem:[#allocation5 + $0x38] sm:$0xff]
      %v1625 = vld [vmem:[#allocation5 + $0x40] sm:$0xff]
      %v1626 = vld [vmem:[#allocation5 + $0x48] sm:$0xff]
      %v1627 = vld [vmem:[#allocation5 + $0x50] sm:$0xff]
      %v1628 = vld [vmem:[#allocation5 + $0x58] sm:$0xff]
      %v1629 = vld [vmem:[#allocation5 + $0x60] sm:$0xff]
      %v1630 = vld [vmem:[#allocation5 + $0x68] sm:$0xff]
      %v1631 = vld [vmem:[#allocation5 + $0x70] sm:$0xff]
      %v1632 = vld [vmem:[#allocation5 + $0x78] sm:$0xff]
      %v1633 = vmax.f32 %v1585, %v1586
      %1634 = vmax.xlane.f32.xlu0 %v1633
      %v1635 = vpop.xlane.xlu0 %1634
      %v1636 = vmax.f32 %v1587, %v1588
      %1637 = vmax.xlane.f32.xlu0 %v1636
      %v1638 = vpop.xlane.xlu0 %1637
      %v1639 = vmax.f32 %v1589, %v1590
      %1640 = vmax.xlane.f32.xlu0 %v1639
      %v1641 = vpop.xlane.xlu0 %1640
      %v1642 = vmax.f32 %v1591, %v1592
      %1643 = vmax.xlane.f32.xlu0 %v1642
      %v1644 = vpop.xlane.xlu0 %1643
      %v1645 = vmax.f32 %v1593, %v1594
      %1646 = vmax.xlane.f32.xlu0 %v1645
      %v1647 = vpop.xlane.xlu0 %1646
      %v1648 = vmax.f32 %v1595, %v1596
      %1649 = vmax.xlane.f32.xlu0 %v1648
      %v1650 = vpop.xlane.xlu0 %1649
      %v1651 = vmax.f32 %v1597, %v1598
      %1652 = vmax.xlane.f32.xlu0 %v1651
      %v1653 = vpop.xlane.xlu0 %1652
      %v1654 = vmax.f32 %v1599, %v1600
      %1655 = vmax.xlane.f32.xlu0 %v1654
      %v1656 = vpop.xlane.xlu0 %1655
      %v1657 = vmax.f32 %v1601, %v1602
      %1658 = vmax.xlane.f32.xlu0 %v1657
      %v1659 = vpop.xlane.xlu0 %1658
      %v1660 = vmax.f32 %v1603, %v1604
      %1661 = vmax.xlane.f32.xlu0 %v1660
      %v1662 = vpop.xlane.xlu0 %1661
      %v1663 = vmax.f32 %v1605, %v1606
      %1664 = vmax.xlane.f32.xlu0 %v1663
      %v1665 = vpop.xlane.xlu0 %1664
      %v1666 = vmax.f32 %v1607, %v1608
      %1667 = vmax.xlane.f32.xlu0 %v1666
      %v1668 = vpop.xlane.xlu0 %1667
      %v1669 = vmax.f32 %v1609, %v1610
      %1670 = vmax.xlane.f32.xlu0 %v1669
      %v1671 = vpop.xlane.xlu0 %1670
      %v1672 = vmax.f32 %v1611, %v1612
      %1673 = vmax.xlane.f32.xlu0 %v1672
      %v1674 = vpop.xlane.xlu0 %1673
      %v1675 = vmax.f32 %v1613, %v1614
      %1676 = vmax.xlane.f32.xlu0 %v1675
      %v1677 = vpop.xlane.xlu0 %1676
      %v1678 = vmax.f32 %v1615, %v1616
      %1679 = vmax.xlane.f32.xlu0 %v1678
      %v1680 = vpop.xlane.xlu0 %1679
      %v1681 = vmax.f32 %v1617, %v1635
      %v1682 = vmax.f32 %v1618, %v1638
      %v1683 = vmax.f32 %v1619, %v1641
      %v1684 = vmax.f32 %v1620, %v1644
      %v1685 = vmax.f32 %v1621, %v1647
      %v1686 = vmax.f32 %v1622, %v1650
      %v1687 = vmax.f32 %v1623, %v1653
      %v1688 = vmax.f32 %v1624, %v1656
      %v1689 = vmax.f32 %v1625, %v1659
      %v1690 = vmax.f32 %v1626, %v1662
      %v1691 = vmax.f32 %v1627, %v1665
      %v1692 = vmax.f32 %v1628, %v1668
      %v1693 = vmax.f32 %v1629, %v1671
      %v1694 = vmax.f32 %v1630, %v1674
      %v1695 = vmax.f32 %v1631, %v1677
      %v1696 = vmax.f32 %v1632, %v1680
      %v1697 = vsub.f32 %v1617, %v1681
      %v1698 = vsub.f32 %v1618, %v1682
      %v1699 = vsub.f32 %v1619, %v1683
      %v1700 = vsub.f32 %v1620, %v1684
      %v1701 = vsub.f32 %v1621, %v1685
      %v1702 = vsub.f32 %v1622, %v1686
      %v1703 = vsub.f32 %v1623, %v1687
      %v1704 = vsub.f32 %v1624, %v1688
      %v1705 = vsub.f32 %v1625, %v1689
      %v1706 = vsub.f32 %v1626, %v1690
      %v1707 = vsub.f32 %v1627, %v1691
      %v1708 = vsub.f32 %v1628, %v1692
      %v1709 = vsub.f32 %v1629, %v1693
      %v1710 = vsub.f32 %v1630, %v1694
      %v1711 = vsub.f32 %v1631, %v1695
      %v1712 = vsub.f32 %v1632, %v1696
      %v1713 = vmul.f32 %v1697, 1.442695
      %v1714 = vpow.pop %v1713
      %v1715 = vmul.f32 %v1698, 1.442695
      %v1716 = vpow.pop %v1715
      %v1717 = vmul.f32 %v1699, 1.442695
      %v1718 = vpow.pop %v1717
      %v1719 = vmul.f32 %v1700, 1.442695
      %v1720 = vpow.pop %v1719
      %v1721 = vmul.f32 %v1701, 1.442695
      %v1722 = vpow.pop %v1721
      %v1723 = vmul.f32 %v1702, 1.442695
      %v1724 = vpow.pop %v1723
      %v1725 = vmul.f32 %v1703, 1.442695
      %v1726 = vpow.pop %v1725
      %v1727 = vmul.f32 %v1704, 1.442695
      %v1728 = vpow.pop %v1727
      %v1729 = vmul.f32 %v1705, 1.442695
      %v1730 = vpow.pop %v1729
      %v1731 = vmul.f32 %v1706, 1.442695
      %v1732 = vpow.pop %v1731
      %v1733 = vmul.f32 %v1707, 1.442695
      %v1734 = vpow.pop %v1733
      %v1735 = vmul.f32 %v1708, 1.442695
      %v1736 = vpow.pop %v1735
      %v1737 = vmul.f32 %v1709, 1.442695
      %v1738 = vpow.pop %v1737
      %v1739 = vmul.f32 %v1710, 1.442695
      %v1740 = vpow.pop %v1739
      %v1741 = vmul.f32 %v1711, 1.442695
      %v1742 = vpow.pop %v1741
      %v1743 = vmul.f32 %v1712, 1.442695
      %v1744 = vpow.pop %v1743
      %1746 = vset.pattern.permute.xlu0 0
      %1747 = vperm.xlu0 %1746, %v1681
      %v1748 = vpop.permute.xlu0 %1747
      %1751 = vset.pattern.permute.xlu0 0
      %1752 = vperm.xlu0 %1751, %v1682
      %v1753 = vpop.permute.xlu0 %1752
      %1756 = vset.pattern.permute.xlu0 0
      %1757 = vperm.xlu0 %1756, %v1683
      %v1758 = vpop.permute.xlu0 %1757
      %1761 = vset.pattern.permute.xlu0 0
      %1762 = vperm.xlu0 %1761, %v1684
      %v1763 = vpop.permute.xlu0 %1762
      %1766 = vset.pattern.permute.xlu0 0
      %1767 = vperm.xlu0 %1766, %v1685
      %v1768 = vpop.permute.xlu0 %1767
      %1771 = vset.pattern.permute.xlu0 0
      %1772 = vperm.xlu0 %1771, %v1686
      %v1773 = vpop.permute.xlu0 %1772
      %1776 = vset.pattern.permute.xlu0 0
      %1777 = vperm.xlu0 %1776, %v1687
      %v1778 = vpop.permute.xlu0 %1777
      %1781 = vset.pattern.permute.xlu0 0
      %1782 = vperm.xlu0 %1781, %v1688
      %v1783 = vpop.permute.xlu0 %1782
      %1786 = vset.pattern.permute.xlu0 0
      %1787 = vperm.xlu0 %1786, %v1689
      %v1788 = vpop.permute.xlu0 %1787
      %1791 = vset.pattern.permute.xlu0 0
      %1792 = vperm.xlu0 %1791, %v1690
      %v1793 = vpop.permute.xlu0 %1792
      %1796 = vset.pattern.permute.xlu0 0
      %1797 = vperm.xlu0 %1796, %v1691
      %v1798 = vpop.permute.xlu0 %1797
      %1801 = vset.pattern.permute.xlu0 0
      %1802 = vperm.xlu0 %1801, %v1692
      %v1803 = vpop.permute.xlu0 %1802
      %1806 = vset.pattern.permute.xlu0 0
      %1807 = vperm.xlu0 %1806, %v1693
      %v1808 = vpop.permute.xlu0 %1807
      %1811 = vset.pattern.permute.xlu0 0
      %1812 = vperm.xlu0 %1811, %v1694
      %v1813 = vpop.permute.xlu0 %1812
      %1816 = vset.pattern.permute.xlu0 0
      %1817 = vperm.xlu0 %1816, %v1695
      %v1818 = vpop.permute.xlu0 %1817
      %1821 = vset.pattern.permute.xlu0 0
      %1822 = vperm.xlu0 %1821, %v1696
      %v1823 = vpop.permute.xlu0 %1822
      %v1825 = vsub.f32 %v1585, %v1748
      %v1826 = vsub.f32 %v1586, %v1748
      %v1827 = vsub.f32 %v1587, %v1753
      %v1828 = vsub.f32 %v1588, %v1753
      %v1829 = vsub.f32 %v1589, %v1758
      %v1830 = vsub.f32 %v1590, %v1758
      %v1831 = vsub.f32 %v1591, %v1763
      %v1832 = vsub.f32 %v1592, %v1763
      %v1833 = vsub.f32 %v1593, %v1768
      %v1834 = vsub.f32 %v1594, %v1768
      %v1835 = vsub.f32 %v1595, %v1773
      %v1836 = vsub.f32 %v1596, %v1773
      %v1837 = vsub.f32 %v1597, %v1778
      %v1838 = vsub.f32 %v1598, %v1778
      %v1839 = vsub.f32 %v1599, %v1783
      %v1840 = vsub.f32 %v1600, %v1783
      %v1841 = vsub.f32 %v1601, %v1788
      %v1842 = vsub.f32 %v1602, %v1788
      %v1843 = vsub.f32 %v1603, %v1793
      %v1844 = vsub.f32 %v1604, %v1793
      %v1845 = vsub.f32 %v1605, %v1798
      %v1846 = vsub.f32 %v1606, %v1798
      %v1847 = vsub.f32 %v1607, %v1803
      %v1848 = vsub.f32 %v1608, %v1803
      %v1849 = vsub.f32 %v1609, %v1808
      %v1850 = vsub.f32 %v1610, %v1808
      %v1851 = vsub.f32 %v1611, %v1813
      %v1852 = vsub.f32 %v1612, %v1813
      %v1853 = vsub.f32 %v1613, %v1818
      %v1854 = vsub.f32 %v1614, %v1818
      %v1855 = vsub.f32 %v1615, %v1823
      %v1856 = vsub.f32 %v1616, %v1823
      %v1857 = vmul.f32 %v1825, 1.442695
      %v1858 = vpow.pop %v1857
      %v1859 = vmul.f32 %v1826, 1.442695
      %v1860 = vpow.pop %v1859
      %v1861 = vmul.f32 %v1827, 1.442695
      %v1862 = vpow.pop %v1861
      %v1863 = vmul.f32 %v1828, 1.442695
      %v1864 = vpow.pop %v1863
      %v1865 = vmul.f32 %v1829, 1.442695
      %v1866 = vpow.pop %v1865
      %v1867 = vmul.f32 %v1830, 1.442695
      %v1868 = vpow.pop %v1867
      %v1869 = vmul.f32 %v1831, 1.442695
      %v1870 = vpow.pop %v1869
      %v1871 = vmul.f32 %v1832, 1.442695
      %v1872 = vpow.pop %v1871
      %v1873 = vmul.f32 %v1833, 1.442695
      %v1874 = vpow.pop %v1873
      %v1875 = vmul.f32 %v1834, 1.442695
      %v1876 = vpow.pop %v1875
      %v1877 = vmul.f32 %v1835, 1.442695
      %v1878 = vpow.pop %v1877
      %v1879 = vmul.f32 %v1836, 1.442695
      %v1880 = vpow.pop %v1879
      %v1881 = vmul.f32 %v1837, 1.442695
      %v1882 = vpow.pop %v1881
      %v1883 = vmul.f32 %v1838, 1.442695
      %v1884 = vpow.pop %v1883
      %v1885 = vmul.f32 %v1839, 1.442695
      %v1886 = vpow.pop %v1885
      %v1887 = vmul.f32 %v1840, 1.442695
      %v1888 = vpow.pop %v1887
      %v1889 = vmul.f32 %v1841, 1.442695
      %v1890 = vpow.pop %v1889
      %v1891 = vmul.f32 %v1842, 1.442695
      %v1892 = vpow.pop %v1891
      %v1893 = vmul.f32 %v1843, 1.442695
      %v1894 = vpow.pop %v1893
      %v1895 = vmul.f32 %v1844, 1.442695
      %v1896 = vpow.pop %v1895
      %v1897 = vmul.f32 %v1845, 1.442695
      %v1898 = vpow.pop %v1897
      %v1899 = vmul.f32 %v1846, 1.442695
      %v1900 = vpow.pop %v1899
      %v1901 = vmul.f32 %v1847, 1.442695
      %v1902 = vpow.pop %v1901
      %v1903 = vmul.f32 %v1848, 1.442695
      %v1904 = vpow.pop %v1903
      %v1905 = vmul.f32 %v1849, 1.442695
      %v1906 = vpow.pop %v1905
      %v1907 = vmul.f32 %v1850, 1.442695
      %v1908 = vpow.pop %v1907
      %v1909 = vmul.f32 %v1851, 1.442695
      %v1910 = vpow.pop %v1909
      %v1911 = vmul.f32 %v1852, 1.442695
      %v1912 = vpow.pop %v1911
      %v1913 = vmul.f32 %v1853, 1.442695
      %v1914 = vpow.pop %v1913
      %v1915 = vmul.f32 %v1854, 1.442695
      %v1916 = vpow.pop %v1915
      %v1917 = vmul.f32 %v1855, 1.442695
      %v1918 = vpow.pop %v1917
      %v1919 = vmul.f32 %v1856, 1.442695
      %v1920 = vpow.pop %v1919
      %v1921 = vld [vmem:[#allocation6] sm:$0xff]
      %v1922 = vld [vmem:[#allocation6 + $0x8] sm:$0xff]
      %v1923 = vld [vmem:[#allocation6 + $0x10] sm:$0xff]
      %v1924 = vld [vmem:[#allocation6 + $0x18] sm:$0xff]
      %v1925 = vld [vmem:[#allocation6 + $0x20] sm:$0xff]
      %v1926 = vld [vmem:[#allocation6 + $0x28] sm:$0xff]
      %v1927 = vld [vmem:[#allocation6 + $0x30] sm:$0xff]
      %v1928 = vld [vmem:[#allocation6 + $0x38] sm:$0xff]
      %v1929 = vld [vmem:[#allocation6 + $0x40] sm:$0xff]
      %v1930 = vld [vmem:[#allocation6 + $0x48] sm:$0xff]
      %v1931 = vld [vmem:[#allocation6 + $0x50] sm:$0xff]
      %v1932 = vld [vmem:[#allocation6 + $0x58] sm:$0xff]
      %v1933 = vld [vmem:[#allocation6 + $0x60] sm:$0xff]
      %v1934 = vld [vmem:[#allocation6 + $0x68] sm:$0xff]
      %v1935 = vld [vmem:[#allocation6 + $0x70] sm:$0xff]
      %v1936 = vld [vmem:[#allocation6 + $0x78] sm:$0xff]
      %v1937 = vmul.f32 %v1714, %v1921
      %v1938 = vmul.f32 %v1716, %v1922
      %v1939 = vmul.f32 %v1718, %v1923
      %v1940 = vmul.f32 %v1720, %v1924
      %v1941 = vmul.f32 %v1722, %v1925
      %v1942 = vmul.f32 %v1724, %v1926
      %v1943 = vmul.f32 %v1726, %v1927
      %v1944 = vmul.f32 %v1728, %v1928
      %v1945 = vmul.f32 %v1730, %v1929
      %v1946 = vmul.f32 %v1732, %v1930
      %v1947 = vmul.f32 %v1734, %v1931
      %v1948 = vmul.f32 %v1736, %v1932
      %v1949 = vmul.f32 %v1738, %v1933
      %v1950 = vmul.f32 %v1740, %v1934
      %v1951 = vmul.f32 %v1742, %v1935
      %v1952 = vmul.f32 %v1744, %v1936
      %v1953 = vadd.f32 %v1858, %v1860
      %1954 = vadd.xlane.f32.xlu0 %v1953
      %v1955 = vpop.xlane.xlu0 %1954
      %v1956 = vadd.f32 %v1862, %v1864
      %1957 = vadd.xlane.f32.xlu0 %v1956
      %v1958 = vpop.xlane.xlu0 %1957
      %v1959 = vadd.f32 %v1866, %v1868
      %1960 = vadd.xlane.f32.xlu0 %v1959
      %v1961 = vpop.xlane.xlu0 %1960
      %v1962 = vadd.f32 %v1870, %v1872
      %1963 = vadd.xlane.f32.xlu0 %v1962
      %v1964 = vpop.xlane.xlu0 %1963
      %v1965 = vadd.f32 %v1874, %v1876
      %1966 = vadd.xlane.f32.xlu0 %v1965
      %v1967 = vpop.xlane.xlu0 %1966
      %v1968 = vadd.f32 %v1878, %v1880
      %1969 = vadd.xlane.f32.xlu0 %v1968
      %v1970 = vpop.xlane.xlu0 %1969
      %v1971 = vadd.f32 %v1882, %v1884
      %1972 = vadd.xlane.f32.xlu0 %v1971
      %v1973 = vpop.xlane.xlu0 %1972
      %v1974 = vadd.f32 %v1886, %v1888
      %1975 = vadd.xlane.f32.xlu0 %v1974
      %v1976 = vpop.xlane.xlu0 %1975
      %v1977 = vadd.f32 %v1890, %v1892
      %1978 = vadd.xlane.f32.xlu0 %v1977
      %v1979 = vpop.xlane.xlu0 %1978
      %v1980 = vadd.f32 %v1894, %v1896
      %1981 = vadd.xlane.f32.xlu0 %v1980
      %v1982 = vpop.xlane.xlu0 %1981
      %v1983 = vadd.f32 %v1898, %v1900
      %1984 = vadd.xlane.f32.xlu0 %v1983
      %v1985 = vpop.xlane.xlu0 %1984
      %v1986 = vadd.f32 %v1902, %v1904
      %1987 = vadd.xlane.f32.xlu0 %v1986
      %v1988 = vpop.xlane.xlu0 %1987
      %v1989 = vadd.f32 %v1906, %v1908
      %1990 = vadd.xlane.f32.xlu0 %v1989
      %v1991 = vpop.xlane.xlu0 %1990
      %v1992 = vadd.f32 %v1910, %v1912
      %1993 = vadd.xlane.f32.xlu0 %v1992
      %v1994 = vpop.xlane.xlu0 %1993
      %v1995 = vadd.f32 %v1914, %v1916
      %1996 = vadd.xlane.f32.xlu0 %v1995
      %v1997 = vpop.xlane.xlu0 %1996
      %v1998 = vadd.f32 %v1918, %v1920
      %1999 = vadd.xlane.f32.xlu0 %v1998
      %v2000 = vpop.xlane.xlu0 %1999
      %v2001 = vadd.f32 %v1937, %v1955
      %v2002 = vadd.f32 %v1938, %v1958
      %v2003 = vadd.f32 %v1939, %v1961
      %v2004 = vadd.f32 %v1940, %v1964
      %v2005 = vadd.f32 %v1941, %v1967
      %v2006 = vadd.f32 %v1942, %v1970
      %v2007 = vadd.f32 %v1943, %v1973
      %v2008 = vadd.f32 %v1944, %v1976
      %v2009 = vadd.f32 %v1945, %v1979
      %v2010 = vadd.f32 %v1946, %v1982
      %v2011 = vadd.f32 %v1947, %v1985
      %v2012 = vadd.f32 %v1948, %v1988
      %v2013 = vadd.f32 %v1949, %v1991
      %v2014 = vadd.f32 %v1950, %v1994
      %v2015 = vadd.f32 %v1951, %v1997
      %v2016 = vadd.f32 %v1952, %v2000
      %vm2017 = vcmask 7168
      %2018 = vst.msk [vmem:[#allocation6] sm:$0xff] %vm2017, %v2001
      %2019 = vst.msk [vmem:[#allocation6 + $0x8] sm:$0xff] %vm2017, %v2002
      %2020 = vst.msk [vmem:[#allocation6 + $0x10] sm:$0xff] %vm2017, %v2003
      %2021 = vst.msk [vmem:[#allocation6 + $0x18] sm:$0xff] %vm2017, %v2004
      %2022 = vst.msk [vmem:[#allocation6 + $0x20] sm:$0xff] %vm2017, %v2005
      %2023 = vst.msk [vmem:[#allocation6 + $0x28] sm:$0xff] %vm2017, %v2006
      %2024 = vst.msk [vmem:[#allocation6 + $0x30] sm:$0xff] %vm2017, %v2007
      %2025 = vst.msk [vmem:[#allocation6 + $0x38] sm:$0xff] %vm2017, %v2008
      %2026 = vst.msk [vmem:[#allocation6 + $0x40] sm:$0xff] %vm2017, %v2009
      %2027 = vst.msk [vmem:[#allocation6 + $0x48] sm:$0xff] %vm2017, %v2010
      %2028 = vst.msk [vmem:[#allocation6 + $0x50] sm:$0xff] %vm2017, %v2011
      %2029 = vst.msk [vmem:[#allocation6 + $0x58] sm:$0xff] %vm2017, %v2012
      %2030 = vst.msk [vmem:[#allocation6 + $0x60] sm:$0xff] %vm2017, %v2013
      %2031 = vst.msk [vmem:[#allocation6 + $0x68] sm:$0xff] %vm2017, %v2014
      %2032 = vst.msk [vmem:[#allocation6 + $0x70] sm:$0xff] %vm2017, %v2015
      %2033 = vst.msk [vmem:[#allocation6 + $0x78] sm:$0xff] %vm2017, %v2016
      %v2034 = vld [vmem:[#allocation7] sm:$0xff]
      %v2035 = vld [vmem:[#allocation7 + $0x8] sm:$0xff]
      %v2036 = vld [vmem:[#allocation7 + $0x10] sm:$0xff]
      %v2037 = vld [vmem:[#allocation7 + $0x18] sm:$0xff]
      %v2038 = vld [vmem:[#allocation7 + $0x20] sm:$0xff]
      %v2039 = vld [vmem:[#allocation7 + $0x28] sm:$0xff]
      %v2040 = vld [vmem:[#allocation7 + $0x30] sm:$0xff]
      %v2041 = vld [vmem:[#allocation7 + $0x38] sm:$0xff]
      %v2042 = vld [vmem:[#allocation7 + $0x40] sm:$0xff]
      %v2043 = vld [vmem:[#allocation7 + $0x48] sm:$0xff]
      %v2044 = vld [vmem:[#allocation7 + $0x50] sm:$0xff]
      %v2045 = vld [vmem:[#allocation7 + $0x58] sm:$0xff]
      %v2046 = vld [vmem:[#allocation7 + $0x60] sm:$0xff]
      %v2047 = vld [vmem:[#allocation7 + $0x68] sm:$0xff]
      %v2048 = vld [vmem:[#allocation7 + $0x70] sm:$0xff]
      %v2049 = vld [vmem:[#allocation7 + $0x78] sm:$0xff]
      %2051 = vset.pattern.permute.xlu0 0
      %2052 = vperm.xlu0 %2051, %v1714
      %v2053 = vpop.permute.xlu0 %2052
      %2056 = vset.pattern.permute.xlu0 0
      %2057 = vperm.xlu0 %2056, %v1716
      %v2058 = vpop.permute.xlu0 %2057
      %2061 = vset.pattern.permute.xlu0 0
      %2062 = vperm.xlu0 %2061, %v1718
      %v2063 = vpop.permute.xlu0 %2062
      %2066 = vset.pattern.permute.xlu0 0
      %2067 = vperm.xlu0 %2066, %v1720
      %v2068 = vpop.permute.xlu0 %2067
      %2071 = vset.pattern.permute.xlu0 0
      %2072 = vperm.xlu0 %2071, %v1722
      %v2073 = vpop.permute.xlu0 %2072
      %2076 = vset.pattern.permute.xlu0 0
      %2077 = vperm.xlu0 %2076, %v1724
      %v2078 = vpop.permute.xlu0 %2077
      %2081 = vset.pattern.permute.xlu0 0
      %2082 = vperm.xlu0 %2081, %v1726
      %v2083 = vpop.permute.xlu0 %2082
      %2086 = vset.pattern.permute.xlu0 0
      %2087 = vperm.xlu0 %2086, %v1728
      %v2088 = vpop.permute.xlu0 %2087
      %2091 = vset.pattern.permute.xlu0 0
      %2092 = vperm.xlu0 %2091, %v1730
      %v2093 = vpop.permute.xlu0 %2092
      %2096 = vset.pattern.permute.xlu0 0
      %2097 = vperm.xlu0 %2096, %v1732
      %v2098 = vpop.permute.xlu0 %2097
      %2101 = vset.pattern.permute.xlu0 0
      %2102 = vperm.xlu0 %2101, %v1734
      %v2103 = vpop.permute.xlu0 %2102
      %2106 = vset.pattern.permute.xlu0 0
      %2107 = vperm.xlu0 %2106, %v1736
      %v2108 = vpop.permute.xlu0 %2107
      %2111 = vset.pattern.permute.xlu0 0
      %2112 = vperm.xlu0 %2111, %v1738
      %v2113 = vpop.permute.xlu0 %2112
      %2116 = vset.pattern.permute.xlu0 0
      %2117 = vperm.xlu0 %2116, %v1740
      %v2118 = vpop.permute.xlu0 %2117
      %2121 = vset.pattern.permute.xlu0 0
      %2122 = vperm.xlu0 %2121, %v1742
      %v2123 = vpop.permute.xlu0 %2122
      %2126 = vset.pattern.permute.xlu0 0
      %2127 = vperm.xlu0 %2126, %v1744
      %v2128 = vpop.permute.xlu0 %2127
      %v2130 = vmul.f32 %v2053, %v2034
      %v2131 = vmul.f32 %v2058, %v2035
      %v2132 = vmul.f32 %v2063, %v2036
      %v2133 = vmul.f32 %v2068, %v2037
      %v2134 = vmul.f32 %v2073, %v2038
      %v2135 = vmul.f32 %v2078, %v2039
      %v2136 = vmul.f32 %v2083, %v2040
      %v2137 = vmul.f32 %v2088, %v2041
      %v2138 = vmul.f32 %v2093, %v2042
      %v2139 = vmul.f32 %v2098, %v2043
      %v2140 = vmul.f32 %v2103, %v2044
      %v2141 = vmul.f32 %v2108, %v2045
      %v2142 = vmul.f32 %v2113, %v2046
      %v2143 = vmul.f32 %v2118, %v2047
      %v2144 = vmul.f32 %v2123, %v2048
      %v2145 = vmul.f32 %v2128, %v2049
      %2146 = vrot.lane.b32.xlu0 %v1106, 96
      %v2147 = vpop.permute.xlu0 %2146
      %2148 = vrot.lane.b32.xlu0 %v1111, 96
      %v2149 = vpop.permute.xlu0 %2148
      %2150 = vrot.lane.b32.xlu0 %v1116, 96
      %v2151 = vpop.permute.xlu0 %2150
      %2152 = vrot.lane.b32.xlu0 %v1121, 96
      %v2153 = vpop.permute.xlu0 %2152
      %2154 = vrot.lane.b32.xlu0 %v1126, 96
      %v2155 = vpop.permute.xlu0 %2154
      %2156 = vrot.lane.b32.xlu0 %v1131, 96
      %v2157 = vpop.permute.xlu0 %2156
      %2158 = vrot.lane.b32.xlu0 %v1136, 96
      %v2159 = vpop.permute.xlu0 %2158
      %2160 = vrot.lane.b32.xlu0 %v1141, 96
      %v2161 = vpop.permute.xlu0 %2160
      %2162 = vrot.lane.b32.xlu0 %v1146, 96
      %v2163 = vpop.permute.xlu0 %2162
      %2164 = vrot.lane.b32.xlu0 %v1151, 96
      %v2165 = vpop.permute.xlu0 %2164
      %2166 = vrot.lane.b32.xlu0 %v1156, 96
      %v2167 = vpop.permute.xlu0 %2166
      %2168 = vrot.lane.b32.xlu0 %v1161, 96
      %v2169 = vpop.permute.xlu0 %2168
      %2170 = vrot.lane.b32.xlu0 %v1166, 96
      %v2171 = vpop.permute.xlu0 %2170
      %2172 = vrot.lane.b32.xlu0 %v1171, 96
      %v2173 = vpop.permute.xlu0 %2172
      %2174 = vrot.lane.b32.xlu0 %v1176, 96
      %v2175 = vpop.permute.xlu0 %2174
      %2176 = vrot.lane.b32.xlu0 %v1181, 96
      %v2177 = vpop.permute.xlu0 %2176
      %2178 = vrot.lane.b32.xlu0 %v1186, 96
      %v2179 = vpop.permute.xlu0 %2178
      %2180 = vrot.lane.b32.xlu0 %v1191, 96
      %v2181 = vpop.permute.xlu0 %2180
      %2182 = vrot.lane.b32.xlu0 %v1196, 96
      %v2183 = vpop.permute.xlu0 %2182
      %2184 = vrot.lane.b32.xlu0 %v1201, 96
      %v2185 = vpop.permute.xlu0 %2184
      %2186 = vrot.lane.b32.xlu0 %v1206, 96
      %v2187 = vpop.permute.xlu0 %2186
      %2188 = vrot.lane.b32.xlu0 %v1211, 96
      %v2189 = vpop.permute.xlu0 %2188
      %2190 = vrot.lane.b32.xlu0 %v1216, 96
      %v2191 = vpop.permute.xlu0 %2190
      %2192 = vrot.lane.b32.xlu0 %v1221, 96
      %v2193 = vpop.permute.xlu0 %2192
      %2194 = vrot.lane.b32.xlu0 %v1226, 96
      %v2195 = vpop.permute.xlu0 %2194
      %2196 = vrot.lane.b32.xlu0 %v1231, 96
      %v2197 = vpop.permute.xlu0 %2196
      %2198 = vrot.lane.b32.xlu0 %v1236, 96
      %v2199 = vpop.permute.xlu0 %2198
      %2200 = vrot.lane.b32.xlu0 %v1241, 96
      %v2201 = vpop.permute.xlu0 %2200
      %2202 = vrot.lane.b32.xlu0 %v1246, 96
      %v2203 = vpop.permute.xlu0 %2202
      %2204 = vrot.lane.b32.xlu0 %v1251, 96
      %v2205 = vpop.permute.xlu0 %2204
      %2206 = vrot.lane.b32.xlu0 %v1256, 96
      %v2207 = vpop.permute.xlu0 %2206
      %2208 = vrot.lane.b32.xlu0 %v1261, 96
      %v2209 = vpop.permute.xlu0 %2208
      %2242 = vmatprep.subr.mxu0 0.0
      %2243 = vmatpush1.msra.mxu0 %v2147
      %2244 = vmatprep.subr.mxu0 0.0
      %2245 = vmatpush1.msra.mxu0 %v2149
      %2246 = vmatprep.subr.mxu0 0.0
      %2247 = vmatpush1.msra.mxu0 %v2151
      %2248 = vmatprep.subr.mxu0 0.0
      %2249 = vmatpush1.msra.mxu0 %v2153
      %2250 = vmatprep.subr.mxu0 0.0
      %2251 = vmatpush1.msra.mxu0 %v2155
      %2252 = vmatprep.subr.mxu0 0.0
      %2253 = vmatpush1.msra.mxu0 %v2157
      %2254 = vmatprep.subr.mxu0 0.0
      %2255 = vmatpush1.msra.mxu0 %v2159
      %2256 = vmatprep.subr.mxu0 0.0
      %2257 = vmatpush1.msra.mxu0 %v2161
      %2258 = vmatprep.subr.mxu0 0.0
      %2259 = vmatpush1.msra.mxu0 %v2163
      %2260 = vmatprep.subr.mxu0 0.0
      %2261 = vmatpush1.msra.mxu0 %v2165
      %2262 = vmatprep.subr.mxu0 0.0
      %2263 = vmatpush1.msra.mxu0 %v2167
      %2264 = vmatprep.subr.mxu0 0.0
      %2265 = vmatpush1.msra.mxu0 %v2169
      %2266 = vmatprep.subr.mxu0 0.0
      %2267 = vmatpush1.msra.mxu0 %v2171
      %2268 = vmatprep.subr.mxu0 0.0
      %2269 = vmatpush1.msra.mxu0 %v2173
      %2270 = vmatprep.subr.mxu0 0.0
      %2271 = vmatpush1.msra.mxu0 %v2175
      %2272 = vmatprep.subr.mxu0 0.0
      %2273 = vmatpush1.msra.mxu0 %v2177
      %2274 = vmatprep.subr.mxu0 0.0
      %2275 = vmatpush1.msra.mxu0 %v2179
      %2276 = vmatprep.subr.mxu0 0.0
      %2277 = vmatpush1.msra.mxu0 %v2181
      %2278 = vmatprep.subr.mxu0 0.0
      %2279 = vmatpush1.msra.mxu0 %v2183
      %2280 = vmatprep.subr.mxu0 0.0
      %2281 = vmatpush1.msra.mxu0 %v2185
      %2282 = vmatprep.subr.mxu0 0.0
      %2283 = vmatpush1.msra.mxu0 %v2187
      %2284 = vmatprep.subr.mxu0 0.0
      %2285 = vmatpush1.msra.mxu0 %v2189
      %2286 = vmatprep.subr.mxu0 0.0
      %2287 = vmatpush1.msra.mxu0 %v2191
      %2288 = vmatprep.subr.mxu0 0.0
      %2289 = vmatpush1.msra.mxu0 %v2193
      %2290 = vmatprep.subr.mxu0 0.0
      %2291 = vmatpush1.msra.mxu0 %v2195
      %2292 = vmatprep.subr.mxu0 0.0
      %2293 = vmatpush1.msra.mxu0 %v2197
      %2294 = vmatprep.subr.mxu0 0.0
      %2295 = vmatpush1.msra.mxu0 %v2199
      %2296 = vmatprep.subr.mxu0 0.0
      %2297 = vmatpush1.msra.mxu0 %v2201
      %2298 = vmatprep.subr.mxu0 0.0
      %2299 = vmatpush1.msra.mxu0 %v2203
      %2300 = vmatprep.subr.mxu0 0.0
      %2301 = vmatpush1.msra.mxu0 %v2205
      %2302 = vmatprep.subr.mxu0 0.0
      %2303 = vmatpush1.msra.mxu0 %v2207
      %2304 = vmatprep.subr.mxu0 0.0
      %2305 = vmatpush1.msra.mxu0 %v2209
      %2306 = vmatprep.mubr.f32.mxu0 %v1860
      %2307 = vmatmul.mubr.f32.gmra.mrb[0].mxu0 %v1858
      %v2308 = vpop.f32.mrb[0].mxu0
      %v2309 = vadd.f32 0.0, %v2308
      %v2310 = vpop.f32.mrb[0].mxu0
      %2311 = vmatprep.mubr.f32.mxu0 %v1864
      %2312 = vmatmul.mubr.f32.gmra.mrb[0].mxu0 %v1862
      %v2313 = vpop.f32.mrb[0].mxu0
      %v2314 = vadd.f32 0.0, %v2313
      %v2315 = vpop.f32.mrb[0].mxu0
      %2316 = vmatprep.mubr.f32.mxu0 %v1868
      %2317 = vmatmul.mubr.f32.gmra.mrb[0].mxu0 %v1866
      %v2318 = vpop.f32.mrb[0].mxu0
      %v2319 = vadd.f32 0.0, %v2318
      %v2320 = vpop.f32.mrb[0].mxu0
      %2321 = vmatprep.mubr.f32.mxu0 %v1872
      %2322 = vmatmul.mubr.f32.gmra.mrb[0].mxu0 %v1870
      %v2323 = vpop.f32.mrb[0].mxu0
      %v2324 = vadd.f32 0.0, %v2323
      %v2325 = vpop.f32.mrb[0].mxu0
      %2326 = vmatprep.mubr.f32.mxu0 %v1876
      %2327 = vmatmul.mubr.f32.gmra.mrb[0].mxu0 %v1874
      %v2328 = vpop.f32.mrb[0].mxu0
      %v2329 = vadd.f32 0.0, %v2328
      %v2330 = vpop.f32.mrb[0].mxu0
      %2331 = vmatprep.mubr.f32.mxu0 %v1880
      %2332 = vmatmul.mubr.f32.gmra.mrb[0].mxu0 %v1878
      %v2333 = vpop.f32.mrb[0].mxu0
      %v2334 = vadd.f32 0.0, %v2333
      %v2335 = vpop.f32.mrb[0].mxu0
      %2336 = vmatprep.mubr.f32.mxu0 %v1884
      %2337 = vmatmul.mubr.f32.gmra.mrb[0].mxu0 %v1882
      %v2338 = vpop.f32.mrb[0].mxu0
      %v2339 = vadd.f32 0.0, %v2338
      %v2340 = vpop.f32.mrb[0].mxu0
      %2341 = vmatprep.mubr.f32.mxu0 %v1888
      %2342 = vmatmul.mubr.f32.gmra.mrb[0].mxu0 %v1886
      %v2343 = vpop.f32.mrb[0].mxu0
      %v2344 = vadd.f32 0.0, %v2343
      %v2345 = vpop.f32.mrb[0].mxu0
      %2346 = vmatprep.mubr.f32.mxu0 %v1892
      %2347 = vmatmul.mubr.f32.gmra.mrb[0].mxu0 %v1890
      %v2348 = vpop.f32.mrb[0].mxu0
      %v2349 = vadd.f32 0.0, %v2348
      %v2350 = vpop.f32.mrb[0].mxu0
      %2351 = vmatprep.mubr.f32.mxu0 %v1896
      %2352 = vmatmul.mubr.f32.gmra.mrb[0].mxu0 %v1894
      %v2353 = vpop.f32.mrb[0].mxu0
      %v2354 = vadd.f32 0.0, %v2353
      %v2355 = vpop.f32.mrb[0].mxu0
      %2356 = vmatprep.mubr.f32.mxu0 %v1900
      %2357 = vmatmul.mubr.f32.gmra.mrb[0].mxu0 %v1898
      %v2358 = vpop.f32.mrb[0].mxu0
      %v2359 = vadd.f32 0.0, %v2358
      %v2360 = vpop.f32.mrb[0].mxu0
      %2361 = vmatprep.mubr.f32.mxu0 %v1904
      %2362 = vmatmul.mubr.f32.gmra.mrb[0].mxu0 %v1902
      %v2363 = vpop.f32.mrb[0].mxu0
      %v2364 = vadd.f32 0.0, %v2363
      %v2365 = vpop.f32.mrb[0].mxu0
      %2366 = vmatprep.mubr.f32.mxu0 %v1908
      %2367 = vmatmul.mubr.f32.gmra.mrb[0].mxu0 %v1906
      %v2368 = vpop.f32.mrb[0].mxu0
      %v2369 = vadd.f32 0.0, %v2368
      %v2370 = vpop.f32.mrb[0].mxu0
      %2371 = vmatprep.mubr.f32.mxu0 %v1912
      %2372 = vmatmul.mubr.f32.gmra.mrb[0].mxu0 %v1910
      %v2373 = vpop.f32.mrb[0].mxu0
      %v2374 = vadd.f32 0.0, %v2373
      %v2375 = vpop.f32.mrb[0].mxu0
      %2376 = vmatprep.mubr.f32.mxu0 %v1916
      %2377 = vmatmul.mubr.f32.gmra.mrb[0].mxu0 %v1914
      %v2378 = vpop.f32.mrb[0].mxu0
      %v2379 = vadd.f32 0.0, %v2378
      %v2380 = vpop.f32.mrb[0].mxu0
      %2381 = vmatprep.mubr.f32.mxu0 %v1920
      %2382 = vmatmul.mubr.f32.gmra.mrb[0].mxu0 %v1918
      %v2383 = vpop.f32.mrb[0].mxu0
      %v2384 = vadd.f32 0.0, %v2383
      %v2385 = vpop.f32.mrb[0].mxu0
      %2386 = vdwg.mxu0
      %v2387 = vadd.f32 %v2130, %v2309
      %v2388 = vadd.f32 %v2131, %v2314
      %v2389 = vadd.f32 %v2132, %v2319
      %v2390 = vadd.f32 %v2133, %v2324
      %v2391 = vadd.f32 %v2134, %v2329
      %v2392 = vadd.f32 %v2135, %v2334
      %v2393 = vadd.f32 %v2136, %v2339
      %v2394 = vadd.f32 %v2137, %v2344
      %v2395 = vadd.f32 %v2138, %v2349
      %v2396 = vadd.f32 %v2139, %v2354
      %v2397 = vadd.f32 %v2140, %v2359
      %v2398 = vadd.f32 %v2141, %v2364
      %v2399 = vadd.f32 %v2142, %v2369
      %v2400 = vadd.f32 %v2143, %v2374
      %v2401 = vadd.f32 %v2144, %v2379
      %v2402 = vadd.f32 %v2145, %v2384
      %2403 = vst.msk [vmem:[#allocation7] sm:$0xff] %vm942, %v2387
      %2404 = vst.msk [vmem:[#allocation7 + $0x8] sm:$0xff] %vm942, %v2388
      %2405 = vst.msk [vmem:[#allocation7 + $0x10] sm:$0xff] %vm942, %v2389
      %2406 = vst.msk [vmem:[#allocation7 + $0x18] sm:$0xff] %vm942, %v2390
      %2407 = vst.msk [vmem:[#allocation7 + $0x20] sm:$0xff] %vm942, %v2391
      %2408 = vst.msk [vmem:[#allocation7 + $0x28] sm:$0xff] %vm942, %v2392
      %2409 = vst.msk [vmem:[#allocation7 + $0x30] sm:$0xff] %vm942, %v2393
      %2410 = vst.msk [vmem:[#allocation7 + $0x38] sm:$0xff] %vm942, %v2394
      %2411 = vst.msk [vmem:[#allocation7 + $0x40] sm:$0xff] %vm942, %v2395
      %2412 = vst.msk [vmem:[#allocation7 + $0x48] sm:$0xff] %vm942, %v2396
      %2413 = vst.msk [vmem:[#allocation7 + $0x50] sm:$0xff] %vm942, %v2397
      %2414 = vst.msk [vmem:[#allocation7 + $0x58] sm:$0xff] %vm942, %v2398
      %2415 = vst.msk [vmem:[#allocation7 + $0x60] sm:$0xff] %vm942, %v2399
      %2416 = vst.msk [vmem:[#allocation7 + $0x68] sm:$0xff] %vm942, %v2400
      %2417 = vst.msk [vmem:[#allocation7 + $0x70] sm:$0xff] %vm942, %v2401
      %2418 = vst.msk [vmem:[#allocation7 + $0x78] sm:$0xff] %vm942, %v2402
      %2419 = vst.msk [vmem:[#allocation5] sm:$0xff] %vm2017, %v1681
      %2420 = vst.msk [vmem:[#allocation5 + $0x8] sm:$0xff] %vm2017, %v1682
      %2421 = vst.msk [vmem:[#allocation5 + $0x10] sm:$0xff] %vm2017, %v1683
      %2422 = vst.msk [vmem:[#allocation5 + $0x18] sm:$0xff] %vm2017, %v1684
      %2423 = vst.msk [vmem:[#allocation5 + $0x20] sm:$0xff] %vm2017, %v1685
      %2424 = vst.msk [vmem:[#allocation5 + $0x28] sm:$0xff] %vm2017, %v1686
      %2425 = vst.msk [vmem:[#allocation5 + $0x30] sm:$0xff] %vm2017, %v1687
      %2426 = vst.msk [vmem:[#allocation5 + $0x38] sm:$0xff] %vm2017, %v1688
      %2427 = vst.msk [vmem:[#allocation5 + $0x40] sm:$0xff] %vm2017, %v1689
      %2428 = vst.msk [vmem:[#allocation5 + $0x48] sm:$0xff] %vm2017, %v1690
      %2429 = vst.msk [vmem:[#allocation5 + $0x50] sm:$0xff] %vm2017, %v1691
      %2430 = vst.msk [vmem:[#allocation5 + $0x58] sm:$0xff] %vm2017, %v1692
      %2431 = vst.msk [vmem:[#allocation5 + $0x60] sm:$0xff] %vm2017, %v1693
      %2432 = vst.msk [vmem:[#allocation5 + $0x68] sm:$0xff] %vm2017, %v1694
      %2433 = vst.msk [vmem:[#allocation5 + $0x70] sm:$0xff] %vm2017, %v1695
      %2434 = vst.msk [vmem:[#allocation5 + $0x78] sm:$0xff] %vm2017, %v1696
      // Predicated region
      $region69: #{resunet_attention_module.2} parent=63 // pred_check
        %p2435 = pneg %p465
      $region70: #{resunet_attention_module.2} parent=63 // pred_check_branch
        %2437 = sbr.rel (%p2435) target = $region72
      $region71: #{resunet_attention_module.2} parent=63 // pred_region
        %v2438 = vld [vmem:[#allocation7] sm:$0xff]
        %v2439 = vld [vmem:[#allocation7 + $0x8] sm:$0xff]
        %v2440 = vld [vmem:[#allocation7 + $0x10] sm:$0xff]
        %v2441 = vld [vmem:[#allocation7 + $0x18] sm:$0xff]
        %v2442 = vld [vmem:[#allocation7 + $0x20] sm:$0xff]
        %v2443 = vld [vmem:[#allocation7 + $0x28] sm:$0xff]
        %v2444 = vld [vmem:[#allocation7 + $0x30] sm:$0xff]
        %v2445 = vld [vmem:[#allocation7 + $0x38] sm:$0xff]
        %v2446 = vld [vmem:[#allocation7 + $0x40] sm:$0xff]
        %v2447 = vld [vmem:[#allocation7 + $0x48] sm:$0xff]
        %v2448 = vld [vmem:[#allocation7 + $0x50] sm:$0xff]
        %v2449 = vld [vmem:[#allocation7 + $0x58] sm:$0xff]
        %v2450 = vld [vmem:[#allocation7 + $0x60] sm:$0xff]
        %v2451 = vld [vmem:[#allocation7 + $0x68] sm:$0xff]
        %v2452 = vld [vmem:[#allocation7 + $0x70] sm:$0xff]
        %v2453 = vld [vmem:[#allocation7 + $0x78] sm:$0xff]
        %v2454 = vld [vmem:[#allocation6] sm:$0xff]
        %v2455 = vld [vmem:[#allocation6 + $0x8] sm:$0xff]
        %v2456 = vld [vmem:[#allocation6 + $0x10] sm:$0xff]
        %v2457 = vld [vmem:[#allocation6 + $0x18] sm:$0xff]
        %v2458 = vld [vmem:[#allocation6 + $0x20] sm:$0xff]
        %v2459 = vld [vmem:[#allocation6 + $0x28] sm:$0xff]
        %v2460 = vld [vmem:[#allocation6 + $0x30] sm:$0xff]
        %v2461 = vld [vmem:[#allocation6 + $0x38] sm:$0xff]
        %v2462 = vld [vmem:[#allocation6 + $0x40] sm:$0xff]
        %v2463 = vld [vmem:[#allocation6 + $0x48] sm:$0xff]
        %v2464 = vld [vmem:[#allocation6 + $0x50] sm:$0xff]
        %v2465 = vld [vmem:[#allocation6 + $0x58] sm:$0xff]
        %v2466 = vld [vmem:[#allocation6 + $0x60] sm:$0xff]
        %v2467 = vld [vmem:[#allocation6 + $0x68] sm:$0xff]
        %v2468 = vld [vmem:[#allocation6 + $0x70] sm:$0xff]
        %v2469 = vld [vmem:[#allocation6 + $0x78] sm:$0xff]
        %2471 = vset.pattern.permute.xlu0 0
        %2472 = vperm.xlu0 %2471, %v2454
        %v2473 = vpop.permute.xlu0 %2472
        %2476 = vset.pattern.permute.xlu0 0
        %2477 = vperm.xlu0 %2476, %v2455
        %v2478 = vpop.permute.xlu0 %2477
        %2481 = vset.pattern.permute.xlu0 0
        %2482 = vperm.xlu0 %2481, %v2456
        %v2483 = vpop.permute.xlu0 %2482
        %2486 = vset.pattern.permute.xlu0 0
        %2487 = vperm.xlu0 %2486, %v2457
        %v2488 = vpop.permute.xlu0 %2487
        %2491 = vset.pattern.permute.xlu0 0
        %2492 = vperm.xlu0 %2491, %v2458
        %v2493 = vpop.permute.xlu0 %2492
        %2496 = vset.pattern.permute.xlu0 0
        %2497 = vperm.xlu0 %2496, %v2459
        %v2498 = vpop.permute.xlu0 %2497
        %2501 = vset.pattern.permute.xlu0 0
        %2502 = vperm.xlu0 %2501, %v2460
        %v2503 = vpop.permute.xlu0 %2502
        %2506 = vset.pattern.permute.xlu0 0
        %2507 = vperm.xlu0 %2506, %v2461
        %v2508 = vpop.permute.xlu0 %2507
        %2511 = vset.pattern.permute.xlu0 0
        %2512 = vperm.xlu0 %2511, %v2462
        %v2513 = vpop.permute.xlu0 %2512
        %2516 = vset.pattern.permute.xlu0 0
        %2517 = vperm.xlu0 %2516, %v2463
        %v2518 = vpop.permute.xlu0 %2517
        %2521 = vset.pattern.permute.xlu0 0
        %2522 = vperm.xlu0 %2521, %v2464
        %v2523 = vpop.permute.xlu0 %2522
        %2526 = vset.pattern.permute.xlu0 0
        %2527 = vperm.xlu0 %2526, %v2465
        %v2528 = vpop.permute.xlu0 %2527
        %2531 = vset.pattern.permute.xlu0 0
        %2532 = vperm.xlu0 %2531, %v2466
        %v2533 = vpop.permute.xlu0 %2532
        %2536 = vset.pattern.permute.xlu0 0
        %2537 = vperm.xlu0 %2536, %v2467
        %v2538 = vpop.permute.xlu0 %2537
        %2541 = vset.pattern.permute.xlu0 0
        %2542 = vperm.xlu0 %2541, %v2468
        %v2543 = vpop.permute.xlu0 %2542
        %2546 = vset.pattern.permute.xlu0 0
        %2547 = vperm.xlu0 %2546, %v2469
        %v2548 = vpop.permute.xlu0 %2547
        %v2550 = vrcp.pop %v2473
        %v2551 = vmul.f32 %v2438, %v2550
        %v2552 = vrcp.pop %v2478
        %v2553 = vmul.f32 %v2439, %v2552
        %v2554 = vrcp.pop %v2483
        %v2555 = vmul.f32 %v2440, %v2554
        %v2556 = vrcp.pop %v2488
        %v2557 = vmul.f32 %v2441, %v2556
        %v2558 = vrcp.pop %v2493
        %v2559 = vmul.f32 %v2442, %v2558
        %v2560 = vrcp.pop %v2498
        %v2561 = vmul.f32 %v2443, %v2560
        %v2562 = vrcp.pop %v2503
        %v2563 = vmul.f32 %v2444, %v2562
        %v2564 = vrcp.pop %v2508
        %v2565 = vmul.f32 %v2445, %v2564
        %v2566 = vrcp.pop %v2513
        %v2567 = vmul.f32 %v2446, %v2566
        %v2568 = vrcp.pop %v2518
        %v2569 = vmul.f32 %v2447, %v2568
        %v2570 = vrcp.pop %v2523
        %v2571 = vmul.f32 %v2448, %v2570
        %v2572 = vrcp.pop %v2528
        %v2573 = vmul.f32 %v2449, %v2572
        %v2574 = vrcp.pop %v2533
        %v2575 = vmul.f32 %v2450, %v2574
        %v2576 = vrcp.pop %v2538
        %v2577 = vmul.f32 %v2451, %v2576
        %v2578 = vrcp.pop %v2543
        %v2579 = vmul.f32 %v2452, %v2578
        %v2580 = vrcp.pop %v2548
        %v2581 = vmul.f32 %v2453, %v2580
        %v2582 = vld [vmem:[#allocation3] sm:$0xff]
        %v2583 = vld [vmem:[#allocation3 + $0x8] sm:$0xff]
        %v2584 = vld [vmem:[#allocation3 + $0x10] sm:$0xff]
        %v2585 = vld [vmem:[#allocation3 + $0x18] sm:$0xff]
        %v2586 = vld [vmem:[#allocation3 + $0x20] sm:$0xff]
        %v2587 = vld [vmem:[#allocation3 + $0x28] sm:$0xff]
        %v2588 = vld [vmem:[#allocation3 + $0x30] sm:$0xff]
        %v2589 = vld [vmem:[#allocation3 + $0x38] sm:$0xff]
        %v2590 = vld [vmem:[#allocation3 + $0x40] sm:$0xff]
        %v2591 = vld [vmem:[#allocation3 + $0x48] sm:$0xff]
        %v2592 = vld [vmem:[#allocation3 + $0x50] sm:$0xff]
        %v2593 = vld [vmem:[#allocation3 + $0x58] sm:$0xff]
        %v2594 = vld [vmem:[#allocation3 + $0x60] sm:$0xff]
        %v2595 = vld [vmem:[#allocation3 + $0x68] sm:$0xff]
        %v2596 = vld [vmem:[#allocation3 + $0x70] sm:$0xff]
        %v2597 = vld [vmem:[#allocation3 + $0x78] sm:$0xff]
        %v2598 = vsub.f32 %v2551, %v2582
        %v2599 = vsub.f32 %v2553, %v2583
        %v2600 = vsub.f32 %v2555, %v2584
        %v2601 = vsub.f32 %v2557, %v2585
        %v2602 = vsub.f32 %v2559, %v2586
        %v2603 = vsub.f32 %v2561, %v2587
        %v2604 = vsub.f32 %v2563, %v2588
        %v2605 = vsub.f32 %v2565, %v2589
        %v2606 = vsub.f32 %v2567, %v2590
        %v2607 = vsub.f32 %v2569, %v2591
        %v2608 = vsub.f32 %v2571, %v2592
        %v2609 = vsub.f32 %v2573, %v2593
        %v2610 = vsub.f32 %v2575, %v2594
        %v2611 = vsub.f32 %v2577, %v2595
        %v2612 = vsub.f32 %v2579, %v2596
        %v2613 = vsub.f32 %v2581, %v2597
        %v2614 = vld [vmem:[#allocation4] sm:$0xff]
        %v2615 = vld [vmem:[#allocation4 + $0x8] sm:$0xff]
        %v2616 = vld [vmem:[#allocation4 + $0x10] sm:$0xff]
        %v2617 = vld [vmem:[#allocation4 + $0x18] sm:$0xff]
        %v2618 = vld [vmem:[#allocation4 + $0x20] sm:$0xff]
        %v2619 = vld [vmem:[#allocation4 + $0x28] sm:$0xff]
        %v2620 = vld [vmem:[#allocation4 + $0x30] sm:$0xff]
        %v2621 = vld [vmem:[#allocation4 + $0x38] sm:$0xff]
        %v2622 = vld [vmem:[#allocation4 + $0x40] sm:$0xff]
        %v2623 = vld [vmem:[#allocation4 + $0x48] sm:$0xff]
        %v2624 = vld [vmem:[#allocation4 + $0x50] sm:$0xff]
        %v2625 = vld [vmem:[#allocation4 + $0x58] sm:$0xff]
        %v2626 = vld [vmem:[#allocation4 + $0x60] sm:$0xff]
        %v2627 = vld [vmem:[#allocation4 + $0x68] sm:$0xff]
        %v2628 = vld [vmem:[#allocation4 + $0x70] sm:$0xff]
        %v2629 = vld [vmem:[#allocation4 + $0x78] sm:$0xff]
        %v2630 = vld [vmem:[%s6] sm:$0xff]
        %v2631 = vld [vmem:[%s6 + $0x8] sm:$0xff]
        %v2632 = vld [vmem:[%s6 + $0x10] sm:$0xff]
        %v2633 = vld [vmem:[%s6 + $0x18] sm:$0xff]
        %v2635 = vsel %vm942, %v2614, 0
        %v2638 = vsel %vm942, %v2615, 0
        %v2641 = vsel %vm942, %v2616, 0
        %v2644 = vsel %vm942, %v2617, 0
        %v2647 = vsel %vm942, %v2618, 0
        %v2650 = vsel %vm942, %v2619, 0
        %v2653 = vsel %vm942, %v2620, 0
        %v2656 = vsel %vm942, %v2621, 0
        %v2659 = vsel %vm942, %v2622, 0
        %v2662 = vsel %vm942, %v2623, 0
        %v2665 = vsel %vm942, %v2624, 0
        %v2668 = vsel %vm942, %v2625, 0
        %v2671 = vsel %vm942, %v2626, 0
        %v2674 = vsel %vm942, %v2627, 0
        %v2677 = vsel %vm942, %v2628, 0
        %v2680 = vsel %vm942, %v2629, 0
        %2682 = vmatprep.subr.mxu0 0.0
        %2683 = vmatpush1.msra.mxu0 %v2630
        %2684 = vmatprep.subr.mxu0 0.0
        %2685 = vmatpush1.msra.mxu0 %v2631
        %2686 = vmatprep.subr.mxu0 0.0
        %2687 = vmatpush1.msra.mxu0 %v2632
        %2688 = vmatprep.subr.mxu0 0.0
        %2689 = vmatpush1.msra.mxu0 %v2633
        %2690 = vmatprep.subr.mxu0 0.0
        %2691 = vmatpush1.msra.mxu0 0.0
        %2692 = vmatprep.subr.mxu0 0.0
        %2693 = vmatpush1.msra.mxu0 0.0
        %2694 = vmatprep.subr.mxu0 0.0
        %2695 = vmatpush1.msra.mxu0 0.0
        %2696 = vmatprep.subr.mxu0 0.0
        %2697 = vmatpush1.msra.mxu0 0.0
        %2698 = vmatprep.subr.mxu0 0.0
        %2699 = vmatpush1.msra.mxu0 0.0
        %2700 = vmatprep.subr.mxu0 0.0
        %2701 = vmatpush1.msra.mxu0 0.0
        %2702 = vmatprep.subr.mxu0 0.0
        %2703 = vmatpush1.msra.mxu0 0.0
        %2704 = vmatprep.subr.mxu0 0.0
        %2705 = vmatpush1.msra.mxu0 0.0
        %2706 = vmatprep.subr.mxu0 0.0
        %2707 = vmatpush1.msra.mxu0 0.0
        %2708 = vmatprep.subr.mxu0 0.0
        %2709 = vmatpush1.msra.mxu0 0.0
        %2710 = vmatprep.subr.mxu0 0.0
        %2711 = vmatpush1.msra.mxu0 0.0
        %2712 = vmatprep.subr.mxu0 0.0
        %2713 = vmatpush1.msra.mxu0 0.0
        %2714 = vmatprep.subr.mxu0 0.0
        %2715 = vmatpush1.msra.mxu0 0.0
        %2716 = vmatprep.subr.mxu0 0.0
        %2717 = vmatpush1.msra.mxu0 0.0
        %2718 = vmatprep.subr.mxu0 0.0
        %2719 = vmatpush1.msra.mxu0 0.0
        %2720 = vmatprep.subr.mxu0 0.0
        %2721 = vmatpush1.msra.mxu0 0.0
        %2722 = vmatprep.subr.mxu0 0.0
        %2723 = vmatpush1.msra.mxu0 0.0
        %2724 = vmatprep.subr.mxu0 0.0
        %2725 = vmatpush1.msra.mxu0 0.0
        %2726 = vmatprep.subr.mxu0 0.0
        %2727 = vmatpush1.msra.mxu0 0.0
        %2728 = vmatprep.subr.mxu0 0.0
        %2729 = vmatpush1.msra.mxu0 0.0
        %2730 = vmatprep.subr.mxu0 0.0
        %2731 = vmatpush1.msra.mxu0 0.0
        %2732 = vmatprep.subr.mxu0 0.0
        %2733 = vmatpush1.msra.mxu0 0.0
        %2734 = vmatprep.subr.mxu0 0.0
        %2735 = vmatpush1.msra.mxu0 0.0
        %2736 = vmatprep.subr.mxu0 0.0
        %2737 = vmatpush1.msra.mxu0 0.0
        %2738 = vmatprep.subr.mxu0 0.0
        %2739 = vmatpush1.msra.mxu0 0.0
        %2740 = vmatprep.subr.mxu0 0.0
        %2741 = vmatpush1.msra.mxu0 0.0
        %2742 = vmatprep.subr.mxu0 0.0
        %2743 = vmatpush1.msra.mxu0 0.0
        %2744 = vmatprep.subr.mxu0 0.0
        %2745 = vmatpush1.msra.mxu0 0.0
        %2746 = vmatprep.mubr.f32.mxu0 0.0
        %2747 = vmatmul.mubr.f32.gmra.mrb[0].mxu0 %v2635
        %v2748 = vpop.f32.mrb[0].mxu0
        %v2749 = vadd.f32 0.0, %v2748
        %v2750 = vpop.f32.mrb[0].mxu0
        %2751 = vmatprep.mubr.f32.mxu0 0.0
        %2752 = vmatmul.mubr.f32.gmra.mrb[0].mxu0 %v2638
        %v2753 = vpop.f32.mrb[0].mxu0
        %v2754 = vadd.f32 0.0, %v2753
        %v2755 = vpop.f32.mrb[0].mxu0
        %2756 = vmatprep.mubr.f32.mxu0 0.0
        %2757 = vmatmul.mubr.f32.gmra.mrb[0].mxu0 %v2641
        %v2758 = vpop.f32.mrb[0].mxu0
        %v2759 = vadd.f32 0.0, %v2758
        %v2760 = vpop.f32.mrb[0].mxu0
        %2761 = vmatprep.mubr.f32.mxu0 0.0
        %2762 = vmatmul.mubr.f32.gmra.mrb[0].mxu0 %v2644
        %v2763 = vpop.f32.mrb[0].mxu0
        %v2764 = vadd.f32 0.0, %v2763
        %v2765 = vpop.f32.mrb[0].mxu0
        %2766 = vmatprep.mubr.f32.mxu0 0.0
        %2767 = vmatmul.mubr.f32.gmra.mrb[0].mxu0 %v2647
        %v2768 = vpop.f32.mrb[0].mxu0
        %v2769 = vadd.f32 0.0, %v2768
        %v2770 = vpop.f32.mrb[0].mxu0
        %2771 = vmatprep.mubr.f32.mxu0 0.0
        %2772 = vmatmul.mubr.f32.gmra.mrb[0].mxu0 %v2650
        %v2773 = vpop.f32.mrb[0].mxu0
        %v2774 = vadd.f32 0.0, %v2773
        %v2775 = vpop.f32.mrb[0].mxu0
        %2776 = vmatprep.mubr.f32.mxu0 0.0
        %2777 = vmatmul.mubr.f32.gmra.mrb[0].mxu0 %v2653
        %v2778 = vpop.f32.mrb[0].mxu0
        %v2779 = vadd.f32 0.0, %v2778
        %v2780 = vpop.f32.mrb[0].mxu0
        %2781 = vmatprep.mubr.f32.mxu0 0.0
        %2782 = vmatmul.mubr.f32.gmra.mrb[0].mxu0 %v2656
        %v2783 = vpop.f32.mrb[0].mxu0
        %v2784 = vadd.f32 0.0, %v2783
        %v2785 = vpop.f32.mrb[0].mxu0
        %2786 = vmatprep.mubr.f32.mxu0 0.0
        %2787 = vmatmul.mubr.f32.gmra.mrb[0].mxu0 %v2659
        %v2788 = vpop.f32.mrb[0].mxu0
        %v2789 = vadd.f32 0.0, %v2788
        %v2790 = vpop.f32.mrb[0].mxu0
        %2791 = vmatprep.mubr.f32.mxu0 0.0
        %2792 = vmatmul.mubr.f32.gmra.mrb[0].mxu0 %v2662
        %v2793 = vpop.f32.mrb[0].mxu0
        %v2794 = vadd.f32 0.0, %v2793
        %v2795 = vpop.f32.mrb[0].mxu0
        %2796 = vmatprep.mubr.f32.mxu0 0.0
        %2797 = vmatmul.mubr.f32.gmra.mrb[0].mxu0 %v2665
        %v2798 = vpop.f32.mrb[0].mxu0
        %v2799 = vadd.f32 0.0, %v2798
        %v2800 = vpop.f32.mrb[0].mxu0
        %2801 = vmatprep.mubr.f32.mxu0 0.0
        %2802 = vmatmul.mubr.f32.gmra.mrb[0].mxu0 %v2668
        %v2803 = vpop.f32.mrb[0].mxu0
        %v2804 = vadd.f32 0.0, %v2803
        %v2805 = vpop.f32.mrb[0].mxu0
        %2806 = vmatprep.mubr.f32.mxu0 0.0
        %2807 = vmatmul.mubr.f32.gmra.mrb[0].mxu0 %v2671
        %v2808 = vpop.f32.mrb[0].mxu0
        %v2809 = vadd.f32 0.0, %v2808
        %v2810 = vpop.f32.mrb[0].mxu0
        %2811 = vmatprep.mubr.f32.mxu0 0.0
        %2812 = vmatmul.mubr.f32.gmra.mrb[0].mxu0 %v2674
        %v2813 = vpop.f32.mrb[0].mxu0
        %v2814 = vadd.f32 0.0, %v2813
        %v2815 = vpop.f32.mrb[0].mxu0
        %2816 = vmatprep.mubr.f32.mxu0 0.0
        %2817 = vmatmul.mubr.f32.gmra.mrb[0].mxu0 %v2677
        %v2818 = vpop.f32.mrb[0].mxu0
        %v2819 = vadd.f32 0.0, %v2818
        %v2820 = vpop.f32.mrb[0].mxu0
        %2821 = vmatprep.mubr.f32.mxu0 0.0
        %2822 = vmatmul.mubr.f32.gmra.mrb[0].mxu0 %v2680
        %v2823 = vpop.f32.mrb[0].mxu0
        %v2824 = vadd.f32 0.0, %v2823
        %v2825 = vpop.f32.mrb[0].mxu0
        %2826 = vdwg.mxu0
        %v2827 = vsub.f32 %v2749, %v2614
        %v2828 = vsub.f32 %v2754, %v2615
        %v2829 = vsub.f32 %v2759, %v2616
        %v2830 = vsub.f32 %v2764, %v2617
        %v2831 = vsub.f32 %v2769, %v2618
        %v2832 = vsub.f32 %v2774, %v2619
        %v2833 = vsub.f32 %v2779, %v2620
        %v2834 = vsub.f32 %v2784, %v2621
        %v2835 = vsub.f32 %v2789, %v2622
        %v2836 = vsub.f32 %v2794, %v2623
        %v2837 = vsub.f32 %v2799, %v2624
        %v2838 = vsub.f32 %v2804, %v2625
        %v2839 = vsub.f32 %v2809, %v2626
        %v2840 = vsub.f32 %v2814, %v2627
        %v2841 = vsub.f32 %v2819, %v2628
        %v2842 = vsub.f32 %v2824, %v2629
        %v2843 = vld [vmem:[%s7] sm:$0xff]
        %v2844 = vld [vmem:[%s7 + $0x8] sm:$0xff]
        %v2845 = vld [vmem:[%s7 + $0x10] sm:$0xff]
        %v2846 = vld [vmem:[%s7 + $0x18] sm:$0xff]
        %v2847 = vld [vmem:[%s8] sm:$0x1]
        %v2849 = vlaneseq
        %v2850 = vshrl.u32 %v2849, 7
        %v2851 = vsub.s32 0, %v2850
        %v2852 = vrot.slane %v2847, %v2851
        %v2855 = vsel %vm942, %v2598, 0
        %v2858 = vsel %vm942, %v2599, 0
        %v2861 = vsel %vm942, %v2600, 0
        %v2864 = vsel %vm942, %v2601, 0
        %v2867 = vsel %vm942, %v2602, 0
        %v2870 = vsel %vm942, %v2603, 0
        %v2873 = vsel %vm942, %v2604, 0
        %v2876 = vsel %vm942, %v2605, 0
        %v2879 = vsel %vm942, %v2606, 0
        %v2882 = vsel %vm942, %v2607, 0
        %v2885 = vsel %vm942, %v2608, 0
        %v2888 = vsel %vm942, %v2609, 0
        %v2891 = vsel %vm942, %v2610, 0
        %v2894 = vsel %vm942, %v2611, 0
        %v2897 = vsel %vm942, %v2612, 0
        %v2900 = vsel %vm942, %v2613, 0
        %2902 = vmatprep.subr.mxu0 0.0
        %2903 = vmatpush1.msra.mxu0 %v2843
        %2904 = vmatprep.subr.mxu0 0.0
        %2905 = vmatpush1.msra.mxu0 %v2844
        %2906 = vmatprep.subr.mxu0 0.0
        %2907 = vmatpush1.msra.mxu0 %v2845
        %2908 = vmatprep.subr.mxu0 0.0
        %2909 = vmatpush1.msra.mxu0 %v2846
        %2910 = vmatprep.subr.mxu0 0.0
        %2911 = vmatpush1.msra.mxu0 0.0
        %2912 = vmatprep.subr.mxu0 0.0
        %2913 = vmatpush1.msra.mxu0 0.0
        %2914 = vmatprep.subr.mxu0 0.0
        %2915 = vmatpush1.msra.mxu0 0.0
        %2916 = vmatprep.subr.mxu0 0.0
        %2917 = vmatpush1.msra.mxu0 0.0
        %2918 = vmatprep.subr.mxu0 0.0
        %2919 = vmatpush1.msra.mxu0 0.0
        %2920 = vmatprep.subr.mxu0 0.0
        %2921 = vmatpush1.msra.mxu0 0.0
        %2922 = vmatprep.subr.mxu0 0.0
        %2923 = vmatpush1.msra.mxu0 0.0
        %2924 = vmatprep.subr.mxu0 0.0
        %2925 = vmatpush1.msra.mxu0 0.0
        %2926 = vmatprep.subr.mxu0 0.0
        %2927 = vmatpush1.msra.mxu0 0.0
        %2928 = vmatprep.subr.mxu0 0.0
        %2929 = vmatpush1.msra.mxu0 0.0
        %2930 = vmatprep.subr.mxu0 0.0
        %2931 = vmatpush1.msra.mxu0 0.0
        %2932 = vmatprep.subr.mxu0 0.0
        %2933 = vmatpush1.msra.mxu0 0.0
        %2934 = vmatprep.subr.mxu0 0.0
        %2935 = vmatpush1.msra.mxu0 0.0
        %2936 = vmatprep.subr.mxu0 0.0
        %2937 = vmatpush1.msra.mxu0 0.0
        %2938 = vmatprep.subr.mxu0 0.0
        %2939 = vmatpush1.msra.mxu0 0.0
        %2940 = vmatprep.subr.mxu0 0.0
        %2941 = vmatpush1.msra.mxu0 0.0
        %2942 = vmatprep.subr.mxu0 0.0
        %2943 = vmatpush1.msra.mxu0 0.0
        %2944 = vmatprep.subr.mxu0 0.0
        %2945 = vmatpush1.msra.mxu0 0.0
        %2946 = vmatprep.subr.mxu0 0.0
        %2947 = vmatpush1.msra.mxu0 0.0
        %2948 = vmatprep.subr.mxu0 0.0
        %2949 = vmatpush1.msra.mxu0 0.0
        %2950 = vmatprep.subr.mxu0 0.0
        %2951 = vmatpush1.msra.mxu0 0.0
        %2952 = vmatprep.subr.mxu0 0.0
        %2953 = vmatpush1.msra.mxu0 0.0
        %2954 = vmatprep.subr.mxu0 0.0
        %2955 = vmatpush1.msra.mxu0 0.0
        %2956 = vmatprep.subr.mxu0 0.0
        %2957 = vmatpush1.msra.mxu0 0.0
        %2958 = vmatprep.subr.mxu0 0.0
        %2959 = vmatpush1.msra.mxu0 0.0
        %2960 = vmatprep.subr.mxu0 0.0
        %2961 = vmatpush1.msra.mxu0 0.0
        %2962 = vmatprep.subr.mxu0 0.0
        %2963 = vmatpush1.msra.mxu0 0.0
        %2964 = vmatprep.subr.mxu0 0.0
        %2965 = vmatpush1.msra.mxu0 0.0
        %2966 = vmatprep.mubr.f32.mxu0 0.0
        %2967 = vmatmul.mubr.f32.gmra.mrb[0].mxu0 %v2855
        %v2968 = vpop.f32.mrb[0].mxu0
        %v2969 = vadd.f32 %v2852, %v2968
        %v2970 = vpop.f32.mrb[0].mxu0
        %2971 = vmatprep.mubr.f32.mxu0 0.0
        %2972 = vmatmul.mubr.f32.gmra.mrb[0].mxu0 %v2858
        %v2973 = vpop.f32.mrb[0].mxu0
        %v2974 = vadd.f32 %v2852, %v2973
        %v2975 = vpop.f32.mrb[0].mxu0
        %2976 = vmatprep.mubr.f32.mxu0 0.0
        %2977 = vmatmul.mubr.f32.gmra.mrb[0].mxu0 %v2861
        %v2978 = vpop.f32.mrb[0].mxu0
        %v2979 = vadd.f32 %v2852, %v2978
        %v2980 = vpop.f32.mrb[0].mxu0
        %2981 = vmatprep.mubr.f32.mxu0 0.0
        %2982 = vmatmul.mubr.f32.gmra.mrb[0].mxu0 %v2864
        %v2983 = vpop.f32.mrb[0].mxu0
        %v2984 = vadd.f32 %v2852, %v2983
        %v2985 = vpop.f32.mrb[0].mxu0
        %2986 = vmatprep.mubr.f32.mxu0 0.0
        %2987 = vmatmul.mubr.f32.gmra.mrb[0].mxu0 %v2867
        %v2988 = vpop.f32.mrb[0].mxu0
        %v2989 = vadd.f32 %v2852, %v2988
        %v2990 = vpop.f32.mrb[0].mxu0
        %2991 = vmatprep.mubr.f32.mxu0 0.0
        %2992 = vmatmul.mubr.f32.gmra.mrb[0].mxu0 %v2870
        %v2993 = vpop.f32.mrb[0].mxu0
        %v2994 = vadd.f32 %v2852, %v2993
        %v2995 = vpop.f32.mrb[0].mxu0
        %2996 = vmatprep.mubr.f32.mxu0 0.0
        %2997 = vmatmul.mubr.f32.gmra.mrb[0].mxu0 %v2873
        %v2998 = vpop.f32.mrb[0].mxu0
        %v2999 = vadd.f32 %v2852, %v2998
        %v3000 = vpop.f32.mrb[0].mxu0
        %3001 = vmatprep.mubr.f32.mxu0 0.0
        %3002 = vmatmul.mubr.f32.gmra.mrb[0].mxu0 %v2876
        %v3003 = vpop.f32.mrb[0].mxu0
        %v3004 = vadd.f32 %v2852, %v3003
        %v3005 = vpop.f32.mrb[0].mxu0
        %3006 = vmatprep.mubr.f32.mxu0 0.0
        %3007 = vmatmul.mubr.f32.gmra.mrb[0].mxu0 %v2879
        %v3008 = vpop.f32.mrb[0].mxu0
        %v3009 = vadd.f32 %v2852, %v3008
        %v3010 = vpop.f32.mrb[0].mxu0
        %3011 = vmatprep.mubr.f32.mxu0 0.0
        %3012 = vmatmul.mubr.f32.gmra.mrb[0].mxu0 %v2882
        %v3013 = vpop.f32.mrb[0].mxu0
        %v3014 = vadd.f32 %v2852, %v3013
        %v3015 = vpop.f32.mrb[0].mxu0
        %3016 = vmatprep.mubr.f32.mxu0 0.0
        %3017 = vmatmul.mubr.f32.gmra.mrb[0].mxu0 %v2885
        %v3018 = vpop.f32.mrb[0].mxu0
        %v3019 = vadd.f32 %v2852, %v3018
        %v3020 = vpop.f32.mrb[0].mxu0
        %3021 = vmatprep.mubr.f32.mxu0 0.0
        %3022 = vmatmul.mubr.f32.gmra.mrb[0].mxu0 %v2888
        %v3023 = vpop.f32.mrb[0].mxu0
        %v3024 = vadd.f32 %v2852, %v3023
        %v3025 = vpop.f32.mrb[0].mxu0
        %3026 = vmatprep.mubr.f32.mxu0 0.0
        %3027 = vmatmul.mubr.f32.gmra.mrb[0].mxu0 %v2891
        %v3028 = vpop.f32.mrb[0].mxu0
        %v3029 = vadd.f32 %v2852, %v3028
        %v3030 = vpop.f32.mrb[0].mxu0
        %3031 = vmatprep.mubr.f32.mxu0 0.0
        %3032 = vmatmul.mubr.f32.gmra.mrb[0].mxu0 %v2894
        %v3033 = vpop.f32.mrb[0].mxu0
        %v3034 = vadd.f32 %v2852, %v3033
        %v3035 = vpop.f32.mrb[0].mxu0
        %3036 = vmatprep.mubr.f32.mxu0 0.0
        %3037 = vmatmul.mubr.f32.gmra.mrb[0].mxu0 %v2897
        %v3038 = vpop.f32.mrb[0].mxu0
        %v3039 = vadd.f32 %v2852, %v3038
        %v3040 = vpop.f32.mrb[0].mxu0
        %3041 = vmatprep.mubr.f32.mxu0 0.0
        %3042 = vmatmul.mubr.f32.gmra.mrb[0].mxu0 %v2900
        %v3043 = vpop.f32.mrb[0].mxu0
        %v3044 = vadd.f32 %v2852, %v3043
        %v3045 = vpop.f32.mrb[0].mxu0
        %3046 = vdwg.mxu0
        %3047 = vst.msk [vmem:[%s457] sm:$0xff] %vm942, %v2969
        %3048 = vst.msk [vmem:[%s457 + $0x8] sm:$0xff] %vm942, %v2974
        %3049 = vst.msk [vmem:[%s457 + $0x10] sm:$0xff] %vm942, %v2979
        %3050 = vst.msk [vmem:[%s457 + $0x18] sm:$0xff] %vm942, %v2984
        %3051 = vst.msk [vmem:[%s457 + $0x20] sm:$0xff] %vm942, %v2989
        %3052 = vst.msk [vmem:[%s457 + $0x28] sm:$0xff] %vm942, %v2994
        %3053 = vst.msk [vmem:[%s457 + $0x30] sm:$0xff] %vm942, %v2999
        %3054 = vst.msk [vmem:[%s457 + $0x38] sm:$0xff] %vm942, %v3004
        %3055 = vst.msk [vmem:[%s457 + $0x40] sm:$0xff] %vm942, %v3009
        %3056 = vst.msk [vmem:[%s457 + $0x48] sm:$0xff] %vm942, %v3014
        %3057 = vst.msk [vmem:[%s457 + $0x50] sm:$0xff] %vm942, %v3019
        %3058 = vst.msk [vmem:[%s457 + $0x58] sm:$0xff] %vm942, %v3024
        %3059 = vst.msk [vmem:[%s457 + $0x60] sm:$0xff] %vm942, %v3029
        %3060 = vst.msk [vmem:[%s457 + $0x68] sm:$0xff] %vm942, %v3034
        %3061 = vst.msk [vmem:[%s457 + $0x70] sm:$0xff] %vm942, %v3039
        %3062 = vst.msk [vmem:[%s457 + $0x78] sm:$0xff] %vm942, %v3044
        %v3063 = vld [vmem:[%s9] sm:$0xff]
        %v3064 = vld [vmem:[%s9 + $0x8] sm:$0xff]
        %v3065 = vld [vmem:[%s9 + $0x10] sm:$0xff]
        %v3066 = vld [vmem:[%s9 + $0x18] sm:$0xff]
        %v3067 = vld [vmem:[%s10] sm:$0x1]
        %v3069 = vlaneseq
        %v3070 = vshrl.u32 %v3069, 7
        %v3071 = vsub.s32 0, %v3070
        %v3072 = vrot.slane %v3067, %v3071
        %v3075 = vsel %vm942, %v2827, 0
        %v3078 = vsel %vm942, %v2828, 0
        %v3081 = vsel %vm942, %v2829, 0
        %v3084 = vsel %vm942, %v2830, 0
        %v3087 = vsel %vm942, %v2831, 0
        %v3090 = vsel %vm942, %v2832, 0
        %v3093 = vsel %vm942, %v2833, 0
        %v3096 = vsel %vm942, %v2834, 0
        %v3099 = vsel %vm942, %v2835, 0
        %v3102 = vsel %vm942, %v2836, 0
        %v3105 = vsel %vm942, %v2837, 0
        %v3108 = vsel %vm942, %v2838, 0
        %v3111 = vsel %vm942, %v2839, 0
        %v3114 = vsel %vm942, %v2840, 0
        %v3117 = vsel %vm942, %v2841, 0
        %v3120 = vsel %vm942, %v2842, 0
        %3122 = vmatprep.subr.mxu0 0.0
        %3123 = vmatpush1.msra.mxu0 %v3063
        %3124 = vmatprep.subr.mxu0 0.0
        %3125 = vmatpush1.msra.mxu0 %v3064
        %3126 = vmatprep.subr.mxu0 0.0
        %3127 = vmatpush1.msra.mxu0 %v3065
        %3128 = vmatprep.subr.mxu0 0.0
        %3129 = vmatpush1.msra.mxu0 %v3066
        %3130 = vmatprep.subr.mxu0 0.0
        %3131 = vmatpush1.msra.mxu0 0.0
        %3132 = vmatprep.subr.mxu0 0.0
        %3133 = vmatpush1.msra.mxu0 0.0
        %3134 = vmatprep.subr.mxu0 0.0
        %3135 = vmatpush1.msra.mxu0 0.0
        %3136 = vmatprep.subr.mxu0 0.0
        %3137 = vmatpush1.msra.mxu0 0.0
        %3138 = vmatprep.subr.mxu0 0.0
        %3139 = vmatpush1.msra.mxu0 0.0
        %3140 = vmatprep.subr.mxu0 0.0
        %3141 = vmatpush1.msra.mxu0 0.0
        %3142 = vmatprep.subr.mxu0 0.0
        %3143 = vmatpush1.msra.mxu0 0.0
        %3144 = vmatprep.subr.mxu0 0.0
        %3145 = vmatpush1.msra.mxu0 0.0
        %3146 = vmatprep.subr.mxu0 0.0
        %3147 = vmatpush1.msra.mxu0 0.0
        %3148 = vmatprep.subr.mxu0 0.0
        %3149 = vmatpush1.msra.mxu0 0.0
        %3150 = vmatprep.subr.mxu0 0.0
        %3151 = vmatpush1.msra.mxu0 0.0
        %3152 = vmatprep.subr.mxu0 0.0
        %3153 = vmatpush1.msra.mxu0 0.0
        %3154 = vmatprep.subr.mxu0 0.0
        %3155 = vmatpush1.msra.mxu0 0.0
        %3156 = vmatprep.subr.mxu0 0.0
        %3157 = vmatpush1.msra.mxu0 0.0
        %3158 = vmatprep.subr.mxu0 0.0
        %3159 = vmatpush1.msra.mxu0 0.0
        %3160 = vmatprep.subr.mxu0 0.0
        %3161 = vmatpush1.msra.mxu0 0.0
        %3162 = vmatprep.subr.mxu0 0.0
        %3163 = vmatpush1.msra.mxu0 0.0
        %3164 = vmatprep.subr.mxu0 0.0
        %3165 = vmatpush1.msra.mxu0 0.0
        %3166 = vmatprep.subr.mxu0 0.0
        %3167 = vmatpush1.msra.mxu0 0.0
        %3168 = vmatprep.subr.mxu0 0.0
        %3169 = vmatpush1.msra.mxu0 0.0
        %3170 = vmatprep.subr.mxu0 0.0
        %3171 = vmatpush1.msra.mxu0 0.0
        %3172 = vmatprep.subr.mxu0 0.0
        %3173 = vmatpush1.msra.mxu0 0.0
        %3174 = vmatprep.subr.mxu0 0.0
        %3175 = vmatpush1.msra.mxu0 0.0
        %3176 = vmatprep.subr.mxu0 0.0
        %3177 = vmatpush1.msra.mxu0 0.0
        %3178 = vmatprep.subr.mxu0 0.0
        %3179 = vmatpush1.msra.mxu0 0.0
        %3180 = vmatprep.subr.mxu0 0.0
        %3181 = vmatpush1.msra.mxu0 0.0
        %3182 = vmatprep.subr.mxu0 0.0
        %3183 = vmatpush1.msra.mxu0 0.0
        %3184 = vmatprep.subr.mxu0 0.0
        %3185 = vmatpush1.msra.mxu0 0.0
        %3186 = vmatprep.mubr.f32.mxu0 0.0
        %3187 = vmatmul.mubr.f32.gmra.mrb[0].mxu0 %v3075
        %v3188 = vpop.f32.mrb[0].mxu0
        %v3189 = vadd.f32 %v3072, %v3188
        %v3190 = vpop.f32.mrb[0].mxu0
        %3191 = vmatprep.mubr.f32.mxu0 0.0
        %3192 = vmatmul.mubr.f32.gmra.mrb[0].mxu0 %v3078
        %v3193 = vpop.f32.mrb[0].mxu0
        %v3194 = vadd.f32 %v3072, %v3193
        %v3195 = vpop.f32.mrb[0].mxu0
        %3196 = vmatprep.mubr.f32.mxu0 0.0
        %3197 = vmatmul.mubr.f32.gmra.mrb[0].mxu0 %v3081
        %v3198 = vpop.f32.mrb[0].mxu0
        %v3199 = vadd.f32 %v3072, %v3198
        %v3200 = vpop.f32.mrb[0].mxu0
        %3201 = vmatprep.mubr.f32.mxu0 0.0
        %3202 = vmatmul.mubr.f32.gmra.mrb[0].mxu0 %v3084
        %v3203 = vpop.f32.mrb[0].mxu0
        %v3204 = vadd.f32 %v3072, %v3203
        %v3205 = vpop.f32.mrb[0].mxu0
        %3206 = vmatprep.mubr.f32.mxu0 0.0
        %3207 = vmatmul.mubr.f32.gmra.mrb[0].mxu0 %v3087
        %v3208 = vpop.f32.mrb[0].mxu0
        %v3209 = vadd.f32 %v3072, %v3208
        %v3210 = vpop.f32.mrb[0].mxu0
        %3211 = vmatprep.mubr.f32.mxu0 0.0
        %3212 = vmatmul.mubr.f32.gmra.mrb[0].mxu0 %v3090
        %v3213 = vpop.f32.mrb[0].mxu0
        %v3214 = vadd.f32 %v3072, %v3213
        %v3215 = vpop.f32.mrb[0].mxu0
        %3216 = vmatprep.mubr.f32.mxu0 0.0
        %3217 = vmatmul.mubr.f32.gmra.mrb[0].mxu0 %v3093
        %v3218 = vpop.f32.mrb[0].mxu0
        %v3219 = vadd.f32 %v3072, %v3218
        %v3220 = vpop.f32.mrb[0].mxu0
        %3221 = vmatprep.mubr.f32.mxu0 0.0
        %3222 = vmatmul.mubr.f32.gmra.mrb[0].mxu0 %v3096
        %v3223 = vpop.f32.mrb[0].mxu0
        %v3224 = vadd.f32 %v3072, %v3223
        %v3225 = vpop.f32.mrb[0].mxu0
        %3226 = vmatprep.mubr.f32.mxu0 0.0
        %3227 = vmatmul.mubr.f32.gmra.mrb[0].mxu0 %v3099
        %v3228 = vpop.f32.mrb[0].mxu0
        %v3229 = vadd.f32 %v3072, %v3228
        %v3230 = vpop.f32.mrb[0].mxu0
        %3231 = vmatprep.mubr.f32.mxu0 0.0
        %3232 = vmatmul.mubr.f32.gmra.mrb[0].mxu0 %v3102
        %v3233 = vpop.f32.mrb[0].mxu0
        %v3234 = vadd.f32 %v3072, %v3233
        %v3235 = vpop.f32.mrb[0].mxu0
        %3236 = vmatprep.mubr.f32.mxu0 0.0
        %3237 = vmatmul.mubr.f32.gmra.mrb[0].mxu0 %v3105
        %v3238 = vpop.f32.mrb[0].mxu0
        %v3239 = vadd.f32 %v3072, %v3238
        %v3240 = vpop.f32.mrb[0].mxu0
        %3241 = vmatprep.mubr.f32.mxu0 0.0
        %3242 = vmatmul.mubr.f32.gmra.mrb[0].mxu0 %v3108
        %v3243 = vpop.f32.mrb[0].mxu0
        %v3244 = vadd.f32 %v3072, %v3243
        %v3245 = vpop.f32.mrb[0].mxu0
        %3246 = vmatprep.mubr.f32.mxu0 0.0
        %3247 = vmatmul.mubr.f32.gmra.mrb[0].mxu0 %v3111
        %v3248 = vpop.f32.mrb[0].mxu0
        %v3249 = vadd.f32 %v3072, %v3248
        %v3250 = vpop.f32.mrb[0].mxu0
        %3251 = vmatprep.mubr.f32.mxu0 0.0
        %3252 = vmatmul.mubr.f32.gmra.mrb[0].mxu0 %v3114
        %v3253 = vpop.f32.mrb[0].mxu0
        %v3254 = vadd.f32 %v3072, %v3253
        %v3255 = vpop.f32.mrb[0].mxu0
        %3256 = vmatprep.mubr.f32.mxu0 0.0
        %3257 = vmatmul.mubr.f32.gmra.mrb[0].mxu0 %v3117
        %v3258 = vpop.f32.mrb[0].mxu0
        %v3259 = vadd.f32 %v3072, %v3258
        %v3260 = vpop.f32.mrb[0].mxu0
        %3261 = vmatprep.mubr.f32.mxu0 0.0
        %3262 = vmatmul.mubr.f32.gmra.mrb[0].mxu0 %v3120
        %v3263 = vpop.f32.mrb[0].mxu0
        %v3264 = vadd.f32 %v3072, %v3263
        %v3265 = vpop.f32.mrb[0].mxu0
        %3266 = vdwg.mxu0
        %3267 = vst.msk [vmem:[%s463] sm:$0xff] %vm942, %v3189
        %3268 = vst.msk [vmem:[%s463 + $0x8] sm:$0xff] %vm942, %v3194
        %3269 = vst.msk [vmem:[%s463 + $0x10] sm:$0xff] %vm942, %v3199
        %3270 = vst.msk [vmem:[%s463 + $0x18] sm:$0xff] %vm942, %v3204
        %3271 = vst.msk [vmem:[%s463 + $0x20] sm:$0xff] %vm942, %v3209
        %3272 = vst.msk [vmem:[%s463 + $0x28] sm:$0xff] %vm942, %v3214
        %3273 = vst.msk [vmem:[%s463 + $0x30] sm:$0xff] %vm942, %v3219
        %3274 = vst.msk [vmem:[%s463 + $0x38] sm:$0xff] %vm942, %v3224
        %3275 = vst.msk [vmem:[%s463 + $0x40] sm:$0xff] %vm942, %v3229
        %3276 = vst.msk [vmem:[%s463 + $0x48] sm:$0xff] %vm942, %v3234
        %3277 = vst.msk [vmem:[%s463 + $0x50] sm:$0xff] %vm942, %v3239
        %3278 = vst.msk [vmem:[%s463 + $0x58] sm:$0xff] %vm942, %v3244
        %3279 = vst.msk [vmem:[%s463 + $0x60] sm:$0xff] %vm942, %v3249
        %3280 = vst.msk [vmem:[%s463 + $0x68] sm:$0xff] %vm942, %v3254
        %3281 = vst.msk [vmem:[%s463 + $0x70] sm:$0xff] %vm942, %v3259
        %3282 = vst.msk [vmem:[%s463 + $0x78] sm:$0xff] %vm942, %v3264
      $region72: #{resunet_attention_module.2} parent=63 // pred_fallthru
        _
      %s3283 = smul.u32 16, %s28
      %p3284 = scmp.lt.s32.totalorder %s3283, 31
      %s3285 = scalar_select %p3284, %s3283, 31
      %s3286 = smul.addr %s3285, 8
      %s3287 = scalar_lea.vmem %s11, %s3286
      %s3288 = smul.u32 16, %s28
      %p3289 = scmp.lt.s32.totalorder %s3288, 31
      %s3290 = scalar_select %p3289, %s3288, 31
      %s3291 = smul.addr %s3290, 8
      %s3292 = scalar_lea.vmem %s12, %s3291
      // Predicated region
      $region73: #{resunet_attention_module.2} parent=63 // pred_check
        %p3293 = pneg %p295
      $region74: #{resunet_attention_module.2} parent=63 // pred_check_branch
        %3295 = sbr.rel (%p3293) target = $region76
      $region75: #{resunet_attention_module.2} parent=63 // pred_region
        %s3296 = smul.u32 16, %s28
      $region76: #{resunet_attention_module.2} parent=63 // pred_fallthru
        _
      // Predicated region
      $region77: #{resunet_attention_module.2} parent=63 // pred_check
        %p3297 = pneg %p321
      $region78: #{resunet_attention_module.2} parent=63 // pred_check_branch
        %3299 = sbr.rel (%p3297) target = $region80
      $region79: #{resunet_attention_module.2} parent=63 // pred_region
        %s3300 = smul.u32 16, %s28
      $region80: #{resunet_attention_module.2} parent=63 // pred_fallthru
        _
    $region64: #{resunet_attention_module.2} parent=5 // pred_fallthru
      _
    %p3301 = scmp.le.s32.totalorder 2, %s19
    // Predicated region
    $region81: #{resunet_attention_module.2} parent=5 // pred_check
      %p3302 = pneg %p3301
    $region82: #{resunet_attention_module.2} parent=5 // pred_check_branch
      %3304 = sbr.rel (%p3302) target = $region84
    $region83: #{resunet_attention_module.2} parent=5 // pred_region
      %s3305 = ssub.s32 %s19, 2
      // Predicated region
      $region85: #{resunet_attention_module.2} parent=83 // pred_check
        %p3306 = pneg %p301
      $region86: #{resunet_attention_module.2} parent=83 // pred_check_branch
        %3308 = sbr.rel (%p3306) target = $region88
      $region87: #{resunet_attention_module.2} parent=83 // pred_region
        %s3309 = smul.u32 16, %s30
        %p3310 = scmp.lt.s32.totalorder %s3309, 31
        %s3311 = scalar_select %p3310, %s3309, 31
        %s3312 = smul.addr %s3311, 8
        %s3313 = scalar_lea.vmem %s11, %s3312
      $region88: #{resunet_attention_module.2} parent=83 // pred_fallthru
        _
      // Predicated region
      $region89: #{resunet_attention_module.2} parent=83 // pred_check
        %p3314 = pneg %p327
      $region90: #{resunet_attention_module.2} parent=83 // pred_check_branch
        %3316 = sbr.rel (%p3314) target = $region92
      $region91: #{resunet_attention_module.2} parent=83 // pred_region
        %s3317 = smul.u32 16, %s30
        %p3318 = scmp.lt.s32.totalorder %s3317, 31
        %s3319 = scalar_select %p3318, %s3317, 31
        %s3320 = smul.addr %s3319, 8
        %s3321 = scalar_lea.vmem %s12, %s3320
      $region92: #{resunet_attention_module.2} parent=83 // pred_fallthru
        _
    $region84: #{resunet_attention_module.2} parent=5 // pred_fallthru
      _
  $region6: #{resunet_attention_module.2} parent=0 // loop_footer
    %s23 = sadd.s32 1, %s19
  $region7: #{resunet_attention_module.2} parent=0 // loop_footer_branch
    %18 = sbr.rel target = $region3
  $region8: #{resunet_attention_module.2} parent=0 // loop_exit
    _

</llo_original>
